<compile_context>
chip_gen: v5e
topology: v5e:2x2
jax: 0.10.0
libtpu: 0.0.40
codegen_flags: <defaults>
</compile_context>

<pallas_src>
import jax
import jax.numpy as jnp
from jax.experimental import pallas as pl
from jax.experimental.pallas import tpu as pltpu

IN_FEATURES = 1024
OUT_FEATURES = 1024


def linear_add_kernel(x_ref, w_ref, b_ref, other_ref, o_ref):
    # x_ref:     (B, K)    full activation, resident (f32)
    # w_ref:     (K, TN)   weight tile, pre-transposed [in, out] layout (bf16)
    # b_ref:     (1, TN)   bias tile (f32)
    # other_ref: (B, TN)   residual tile (f32)
    # o_ref:     (B, TN)   output tile (f32)
    acc = jnp.dot(
        x_ref[...].astype(w_ref.dtype),   # cast tiny activation to bf16 for MXU
        w_ref[...],
        preferred_element_type=jnp.float32,  # f32 accumulation
    )  # (B, TN)
    o_ref[...] = (acc + b_ref[...] + other_ref[...]).astype(o_ref.dtype)


def _default_tn():
    """tn=512 (grid of 2, split across the two TensorCores) only on v7x;
    tn=1024 (single grid step) on single-TC chips (v5e / v6e)."""
    try:
        kind = jax.devices()[0].device_kind.lower()
    except Exception:
        return 1024
    return 512 if "v7" in kind else 1024


def linear_add(x, w_t, b, other, *, tn=None):
    """y = x @ w_t + b + other   (w_t is the weight pre-transposed to [in, out])."""
    B, K = x.shape
    K2, N = w_t.shape
    assert K2 == K and b.shape == (N,) and other.shape == (B, N)
    if tn is None:
        tn = _default_tn()
    assert N % tn == 0, "tn must evenly divide out_features (no tail handling)"
    assert tn % 128 == 0, "tn must be lane-aligned"
    b2 = b.reshape(1, N)

    grid = (N // tn,)

    # Advisory cost hint: this call is HBM-bandwidth bound (weight dominates).
    bytes_accessed = (
        w_t.size * w_t.dtype.itemsize
        + x.size * x.dtype.itemsize
        + b2.size * b2.dtype.itemsize
        + other.size * other.dtype.itemsize
        + B * N * x.dtype.itemsize
    )
    cost = pl.CostEstimate(
        flops=2 * B * N * K, transcendentals=0, bytes_accessed=bytes_accessed
    )

    return pl.pallas_call(
        linear_add_kernel,
        out_shape=jax.ShapeDtypeStruct((B, N), x.dtype),
        grid_spec=pltpu.PrefetchScalarGridSpec(
            num_scalar_prefetch=0,
            grid=grid,
            in_specs=[
                pl.BlockSpec((B, K), lambda j: (0, 0)),    # x: full, resident
                pl.BlockSpec((K, tn), lambda j: (0, j)),   # weight tile [K, TN]
                pl.BlockSpec((1, tn), lambda j: (0, j)),   # bias tile
                pl.BlockSpec((B, tn), lambda j: (0, j)),   # residual tile
            ],
            out_specs=pl.BlockSpec((B, tn), lambda j: (0, j)),
        ),
        compiler_params=pltpu.CompilerParams(
            dimension_semantics=("parallel",),  # v7x: each TC owns half the weight DMA
        ),
        cost_estimate=cost,
    )(x, w_t, b2, other)


if __name__ == "__main__":
    key = jax.random.PRNGKey(0)
    k_x, k_other, k_w, k_b = jax.random.split(key, 4)

    # Inputs (same shapes as the PyTorch script: (1, 1024))
    x = jax.random.normal(k_x, (1, IN_FEATURES), dtype=jnp.float32)
    other = jax.random.normal(k_other, (1, OUT_FEATURES), dtype=jnp.float32)

    # Deterministic parameter init (mimic nn.Linear uniform(-1/sqrt(in), 1/sqrt(in)))
    bound = 1.0 / jnp.sqrt(jnp.float32(IN_FEATURES))
    w = jax.random.uniform(k_w, (OUT_FEATURES, IN_FEATURES),
                           minval=-bound, maxval=bound, dtype=jnp.float32)
    b = jax.random.uniform(k_b, (OUT_FEATURES,),
                           minval=-bound, maxval=bound, dtype=jnp.float32)

    # One-time parameter prep (amortized over all forward calls):
    #   transpose to [in, out] and cast to bf16.
    w_t = jnp.asarray(w.T, dtype=jnp.bfloat16)

    out = linear_add(x, w_t, b, other)
    out = jax.block_until_ready(out)
    assert out.shape == (1, OUT_FEATURES)

    # Precision-matched reference (bf16 weight, f32 accumulate) -> tight check.
    ref_bf16 = (
        jnp.dot(x.astype(jnp.bfloat16), w_t, preferred_element_type=jnp.float32)
        + b + other
    )
    assert jnp.allclose(out, ref_bf16, atol=1e-3, rtol=1e-3)

    # Full-f32 nn.Linear reference -> loose check (bf16 weight round-off only).
    ref_f32 = x @ w.T + b + other
    assert jnp.allclose(out, ref_f32, atol=5e-2, rtol=5e-2)

    print("KERNEL_OK")
</pallas_src>

<mosaic_0001>
module attributes {stable_mosaic.version = 11 : i64} {
  func.func @linear_add_kernel(%arg0: i32, %arg1: memref<1x1024xf32, #tpu.memory_space<vmem>>, %arg2: memref<1024x1024xbf16, #tpu.memory_space<vmem>>, %arg3: memref<1x1024xf32, #tpu.memory_space<vmem>>, %arg4: memref<1x1024xf32, #tpu.memory_space<vmem>>, %arg5: memref<1x1024xf32, #tpu.memory_space<vmem>>) attributes {dimension_semantics = [#tpu.dimension_semantics<parallel>], iteration_bounds = array<i64: 1>, scalar_prefetch = 0 : i64, scratch_operands = 0 : i64, tpu.core_type = #tpu.core_type<tc>, window_params = [{pipeline_mode = #tpu.pipeline_mode<synchronous>, transform_indices = @transform_0, window_bounds = array<i64: 1, 1024>}, {transform_indices = @transform_1, window_bounds = array<i64: 1024, 1024>}, {transform_indices = @transform_2, window_bounds = array<i64: 1, 1024>}, {transform_indices = @transform_3, window_bounds = array<i64: 1, 1024>}, {transform_indices = @transform_4, window_bounds = array<i64: 1, 1024>}]} {
    %c0 = arith.constant 0 : index
    %c0_0 = arith.constant 0 : index
    %0 = vector.load %arg1[%c0, %c0_0] : memref<1x1024xf32, #tpu.memory_space<vmem>>, vector<1x1024xf32>
    %1 = arith.truncf %0 : vector<1x1024xf32> to vector<1x1024xbf16>
    %c0_1 = arith.constant 0 : index
    %c0_2 = arith.constant 0 : index
    %2 = vector.load %arg2[%c0_1, %c0_2] : memref<1024x1024xbf16, #tpu.memory_space<vmem>>, vector<1024x1024xbf16>
    %cst = arith.constant dense<0.000000e+00> : vector<1x1024xf32>
    %3 = tpu.matmul %1, %2, %cst {dimension_numbers = #tpu.dot_dimension_numbers<[1], [0], [0], [1], [0, 0, 1, 1], [], []>} : vector<1x1024xbf16>, vector<1024x1024xbf16>, vector<1x1024xf32> -> vector<1x1024xf32>
    %c0_3 = arith.constant 0 : index
    %c0_4 = arith.constant 0 : index
    %4 = vector.load %arg3[%c0_3, %c0_4] : memref<1x1024xf32, #tpu.memory_space<vmem>>, vector<1x1024xf32>
    %5 = arith.addf %3, %4 : vector<1x1024xf32>
    %c0_5 = arith.constant 0 : index
    %c0_6 = arith.constant 0 : index
    %6 = vector.load %arg4[%c0_5, %c0_6] : memref<1x1024xf32, #tpu.memory_space<vmem>>, vector<1x1024xf32>
    %7 = arith.addf %5, %6 : vector<1x1024xf32>
    %c0_7 = arith.constant 0 : index
    %c0_8 = arith.constant 0 : index
    %8 = vector.load %arg5[%c0_7, %c0_8] : memref<1x1024xf32, #tpu.memory_space<vmem>>, vector<1x1024xf32>
    tpu.vector_store %arg5[%c0_7, %c0_8], %7 {strides = array<i32>} : memref<1x1024xf32, #tpu.memory_space<vmem>>, vector<1x1024xf32>,
    return
  }
  func.func @transform_0(%arg0: i32) -> (i32, i32) {
    %c0_i32 = arith.constant 0 : i32
    %c0_i32_0 = arith.constant 0 : i32
    %c0_i32_1 = arith.constant 0 : i32
    return %c0_i32, %c0_i32_0 : i32, i32
  }
  func.func @transform_1(%arg0: i32) -> (i32, i32) {
    %c0_i32 = arith.constant 0 : i32
    %c0_i32_0 = arith.constant 0 : i32
    return %c0_i32, %arg0 : i32, i32
  }
  func.func @transform_2(%arg0: i32) -> (i32, i32) {
    %c0_i32 = arith.constant 0 : i32
    %c0_i32_0 = arith.constant 0 : i32
    return %c0_i32, %arg0 : i32, i32
  }
  func.func @transform_3(%arg0: i32) -> (i32, i32) {
    %c0_i32 = arith.constant 0 : i32
    %c0_i32_0 = arith.constant 0 : i32
    return %c0_i32, %arg0 : i32, i32
  }
  func.func @transform_4(%arg0: i32) -> (i32, i32) {
    %c0_i32 = arith.constant 0 : i32
    %c0_i32_0 = arith.constant 0 : i32
    return %c0_i32, %arg0 : i32, i32
  }
}

</mosaic_0001>

<llo_original>
// kernel: tpu_custom_call.1
$region0: #{tpu_custom_call.1}
  #allocation0 [shape = 'u32[]', space=smem, size = 0x4, offset = 0x4, fixed_abs, tag = 'smem constant byte address 0x4 - core index']
  #allocation1 [shape = 'u32[72,128]{1,0:T(1,128)}', space=vmem, size = 0x9000, scoped, tag = 'internal scratch']
  %s0 = inlined_call_operand.hbm [shape: f32[1,1024], index: 0, kind: input, shape index: {}]
  %s1 = inlined_call_operand.hbm [shape: bf16[1024,1024], index: 1, kind: input, shape index: {}]
  %s2 = inlined_call_operand.hbm [shape: f32[1,1024], index: 2, kind: input, shape index: {}]
  %s3 = inlined_call_operand.hbm [shape: f32[1,1024], index: 3, kind: input, shape index: {}]
  %s4 = inlined_call_operand.hbm [shape: f32[1,1024], index: 4, kind: output, shape index: {}]
  %s5 = sld [smem:[#allocation0]]
  $region42: #{tpu_custom_call.1} parent=0
    _
  %s7 = ssub.s32 1, %s5
  %s8 = scalar_select 0, %s7, %s5
  $region1: #{tpu_custom_call.1} parent=0
    #allocation2 [shape = 'u8[4096]{0}', space=vmem, size = 0x1000, scoped, tag = 'input window, operand 0, single buffered']
    #allocation3 [shape = 's32[1]{0}', space=sflag, size = 0x4, scoped, tag = 'scoped memory for tpu_custom_call.1']
    #allocation4 [shape = 's32[1]{0}', space=sflag, size = 0x4, scoped, tag = 'scoped memory for tpu_custom_call.1']
    #allocation5 [shape = 'u8[2097152]{0}', space=vmem, size = 0x200000, scoped, tag = 'input window, operand 1, single buffered']
    #allocation6 [shape = 's32[1]{0}', space=sflag, size = 0x4, scoped, tag = 'scoped memory for tpu_custom_call.1']
    #allocation7 [shape = 'u8[4096]{0}', space=vmem, size = 0x1000, scoped, tag = 'input window, operand 2, single buffered']
    #allocation8 [shape = 'u8[4096]{0}', space=vmem, size = 0x1000, scoped, tag = 'input window, operand 3, single buffered']
    #allocation9 [shape = 's32[1]{0}', space=sflag, size = 0x4, scoped, tag = 'scoped memory for tpu_custom_call.1']
    #allocation10 [shape = 'u8[4096]{0}', space=vmem, size = 0x1000, scoped, tag = 'output window, operand 0, single buffered']
    %9 = vsyncpa [#allocation3], 0
    %10 = vsyncpa [#allocation6], 0
    %11 = vsyncpa [#allocation9], 0
    %12 = vsyncpa [#allocation4], 0
    // Predicated region
    $region2: #{tpu_custom_call.1} parent=1 // pred_check
      _
    $region3: #{tpu_custom_call.1} parent=1 // pred_check_branch
      %14 = sbr.rel (0) target = $region5
    $region4: #{tpu_custom_call.1} parent=1 // pred_region
      %16 = vsyncadd [#allocation3], 0
      %s18 = sshll.u32 %s0, 4
      %s19 = int_to_ptr.hbm [resolvable:$true] %s18
      %s20 = sshll.u32 [#allocation2], 4
      %s21 = int_to_ptr.vmem [resolvable:$true] %s20
      %23 = dma.hbm_to_vmem [thread:$0]  %s19, 128, %s21, [#allocation3]
    $region5: #{tpu_custom_call.1} parent=1 // pred_fallthru
      _
    // Predicated region
    $region6: #{tpu_custom_call.1} parent=1 // pred_check
      _
    $region7: #{tpu_custom_call.1} parent=1 // pred_check_branch
      %25 = sbr.rel (0) target = $region9
    $region8: #{tpu_custom_call.1} parent=1 // pred_region
      %27 = vsyncadd [#allocation6], 0
      %s28 = sshll.u32 %s1, 4
      %s29 = int_to_ptr.hbm [resolvable:$true] %s28
      %s30 = sshll.u32 [#allocation5], 4
      %s31 = int_to_ptr.vmem [resolvable:$true] %s30
      %36 = dma.hbm_to_vmem [thread:$0]  %s29, 65536, %s31, [#allocation6], 512, 512, 32
    $region9: #{tpu_custom_call.1} parent=1 // pred_fallthru
      _
    // Predicated region
    $region10: #{tpu_custom_call.1} parent=1 // pred_check
      _
    $region11: #{tpu_custom_call.1} parent=1 // pred_check_branch
      %38 = sbr.rel (0) target = $region13
    $region12: #{tpu_custom_call.1} parent=1 // pred_region
      %40 = vsyncadd [#allocation6], 0
      %s42 = sshll.u32 %s2, 4
      %s43 = int_to_ptr.hbm [resolvable:$true] %s42
      %s44 = sshll.u32 [#allocation7], 4
      %s45 = int_to_ptr.vmem [resolvable:$true] %s44
      %47 = dma.hbm_to_vmem [thread:$0]  %s43, 128, %s45, [#allocation6]
    $region13: #{tpu_custom_call.1} parent=1 // pred_fallthru
      _
    // Predicated region
    $region14: #{tpu_custom_call.1} parent=1 // pred_check
      _
    $region15: #{tpu_custom_call.1} parent=1 // pred_check_branch
      %49 = sbr.rel (0) target = $region17
    $region16: #{tpu_custom_call.1} parent=1 // pred_region
      %51 = vsyncadd [#allocation9], 0
      %s53 = sshll.u32 %s3, 4
      %s54 = int_to_ptr.hbm [resolvable:$true] %s53
      %s55 = sshll.u32 [#allocation8], 4
      %s56 = int_to_ptr.vmem [resolvable:$true] %s55
      %58 = dma.hbm_to_vmem [thread:$0]  %s54, 128, %s56, [#allocation9]
    $region17: #{tpu_custom_call.1} parent=1 // pred_fallthru
      _
    // Predicated region
    $region18: #{tpu_custom_call.1} parent=1 // pred_check
      _
    $region19: #{tpu_custom_call.1} parent=1 // pred_check_branch
      %60 = sbr.rel (0) target = $region21
    $region20: #{tpu_custom_call.1} parent=1 // pred_region
      %62 = dma.done [#allocation3], 128
    $region21: #{tpu_custom_call.1} parent=1 // pred_fallthru
      _
    // Predicated region
    $region22: #{tpu_custom_call.1} parent=1 // pred_check
      _
    $region23: #{tpu_custom_call.1} parent=1 // pred_check_branch
      %64 = sbr.rel (0) target = $region25
    $region24: #{tpu_custom_call.1} parent=1 // pred_region
      %66 = dma.done [#allocation6], 65536
    $region25: #{tpu_custom_call.1} parent=1 // pred_fallthru
      _
    // Predicated region
    $region26: #{tpu_custom_call.1} parent=1 // pred_check
      _
    $region27: #{tpu_custom_call.1} parent=1 // pred_check_branch
      %68 = sbr.rel (0) target = $region29
    $region28: #{tpu_custom_call.1} parent=1 // pred_region
      %70 = dma.done [#allocation6], 128
    $region29: #{tpu_custom_call.1} parent=1 // pred_fallthru
      _
    // Predicated region
    $region30: #{tpu_custom_call.1} parent=1 // pred_check
      _
    $region31: #{tpu_custom_call.1} parent=1 // pred_check_branch
      %72 = sbr.rel (0) target = $region33
    $region32: #{tpu_custom_call.1} parent=1 // pred_region
      %74 = dma.done [#allocation9], 128
    $region33: #{tpu_custom_call.1} parent=1 // pred_fallthru
      _
    %v75 = vld [vmem:[#allocation2] sm:$0xff]
    %v77 = vperm.slane %v75, 0
    %v78 = vperm.slane %v75, 1
    %v79 = vperm.slane %v75, 2
    %v80 = vperm.slane %v75, 3
    %v81 = vperm.slane %v75, 4
    %v82 = vperm.slane %v75, 5
    %v83 = vperm.slane %v75, 6
    %v84 = vperm.slane %v75, 7
    %v93 = vpack.c.bf16 %v77, %v77
    %v94 = vpack.c.bf16 %v78, %v78
    %v95 = vpack.c.bf16 %v79, %v79
    %v96 = vpack.c.bf16 %v80, %v80
    %v97 = vpack.c.bf16 %v81, %v81
    %v98 = vpack.c.bf16 %v82, %v82
    %v99 = vpack.c.bf16 %v83, %v83
    %v100 = vpack.c.bf16 %v84, %v84
    %v101 = vld [vmem:[#allocation5] sm:$0xff]
    %v102 = vld [vmem:[#allocation5 + $0x8] sm:$0xff]
    %v103 = vld [vmem:[#allocation5 + $0x10] sm:$0xff]
    %v104 = vld [vmem:[#allocation5 + $0x18] sm:$0xff]
    %v105 = vld [vmem:[#allocation5 + $0x20] sm:$0xff]
    %v106 = vld [vmem:[#allocation5 + $0x28] sm:$0xff]
    %v107 = vld [vmem:[#allocation5 + $0x30] sm:$0xff]
    %v108 = vld [vmem:[#allocation5 + $0x38] sm:$0xff]
    %v109 = vld [vmem:[#allocation5 + $0x40] sm:$0xff]
    %v110 = vld [vmem:[#allocation5 + $0x48] sm:$0xff]
    %v111 = vld [vmem:[#allocation5 + $0x50] sm:$0xff]
    %v112 = vld [vmem:[#allocation5 + $0x58] sm:$0xff]
    %v113 = vld [vmem:[#allocation5 + $0x60] sm:$0xff]
    %v114 = vld [vmem:[#allocation5 + $0x68] sm:$0xff]
    %v115 = vld [vmem:[#allocation5 + $0x70] sm:$0xff]
    %v116 = vld [vmem:[#allocation5 + $0x78] sm:$0xff]
    %v117 = vld [vmem:[#allocation5 + $0x80] sm:$0xff]
    %v118 = vld [vmem:[#allocation5 + $0x88] sm:$0xff]
    %v119 = vld [vmem:[#allocation5 + $0x90] sm:$0xff]
    %v120 = vld [vmem:[#allocation5 + $0x98] sm:$0xff]
    %v121 = vld [vmem:[#allocation5 + $0xa0] sm:$0xff]
    %v122 = vld [vmem:[#allocation5 + $0xa8] sm:$0xff]
    %v123 = vld [vmem:[#allocation5 + $0xb0] sm:$0xff]
    %v124 = vld [vmem:[#allocation5 + $0xb8] sm:$0xff]
    %v125 = vld [vmem:[#allocation5 + $0xc0] sm:$0xff]
    %v126 = vld [vmem:[#allocation5 + $0xc8] sm:$0xff]
    %v127 = vld [vmem:[#allocation5 + $0xd0] sm:$0xff]
    %v128 = vld [vmem:[#allocation5 + $0xd8] sm:$0xff]
    %v129 = vld [vmem:[#allocation5 + $0xe0] sm:$0xff]
    %v130 = vld [vmem:[#allocation5 + $0xe8] sm:$0xff]
    %v131 = vld [vmem:[#allocation5 + $0xf0] sm:$0xff]
    %v132 = vld [vmem:[#allocation5 + $0xf8] sm:$0xff]
    %v133 = vld [vmem:[#allocation5 + $0x100] sm:$0xff]
    %v134 = vld [vmem:[#allocation5 + $0x108] sm:$0xff]
    %v135 = vld [vmem:[#allocation5 + $0x110] sm:$0xff]
    %v136 = vld [vmem:[#allocation5 + $0x118] sm:$0xff]
    %v137 = vld [vmem:[#allocation5 + $0x120] sm:$0xff]
    %v138 = vld [vmem:[#allocation5 + $0x128] sm:$0xff]
    %v139 = vld [vmem:[#allocation5 + $0x130] sm:$0xff]
    %v140 = vld [vmem:[#allocation5 + $0x138] sm:$0xff]
    %v141 = vld [vmem:[#allocation5 + $0x140] sm:$0xff]
    %v142 = vld [vmem:[#allocation5 + $0x148] sm:$0xff]
    %v143 = vld [vmem:[#allocation5 + $0x150] sm:$0xff]
    %v144 = vld [vmem:[#allocation5 + $0x158] sm:$0xff]
    %v145 = vld [vmem:[#allocation5 + $0x160] sm:$0xff]
    %v146 = vld [vmem:[#allocation5 + $0x168] sm:$0xff]
    %v147 = vld [vmem:[#allocation5 + $0x170] sm:$0xff]
    %v148 = vld [vmem:[#allocation5 + $0x178] sm:$0xff]
    %v149 = vld [vmem:[#allocation5 + $0x180] sm:$0xff]
    %v150 = vld [vmem:[#allocation5 + $0x188] sm:$0xff]
    %v151 = vld [vmem:[#allocation5 + $0x190] sm:$0xff]
    %v152 = vld [vmem:[#allocation5 + $0x198] sm:$0xff]
    %v153 = vld [vmem:[#allocation5 + $0x1a0] sm:$0xff]
    %v154 = vld [vmem:[#allocation5 + $0x1a8] sm:$0xff]
    %v155 = vld [vmem:[#allocation5 + $0x1b0] sm:$0xff]
    %v156 = vld [vmem:[#allocation5 + $0x1b8] sm:$0xff]
    %v157 = vld [vmem:[#allocation5 + $0x1c0] sm:$0xff]
    %v158 = vld [vmem:[#allocation5 + $0x1c8] sm:$0xff]
    %v159 = vld [vmem:[#allocation5 + $0x1d0] sm:$0xff]
    %v160 = vld [vmem:[#allocation5 + $0x1d8] sm:$0xff]
    %v161 = vld [vmem:[#allocation5 + $0x1e0] sm:$0xff]
    %v162 = vld [vmem:[#allocation5 + $0x1e8] sm:$0xff]
    %v163 = vld [vmem:[#allocation5 + $0x1f0] sm:$0xff]
    %v164 = vld [vmem:[#allocation5 + $0x1f8] sm:$0xff]
    %v165 = vld [vmem:[#allocation5 + $0x200] sm:$0xff]
    %v166 = vld [vmem:[#allocation5 + $0x208] sm:$0xff]
    %v167 = vld [vmem:[#allocation5 + $0x210] sm:$0xff]
    %v168 = vld [vmem:[#allocation5 + $0x218] sm:$0xff]
    %v169 = vld [vmem:[#allocation5 + $0x220] sm:$0xff]
    %v170 = vld [vmem:[#allocation5 + $0x228] sm:$0xff]
    %v171 = vld [vmem:[#allocation5 + $0x230] sm:$0xff]
    %v172 = vld [vmem:[#allocation5 + $0x238] sm:$0xff]
    %v173 = vld [vmem:[#allocation5 + $0x240] sm:$0xff]
    %v174 = vld [vmem:[#allocation5 + $0x248] sm:$0xff]
    %v175 = vld [vmem:[#allocation5 + $0x250] sm:$0xff]
    %v176 = vld [vmem:[#allocation5 + $0x258] sm:$0xff]
    %v177 = vld [vmem:[#allocation5 + $0x260] sm:$0xff]
    %v178 = vld [vmem:[#allocation5 + $0x268] sm:$0xff]
    %v179 = vld [vmem:[#allocation5 + $0x270] sm:$0xff]
    %v180 = vld [vmem:[#allocation5 + $0x278] sm:$0xff]
    %v181 = vld [vmem:[#allocation5 + $0x280] sm:$0xff]
    %v182 = vld [vmem:[#allocation5 + $0x288] sm:$0xff]
    %v183 = vld [vmem:[#allocation5 + $0x290] sm:$0xff]
    %v184 = vld [vmem:[#allocation5 + $0x298] sm:$0xff]
    %v185 = vld [vmem:[#allocation5 + $0x2a0] sm:$0xff]
    %v186 = vld [vmem:[#allocation5 + $0x2a8] sm:$0xff]
    %v187 = vld [vmem:[#allocation5 + $0x2b0] sm:$0xff]
    %v188 = vld [vmem:[#allocation5 + $0x2b8] sm:$0xff]
    %v189 = vld [vmem:[#allocation5 + $0x2c0] sm:$0xff]
    %v190 = vld [vmem:[#allocation5 + $0x2c8] sm:$0xff]
    %v191 = vld [vmem:[#allocation5 + $0x2d0] sm:$0xff]
    %v192 = vld [vmem:[#allocation5 + $0x2d8] sm:$0xff]
    %v193 = vld [vmem:[#allocation5 + $0x2e0] sm:$0xff]
    %v194 = vld [vmem:[#allocation5 + $0x2e8] sm:$0xff]
    %v195 = vld [vmem:[#allocation5 + $0x2f0] sm:$0xff]
    %v196 = vld [vmem:[#allocation5 + $0x2f8] sm:$0xff]
    %v197 = vld [vmem:[#allocation5 + $0x300] sm:$0xff]
    %v198 = vld [vmem:[#allocation5 + $0x308] sm:$0xff]
    %v199 = vld [vmem:[#allocation5 + $0x310] sm:$0xff]
    %v200 = vld [vmem:[#allocation5 + $0x318] sm:$0xff]
    %v201 = vld [vmem:[#allocation5 + $0x320] sm:$0xff]
    %v202 = vld [vmem:[#allocation5 + $0x328] sm:$0xff]
    %v203 = vld [vmem:[#allocation5 + $0x330] sm:$0xff]
    %v204 = vld [vmem:[#allocation5 + $0x338] sm:$0xff]
    %v205 = vld [vmem:[#allocation5 + $0x340] sm:$0xff]
    %v206 = vld [vmem:[#allocation5 + $0x348] sm:$0xff]
    %v207 = vld [vmem:[#allocation5 + $0x350] sm:$0xff]
    %v208 = vld [vmem:[#allocation5 + $0x358] sm:$0xff]
    %v209 = vld [vmem:[#allocation5 + $0x360] sm:$0xff]
    %v210 = vld [vmem:[#allocation5 + $0x368] sm:$0xff]
    %v211 = vld [vmem:[#allocation5 + $0x370] sm:$0xff]
    %v212 = vld [vmem:[#allocation5 + $0x378] sm:$0xff]
    %v213 = vld [vmem:[#allocation5 + $0x380] sm:$0xff]
    %v214 = vld [vmem:[#allocation5 + $0x388] sm:$0xff]
    %v215 = vld [vmem:[#allocation5 + $0x390] sm:$0xff]
    %v216 = vld [vmem:[#allocation5 + $0x398] sm:$0xff]
    %v217 = vld [vmem:[#allocation5 + $0x3a0] sm:$0xff]
    %v218 = vld [vmem:[#allocation5 + $0x3a8] sm:$0xff]
    %v219 = vld [vmem:[#allocation5 + $0x3b0] sm:$0xff]
    %v220 = vld [vmem:[#allocation5 + $0x3b8] sm:$0xff]
    %v221 = vld [vmem:[#allocation5 + $0x3c0] sm:$0xff]
    %v222 = vld [vmem:[#allocation5 + $0x3c8] sm:$0xff]
    %v223 = vld [vmem:[#allocation5 + $0x3d0] sm:$0xff]
    %v224 = vld [vmem:[#allocation5 + $0x3d8] sm:$0xff]
    %v225 = vld [vmem:[#allocation5 + $0x3e0] sm:$0xff]
    %v226 = vld [vmem:[#allocation5 + $0x3e8] sm:$0xff]
    %v227 = vld [vmem:[#allocation5 + $0x3f0] sm:$0xff]
    %v228 = vld [vmem:[#allocation5 + $0x3f8] sm:$0xff]
    %v229 = vld [vmem:[#allocation5 + $0x400] sm:$0xff]
    %v230 = vld [vmem:[#allocation5 + $0x408] sm:$0xff]
    %v231 = vld [vmem:[#allocation5 + $0x410] sm:$0xff]
    %v232 = vld [vmem:[#allocation5 + $0x418] sm:$0xff]
    %v233 = vld [vmem:[#allocation5 + $0x420] sm:$0xff]
    %v234 = vld [vmem:[#allocation5 + $0x428] sm:$0xff]
    %v235 = vld [vmem:[#allocation5 + $0x430] sm:$0xff]
    %v236 = vld [vmem:[#allocation5 + $0x438] sm:$0xff]
    %v237 = vld [vmem:[#allocation5 + $0x440] sm:$0xff]
    %v238 = vld [vmem:[#allocation5 + $0x448] sm:$0xff]
    %v239 = vld [vmem:[#allocation5 + $0x450] sm:$0xff]
    %v240 = vld [vmem:[#allocation5 + $0x458] sm:$0xff]
    %v241 = vld [vmem:[#allocation5 + $0x460] sm:$0xff]
    %v242 = vld [vmem:[#allocation5 + $0x468] sm:$0xff]
    %v243 = vld [vmem:[#allocation5 + $0x470] sm:$0xff]
    %v244 = vld [vmem:[#allocation5 + $0x478] sm:$0xff]
    %v245 = vld [vmem:[#allocation5 + $0x480] sm:$0xff]
    %v246 = vld [vmem:[#allocation5 + $0x488] sm:$0xff]
    %v247 = vld [vmem:[#allocation5 + $0x490] sm:$0xff]
    %v248 = vld [vmem:[#allocation5 + $0x498] sm:$0xff]
    %v249 = vld [vmem:[#allocation5 + $0x4a0] sm:$0xff]
    %v250 = vld [vmem:[#allocation5 + $0x4a8] sm:$0xff]
    %v251 = vld [vmem:[#allocation5 + $0x4b0] sm:$0xff]
    %v252 = vld [vmem:[#allocation5 + $0x4b8] sm:$0xff]
    %v253 = vld [vmem:[#allocation5 + $0x4c0] sm:$0xff]
    %v254 = vld [vmem:[#allocation5 + $0x4c8] sm:$0xff]
    %v255 = vld [vmem:[#allocation5 + $0x4d0] sm:$0xff]
    %v256 = vld [vmem:[#allocation5 + $0x4d8] sm:$0xff]
    %v257 = vld [vmem:[#allocation5 + $0x4e0] sm:$0xff]
    %v258 = vld [vmem:[#allocation5 + $0x4e8] sm:$0xff]
    %v259 = vld [vmem:[#allocation5 + $0x4f0] sm:$0xff]
    %v260 = vld [vmem:[#allocation5 + $0x4f8] sm:$0xff]
    %v261 = vld [vmem:[#allocation5 + $0x500] sm:$0xff]
    %v262 = vld [vmem:[#allocation5 + $0x508] sm:$0xff]
    %v263 = vld [vmem:[#allocation5 + $0x510] sm:$0xff]
    %v264 = vld [vmem:[#allocation5 + $0x518] sm:$0xff]
    %v265 = vld [vmem:[#allocation5 + $0x520] sm:$0xff]
    %v266 = vld [vmem:[#allocation5 + $0x528] sm:$0xff]
    %v267 = vld [vmem:[#allocation5 + $0x530] sm:$0xff]
    %v268 = vld [vmem:[#allocation5 + $0x538] sm:$0xff]
    %v269 = vld [vmem:[#allocation5 + $0x540] sm:$0xff]
    %v270 = vld [vmem:[#allocation5 + $0x548] sm:$0xff]
    %v271 = vld [vmem:[#allocation5 + $0x550] sm:$0xff]
    %v272 = vld [vmem:[#allocation5 + $0x558] sm:$0xff]
    %v273 = vld [vmem:[#allocation5 + $0x560] sm:$0xff]
    %v274 = vld [vmem:[#allocation5 + $0x568] sm:$0xff]
    %v275 = vld [vmem:[#allocation5 + $0x570] sm:$0xff]
    %v276 = vld [vmem:[#allocation5 + $0x578] sm:$0xff]
    %v277 = vld [vmem:[#allocation5 + $0x580] sm:$0xff]
    %v278 = vld [vmem:[#allocation5 + $0x588] sm:$0xff]
    %v279 = vld [vmem:[#allocation5 + $0x590] sm:$0xff]
    %v280 = vld [vmem:[#allocation5 + $0x598] sm:$0xff]
    %v281 = vld [vmem:[#allocation5 + $0x5a0] sm:$0xff]
    %v282 = vld [vmem:[#allocation5 + $0x5a8] sm:$0xff]
    %v283 = vld [vmem:[#allocation5 + $0x5b0] sm:$0xff]
    %v284 = vld [vmem:[#allocation5 + $0x5b8] sm:$0xff]
    %v285 = vld [vmem:[#allocation5 + $0x5c0] sm:$0xff]
    %v286 = vld [vmem:[#allocation5 + $0x5c8] sm:$0xff]
    %v287 = vld [vmem:[#allocation5 + $0x5d0] sm:$0xff]
    %v288 = vld [vmem:[#allocation5 + $0x5d8] sm:$0xff]
    %v289 = vld [vmem:[#allocation5 + $0x5e0] sm:$0xff]
    %v290 = vld [vmem:[#allocation5 + $0x5e8] sm:$0xff]
    %v291 = vld [vmem:[#allocation5 + $0x5f0] sm:$0xff]
    %v292 = vld [vmem:[#allocation5 + $0x5f8] sm:$0xff]
    %v293 = vld [vmem:[#allocation5 + $0x600] sm:$0xff]
    %v294 = vld [vmem:[#allocation5 + $0x608] sm:$0xff]
    %v295 = vld [vmem:[#allocation5 + $0x610] sm:$0xff]
    %v296 = vld [vmem:[#allocation5 + $0x618] sm:$0xff]
    %v297 = vld [vmem:[#allocation5 + $0x620] sm:$0xff]
    %v298 = vld [vmem:[#allocation5 + $0x628] sm:$0xff]
    %v299 = vld [vmem:[#allocation5 + $0x630] sm:$0xff]
    %v300 = vld [vmem:[#allocation5 + $0x638] sm:$0xff]
    %v301 = vld [vmem:[#allocation5 + $0x640] sm:$0xff]
    %v302 = vld [vmem:[#allocation5 + $0x648] sm:$0xff]
    %v303 = vld [vmem:[#allocation5 + $0x650] sm:$0xff]
    %v304 = vld [vmem:[#allocation5 + $0x658] sm:$0xff]
    %v305 = vld [vmem:[#allocation5 + $0x660] sm:$0xff]
    %v306 = vld [vmem:[#allocation5 + $0x668] sm:$0xff]
    %v307 = vld [vmem:[#allocation5 + $0x670] sm:$0xff]
    %v308 = vld [vmem:[#allocation5 + $0x678] sm:$0xff]
    %v309 = vld [vmem:[#allocation5 + $0x680] sm:$0xff]
    %v310 = vld [vmem:[#allocation5 + $0x688] sm:$0xff]
    %v311 = vld [vmem:[#allocation5 + $0x690] sm:$0xff]
    %v312 = vld [vmem:[#allocation5 + $0x698] sm:$0xff]
    %v313 = vld [vmem:[#allocation5 + $0x6a0] sm:$0xff]
    %v314 = vld [vmem:[#allocation5 + $0x6a8] sm:$0xff]
    %v315 = vld [vmem:[#allocation5 + $0x6b0] sm:$0xff]
    %v316 = vld [vmem:[#allocation5 + $0x6b8] sm:$0xff]
    %v317 = vld [vmem:[#allocation5 + $0x6c0] sm:$0xff]
    %v318 = vld [vmem:[#allocation5 + $0x6c8] sm:$0xff]
    %v319 = vld [vmem:[#allocation5 + $0x6d0] sm:$0xff]
    %v320 = vld [vmem:[#allocation5 + $0x6d8] sm:$0xff]
    %v321 = vld [vmem:[#allocation5 + $0x6e0] sm:$0xff]
    %v322 = vld [vmem:[#allocation5 + $0x6e8] sm:$0xff]
    %v323 = vld [vmem:[#allocation5 + $0x6f0] sm:$0xff]
    %v324 = vld [vmem:[#allocation5 + $0x6f8] sm:$0xff]
    %v325 = vld [vmem:[#allocation5 + $0x700] sm:$0xff]
    %v326 = vld [vmem:[#allocation5 + $0x708] sm:$0xff]
    %v327 = vld [vmem:[#allocation5 + $0x710] sm:$0xff]
    %v328 = vld [vmem:[#allocation5 + $0x718] sm:$0xff]
    %v329 = vld [vmem:[#allocation5 + $0x720] sm:$0xff]
    %v330 = vld [vmem:[#allocation5 + $0x728] sm:$0xff]
    %v331 = vld [vmem:[#allocation5 + $0x730] sm:$0xff]
    %v332 = vld [vmem:[#allocation5 + $0x738] sm:$0xff]
    %v333 = vld [vmem:[#allocation5 + $0x740] sm:$0xff]
    %v334 = vld [vmem:[#allocation5 + $0x748] sm:$0xff]
    %v335 = vld [vmem:[#allocation5 + $0x750] sm:$0xff]
    %v336 = vld [vmem:[#allocation5 + $0x758] sm:$0xff]
    %v337 = vld [vmem:[#allocation5 + $0x760] sm:$0xff]
    %v338 = vld [vmem:[#allocation5 + $0x768] sm:$0xff]
    %v339 = vld [vmem:[#allocation5 + $0x770] sm:$0xff]
    %v340 = vld [vmem:[#allocation5 + $0x778] sm:$0xff]
    %v341 = vld [vmem:[#allocation5 + $0x780] sm:$0xff]
    %v342 = vld [vmem:[#allocation5 + $0x788] sm:$0xff]
    %v343 = vld [vmem:[#allocation5 + $0x790] sm:$0xff]
    %v344 = vld [vmem:[#allocation5 + $0x798] sm:$0xff]
    %v345 = vld [vmem:[#allocation5 + $0x7a0] sm:$0xff]
    %v346 = vld [vmem:[#allocation5 + $0x7a8] sm:$0xff]
    %v347 = vld [vmem:[#allocation5 + $0x7b0] sm:$0xff]
    %v348 = vld [vmem:[#allocation5 + $0x7b8] sm:$0xff]
    %v349 = vld [vmem:[#allocation5 + $0x7c0] sm:$0xff]
    %v350 = vld [vmem:[#allocation5 + $0x7c8] sm:$0xff]
    %v351 = vld [vmem:[#allocation5 + $0x7d0] sm:$0xff]
    %v352 = vld [vmem:[#allocation5 + $0x7d8] sm:$0xff]
    %v353 = vld [vmem:[#allocation5 + $0x7e0] sm:$0xff]
    %v354 = vld [vmem:[#allocation5 + $0x7e8] sm:$0xff]
    %v355 = vld [vmem:[#allocation5 + $0x7f0] sm:$0xff]
    %v356 = vld [vmem:[#allocation5 + $0x7f8] sm:$0xff]
    %v357 = vld [vmem:[#allocation5 + $0x800] sm:$0xff]
    %v358 = vld [vmem:[#allocation5 + $0x808] sm:$0xff]
    %v359 = vld [vmem:[#allocation5 + $0x810] sm:$0xff]
    %v360 = vld [vmem:[#allocation5 + $0x818] sm:$0xff]
    %v361 = vld [vmem:[#allocation5 + $0x820] sm:$0xff]
    %v362 = vld [vmem:[#allocation5 + $0x828] sm:$0xff]
    %v363 = vld [vmem:[#allocation5 + $0x830] sm:$0xff]
    %v364 = vld [vmem:[#allocation5 + $0x838] sm:$0xff]
    %v365 = vld [vmem:[#allocation5 + $0x840] sm:$0xff]
    %v366 = vld [vmem:[#allocation5 + $0x848] sm:$0xff]
    %v367 = vld [vmem:[#allocation5 + $0x850] sm:$0xff]
    %v368 = vld [vmem:[#allocation5 + $0x858] sm:$0xff]
    %v369 = vld [vmem:[#allocation5 + $0x860] sm:$0xff]
    %v370 = vld [vmem:[#allocation5 + $0x868] sm:$0xff]
    %v371 = vld [vmem:[#allocation5 + $0x870] sm:$0xff]
    %v372 = vld [vmem:[#allocation5 + $0x878] sm:$0xff]
    %v373 = vld [vmem:[#allocation5 + $0x880] sm:$0xff]
    %v374 = vld [vmem:[#allocation5 + $0x888] sm:$0xff]
    %v375 = vld [vmem:[#allocation5 + $0x890] sm:$0xff]
    %v376 = vld [vmem:[#allocation5 + $0x898] sm:$0xff]
    %v377 = vld [vmem:[#allocation5 + $0x8a0] sm:$0xff]
    %v378 = vld [vmem:[#allocation5 + $0x8a8] sm:$0xff]
    %v379 = vld [vmem:[#allocation5 + $0x8b0] sm:$0xff]
    %v380 = vld [vmem:[#allocation5 + $0x8b8] sm:$0xff]
    %v381 = vld [vmem:[#allocation5 + $0x8c0] sm:$0xff]
    %v382 = vld [vmem:[#allocation5 + $0x8c8] sm:$0xff]
    %v383 = vld [vmem:[#allocation5 + $0x8d0] sm:$0xff]
    %v384 = vld [vmem:[#allocation5 + $0x8d8] sm:$0xff]
    %v385 = vld [vmem:[#allocation5 + $0x8e0] sm:$0xff]
    %v386 = vld [vmem:[#allocation5 + $0x8e8] sm:$0xff]
    %v387 = vld [vmem:[#allocation5 + $0x8f0] sm:$0xff]
    %v388 = vld [vmem:[#allocation5 + $0x8f8] sm:$0xff]
    %v389 = vld [vmem:[#allocation5 + $0x900] sm:$0xff]
    %v390 = vld [vmem:[#allocation5 + $0x908] sm:$0xff]
    %v391 = vld [vmem:[#allocation5 + $0x910] sm:$0xff]
    %v392 = vld [vmem:[#allocation5 + $0x918] sm:$0xff]
    %v393 = vld [vmem:[#allocation5 + $0x920] sm:$0xff]
    %v394 = vld [vmem:[#allocation5 + $0x928] sm:$0xff]
    %v395 = vld [vmem:[#allocation5 + $0x930] sm:$0xff]
    %v396 = vld [vmem:[#allocation5 + $0x938] sm:$0xff]
    %v397 = vld [vmem:[#allocation5 + $0x940] sm:$0xff]
    %v398 = vld [vmem:[#allocation5 + $0x948] sm:$0xff]
    %v399 = vld [vmem:[#allocation5 + $0x950] sm:$0xff]
    %v400 = vld [vmem:[#allocation5 + $0x958] sm:$0xff]
    %v401 = vld [vmem:[#allocation5 + $0x960] sm:$0xff]
    %v402 = vld [vmem:[#allocation5 + $0x968] sm:$0xff]
    %v403 = vld [vmem:[#allocation5 + $0x970] sm:$0xff]
    %v404 = vld [vmem:[#allocation5 + $0x978] sm:$0xff]
    %v405 = vld [vmem:[#allocation5 + $0x980] sm:$0xff]
    %v406 = vld [vmem:[#allocation5 + $0x988] sm:$0xff]
    %v407 = vld [vmem:[#allocation5 + $0x990] sm:$0xff]
    %v408 = vld [vmem:[#allocation5 + $0x998] sm:$0xff]
    %v409 = vld [vmem:[#allocation5 + $0x9a0] sm:$0xff]
    %v410 = vld [vmem:[#allocation5 + $0x9a8] sm:$0xff]
    %v411 = vld [vmem:[#allocation5 + $0x9b0] sm:$0xff]
    %v412 = vld [vmem:[#allocation5 + $0x9b8] sm:$0xff]
    %v413 = vld [vmem:[#allocation5 + $0x9c0] sm:$0xff]
    %v414 = vld [vmem:[#allocation5 + $0x9c8] sm:$0xff]
    %v415 = vld [vmem:[#allocation5 + $0x9d0] sm:$0xff]
    %v416 = vld [vmem:[#allocation5 + $0x9d8] sm:$0xff]
    %v417 = vld [vmem:[#allocation5 + $0x9e0] sm:$0xff]
    %v418 = vld [vmem:[#allocation5 + $0x9e8] sm:$0xff]
    %v419 = vld [vmem:[#allocation5 + $0x9f0] sm:$0xff]
    %v420 = vld [vmem:[#allocation5 + $0x9f8] sm:$0xff]
    %v421 = vld [vmem:[#allocation5 + $0xa00] sm:$0xff]
    %v422 = vld [vmem:[#allocation5 + $0xa08] sm:$0xff]
    %v423 = vld [vmem:[#allocation5 + $0xa10] sm:$0xff]
    %v424 = vld [vmem:[#allocation5 + $0xa18] sm:$0xff]
    %v425 = vld [vmem:[#allocation5 + $0xa20] sm:$0xff]
    %v426 = vld [vmem:[#allocation5 + $0xa28] sm:$0xff]
    %v427 = vld [vmem:[#allocation5 + $0xa30] sm:$0xff]
    %v428 = vld [vmem:[#allocation5 + $0xa38] sm:$0xff]
    %v429 = vld [vmem:[#allocation5 + $0xa40] sm:$0xff]
    %v430 = vld [vmem:[#allocation5 + $0xa48] sm:$0xff]
    %v431 = vld [vmem:[#allocation5 + $0xa50] sm:$0xff]
    %v432 = vld [vmem:[#allocation5 + $0xa58] sm:$0xff]
    %v433 = vld [vmem:[#allocation5 + $0xa60] sm:$0xff]
    %v434 = vld [vmem:[#allocation5 + $0xa68] sm:$0xff]
    %v435 = vld [vmem:[#allocation5 + $0xa70] sm:$0xff]
    %v436 = vld [vmem:[#allocation5 + $0xa78] sm:$0xff]
    %v437 = vld [vmem:[#allocation5 + $0xa80] sm:$0xff]
    %v438 = vld [vmem:[#allocation5 + $0xa88] sm:$0xff]
    %v439 = vld [vmem:[#allocation5 + $0xa90] sm:$0xff]
    %v440 = vld [vmem:[#allocation5 + $0xa98] sm:$0xff]
    %v441 = vld [vmem:[#allocation5 + $0xaa0] sm:$0xff]
    %v442 = vld [vmem:[#allocation5 + $0xaa8] sm:$0xff]
    %v443 = vld [vmem:[#allocation5 + $0xab0] sm:$0xff]
    %v444 = vld [vmem:[#allocation5 + $0xab8] sm:$0xff]
    %v445 = vld [vmem:[#allocation5 + $0xac0] sm:$0xff]
    %v446 = vld [vmem:[#allocation5 + $0xac8] sm:$0xff]
    %v447 = vld [vmem:[#allocation5 + $0xad0] sm:$0xff]
    %v448 = vld [vmem:[#allocation5 + $0xad8] sm:$0xff]
    %v449 = vld [vmem:[#allocation5 + $0xae0] sm:$0xff]
    %v450 = vld [vmem:[#allocation5 + $0xae8] sm:$0xff]
    %v451 = vld [vmem:[#allocation5 + $0xaf0] sm:$0xff]
    %v452 = vld [vmem:[#allocation5 + $0xaf8] sm:$0xff]
    %v453 = vld [vmem:[#allocation5 + $0xb00] sm:$0xff]
    %v454 = vld [vmem:[#allocation5 + $0xb08] sm:$0xff]
    %v455 = vld [vmem:[#allocation5 + $0xb10] sm:$0xff]
    %v456 = vld [vmem:[#allocation5 + $0xb18] sm:$0xff]
    %v457 = vld [vmem:[#allocation5 + $0xb20] sm:$0xff]
    %v458 = vld [vmem:[#allocation5 + $0xb28] sm:$0xff]
    %v459 = vld [vmem:[#allocation5 + $0xb30] sm:$0xff]
    %v460 = vld [vmem:[#allocation5 + $0xb38] sm:$0xff]
    %v461 = vld [vmem:[#allocation5 + $0xb40] sm:$0xff]
    %v462 = vld [vmem:[#allocation5 + $0xb48] sm:$0xff]
    %v463 = vld [vmem:[#allocation5 + $0xb50] sm:$0xff]
    %v464 = vld [vmem:[#allocation5 + $0xb58] sm:$0xff]
    %v465 = vld [vmem:[#allocation5 + $0xb60] sm:$0xff]
    %v466 = vld [vmem:[#allocation5 + $0xb68] sm:$0xff]
    %v467 = vld [vmem:[#allocation5 + $0xb70] sm:$0xff]
    %v468 = vld [vmem:[#allocation5 + $0xb78] sm:$0xff]
    %v469 = vld [vmem:[#allocation5 + $0xb80] sm:$0xff]
    %v470 = vld [vmem:[#allocation5 + $0xb88] sm:$0xff]
    %v471 = vld [vmem:[#allocation5 + $0xb90] sm:$0xff]
    %v472 = vld [vmem:[#allocation5 + $0xb98] sm:$0xff]
    %v473 = vld [vmem:[#allocation5 + $0xba0] sm:$0xff]
    %v474 = vld [vmem:[#allocation5 + $0xba8] sm:$0xff]
    %v475 = vld [vmem:[#allocation5 + $0xbb0] sm:$0xff]
    %v476 = vld [vmem:[#allocation5 + $0xbb8] sm:$0xff]
    %v477 = vld [vmem:[#allocation5 + $0xbc0] sm:$0xff]
    %v478 = vld [vmem:[#allocation5 + $0xbc8] sm:$0xff]
    %v479 = vld [vmem:[#allocation5 + $0xbd0] sm:$0xff]
    %v480 = vld [vmem:[#allocation5 + $0xbd8] sm:$0xff]
    %v481 = vld [vmem:[#allocation5 + $0xbe0] sm:$0xff]
    %v482 = vld [vmem:[#allocation5 + $0xbe8] sm:$0xff]
    %v483 = vld [vmem:[#allocation5 + $0xbf0] sm:$0xff]
    %v484 = vld [vmem:[#allocation5 + $0xbf8] sm:$0xff]
    %v485 = vld [vmem:[#allocation5 + $0xc00] sm:$0xff]
    %v486 = vld [vmem:[#allocation5 + $0xc08] sm:$0xff]
    %v487 = vld [vmem:[#allocation5 + $0xc10] sm:$0xff]
    %v488 = vld [vmem:[#allocation5 + $0xc18] sm:$0xff]
    %v489 = vld [vmem:[#allocation5 + $0xc20] sm:$0xff]
    %v490 = vld [vmem:[#allocation5 + $0xc28] sm:$0xff]
    %v491 = vld [vmem:[#allocation5 + $0xc30] sm:$0xff]
    %v492 = vld [vmem:[#allocation5 + $0xc38] sm:$0xff]
    %v493 = vld [vmem:[#allocation5 + $0xc40] sm:$0xff]
    %v494 = vld [vmem:[#allocation5 + $0xc48] sm:$0xff]
    %v495 = vld [vmem:[#allocation5 + $0xc50] sm:$0xff]
    %v496 = vld [vmem:[#allocation5 + $0xc58] sm:$0xff]
    %v497 = vld [vmem:[#allocation5 + $0xc60] sm:$0xff]
    %v498 = vld [vmem:[#allocation5 + $0xc68] sm:$0xff]
    %v499 = vld [vmem:[#allocation5 + $0xc70] sm:$0xff]
    %v500 = vld [vmem:[#allocation5 + $0xc78] sm:$0xff]
    %v501 = vld [vmem:[#allocation5 + $0xc80] sm:$0xff]
    %v502 = vld [vmem:[#allocation5 + $0xc88] sm:$0xff]
    %v503 = vld [vmem:[#allocation5 + $0xc90] sm:$0xff]
    %v504 = vld [vmem:[#allocation5 + $0xc98] sm:$0xff]
    %v505 = vld [vmem:[#allocation5 + $0xca0] sm:$0xff]
    %v506 = vld [vmem:[#allocation5 + $0xca8] sm:$0xff]
    %v507 = vld [vmem:[#allocation5 + $0xcb0] sm:$0xff]
    %v508 = vld [vmem:[#allocation5 + $0xcb8] sm:$0xff]
    %v509 = vld [vmem:[#allocation5 + $0xcc0] sm:$0xff]
    %v510 = vld [vmem:[#allocation5 + $0xcc8] sm:$0xff]
    %v511 = vld [vmem:[#allocation5 + $0xcd0] sm:$0xff]
    %v512 = vld [vmem:[#allocation5 + $0xcd8] sm:$0xff]
    %v513 = vld [vmem:[#allocation5 + $0xce0] sm:$0xff]
    %v514 = vld [vmem:[#allocation5 + $0xce8] sm:$0xff]
    %v515 = vld [vmem:[#allocation5 + $0xcf0] sm:$0xff]
    %v516 = vld [vmem:[#allocation5 + $0xcf8] sm:$0xff]
    %v517 = vld [vmem:[#allocation5 + $0xd00] sm:$0xff]
    %v518 = vld [vmem:[#allocation5 + $0xd08] sm:$0xff]
    %v519 = vld [vmem:[#allocation5 + $0xd10] sm:$0xff]
    %v520 = vld [vmem:[#allocation5 + $0xd18] sm:$0xff]
    %v521 = vld [vmem:[#allocation5 + $0xd20] sm:$0xff]
    %v522 = vld [vmem:[#allocation5 + $0xd28] sm:$0xff]
    %v523 = vld [vmem:[#allocation5 + $0xd30] sm:$0xff]
    %v524 = vld [vmem:[#allocation5 + $0xd38] sm:$0xff]
    %v525 = vld [vmem:[#allocation5 + $0xd40] sm:$0xff]
    %v526 = vld [vmem:[#allocation5 + $0xd48] sm:$0xff]
    %v527 = vld [vmem:[#allocation5 + $0xd50] sm:$0xff]
    %v528 = vld [vmem:[#allocation5 + $0xd58] sm:$0xff]
    %v529 = vld [vmem:[#allocation5 + $0xd60] sm:$0xff]
    %v530 = vld [vmem:[#allocation5 + $0xd68] sm:$0xff]
    %v531 = vld [vmem:[#allocation5 + $0xd70] sm:$0xff]
    %v532 = vld [vmem:[#allocation5 + $0xd78] sm:$0xff]
    %v533 = vld [vmem:[#allocation5 + $0xd80] sm:$0xff]
    %v534 = vld [vmem:[#allocation5 + $0xd88] sm:$0xff]
    %v535 = vld [vmem:[#allocation5 + $0xd90] sm:$0xff]
    %v536 = vld [vmem:[#allocation5 + $0xd98] sm:$0xff]
    %v537 = vld [vmem:[#allocation5 + $0xda0] sm:$0xff]
    %v538 = vld [vmem:[#allocation5 + $0xda8] sm:$0xff]
    %v539 = vld [vmem:[#allocation5 + $0xdb0] sm:$0xff]
    %v540 = vld [vmem:[#allocation5 + $0xdb8] sm:$0xff]
    %v541 = vld [vmem:[#allocation5 + $0xdc0] sm:$0xff]
    %v542 = vld [vmem:[#allocation5 + $0xdc8] sm:$0xff]
    %v543 = vld [vmem:[#allocation5 + $0xdd0] sm:$0xff]
    %v544 = vld [vmem:[#allocation5 + $0xdd8] sm:$0xff]
    %v545 = vld [vmem:[#allocation5 + $0xde0] sm:$0xff]
    %v546 = vld [vmem:[#allocation5 + $0xde8] sm:$0xff]
    %v547 = vld [vmem:[#allocation5 + $0xdf0] sm:$0xff]
    %v548 = vld [vmem:[#allocation5 + $0xdf8] sm:$0xff]
    %v549 = vld [vmem:[#allocation5 + $0xe00] sm:$0xff]
    %v550 = vld [vmem:[#allocation5 + $0xe08] sm:$0xff]
    %v551 = vld [vmem:[#allocation5 + $0xe10] sm:$0xff]
    %v552 = vld [vmem:[#allocation5 + $0xe18] sm:$0xff]
    %v553 = vld [vmem:[#allocation5 + $0xe20] sm:$0xff]
    %v554 = vld [vmem:[#allocation5 + $0xe28] sm:$0xff]
    %v555 = vld [vmem:[#allocation5 + $0xe30] sm:$0xff]
    %v556 = vld [vmem:[#allocation5 + $0xe38] sm:$0xff]
    %v557 = vld [vmem:[#allocation5 + $0xe40] sm:$0xff]
    %v558 = vld [vmem:[#allocation5 + $0xe48] sm:$0xff]
    %v559 = vld [vmem:[#allocation5 + $0xe50] sm:$0xff]
    %v560 = vld [vmem:[#allocation5 + $0xe58] sm:$0xff]
    %v561 = vld [vmem:[#allocation5 + $0xe60] sm:$0xff]
    %v562 = vld [vmem:[#allocation5 + $0xe68] sm:$0xff]
    %v563 = vld [vmem:[#allocation5 + $0xe70] sm:$0xff]
    %v564 = vld [vmem:[#allocation5 + $0xe78] sm:$0xff]
    %v565 = vld [vmem:[#allocation5 + $0xe80] sm:$0xff]
    %v566 = vld [vmem:[#allocation5 + $0xe88] sm:$0xff]
    %v567 = vld [vmem:[#allocation5 + $0xe90] sm:$0xff]
    %v568 = vld [vmem:[#allocation5 + $0xe98] sm:$0xff]
    %v569 = vld [vmem:[#allocation5 + $0xea0] sm:$0xff]
    %v570 = vld [vmem:[#allocation5 + $0xea8] sm:$0xff]
    %v571 = vld [vmem:[#allocation5 + $0xeb0] sm:$0xff]
    %v572 = vld [vmem:[#allocation5 + $0xeb8] sm:$0xff]
    %v573 = vld [vmem:[#allocation5 + $0xec0] sm:$0xff]
    %v574 = vld [vmem:[#allocation5 + $0xec8] sm:$0xff]
    %v575 = vld [vmem:[#allocation5 + $0xed0] sm:$0xff]
    %v576 = vld [vmem:[#allocation5 + $0xed8] sm:$0xff]
    %v577 = vld [vmem:[#allocation5 + $0xee0] sm:$0xff]
    %v578 = vld [vmem:[#allocation5 + $0xee8] sm:$0xff]
    %v579 = vld [vmem:[#allocation5 + $0xef0] sm:$0xff]
    %v580 = vld [vmem:[#allocation5 + $0xef8] sm:$0xff]
    %v581 = vld [vmem:[#allocation5 + $0xf00] sm:$0xff]
    %v582 = vld [vmem:[#allocation5 + $0xf08] sm:$0xff]
    %v583 = vld [vmem:[#allocation5 + $0xf10] sm:$0xff]
    %v584 = vld [vmem:[#allocation5 + $0xf18] sm:$0xff]
    %v585 = vld [vmem:[#allocation5 + $0xf20] sm:$0xff]
    %v586 = vld [vmem:[#allocation5 + $0xf28] sm:$0xff]
    %v587 = vld [vmem:[#allocation5 + $0xf30] sm:$0xff]
    %v588 = vld [vmem:[#allocation5 + $0xf38] sm:$0xff]
    %v589 = vld [vmem:[#allocation5 + $0xf40] sm:$0xff]
    %v590 = vld [vmem:[#allocation5 + $0xf48] sm:$0xff]
    %v591 = vld [vmem:[#allocation5 + $0xf50] sm:$0xff]
    %v592 = vld [vmem:[#allocation5 + $0xf58] sm:$0xff]
    %v593 = vld [vmem:[#allocation5 + $0xf60] sm:$0xff]
    %v594 = vld [vmem:[#allocation5 + $0xf68] sm:$0xff]
    %v595 = vld [vmem:[#allocation5 + $0xf70] sm:$0xff]
    %v596 = vld [vmem:[#allocation5 + $0xf78] sm:$0xff]
    %v597 = vld [vmem:[#allocation5 + $0xf80] sm:$0xff]
    %v598 = vld [vmem:[#allocation5 + $0xf88] sm:$0xff]
    %v599 = vld [vmem:[#allocation5 + $0xf90] sm:$0xff]
    %v600 = vld [vmem:[#allocation5 + $0xf98] sm:$0xff]
    %v601 = vld [vmem:[#allocation5 + $0xfa0] sm:$0xff]
    %v602 = vld [vmem:[#allocation5 + $0xfa8] sm:$0xff]
    %v603 = vld [vmem:[#allocation5 + $0xfb0] sm:$0xff]
    %v604 = vld [vmem:[#allocation5 + $0xfb8] sm:$0xff]
    %v605 = vld [vmem:[#allocation5 + $0xfc0] sm:$0xff]
    %v606 = vld [vmem:[#allocation5 + $0xfc8] sm:$0xff]
    %v607 = vld [vmem:[#allocation5 + $0xfd0] sm:$0xff]
    %v608 = vld [vmem:[#allocation5 + $0xfd8] sm:$0xff]
    %v609 = vld [vmem:[#allocation5 + $0xfe0] sm:$0xff]
    %v610 = vld [vmem:[#allocation5 + $0xfe8] sm:$0xff]
    %v611 = vld [vmem:[#allocation5 + $0xff0] sm:$0xff]
    %v612 = vld [vmem:[#allocation5 + $0xff8] sm:$0xff]
    %v613 = vld [vmem:[#allocation7] sm:$0xff]
    %v1126 = vunpack.c.l.b16 %v101
    %v1127 = vunpack.c.h.b16 %v101
    %v1128 = vunpack.c.l.b16 %v102
    %v1129 = vunpack.c.h.b16 %v102
    %v1130 = vunpack.c.l.b16 %v103
    %v1131 = vunpack.c.h.b16 %v103
    %v1132 = vunpack.c.l.b16 %v104
    %v1133 = vunpack.c.h.b16 %v104
    %v1134 = vunpack.c.l.b16 %v105
    %v1135 = vunpack.c.h.b16 %v105
    %v1136 = vunpack.c.l.b16 %v106
    %v1137 = vunpack.c.h.b16 %v106
    %v1138 = vunpack.c.l.b16 %v107
    %v1139 = vunpack.c.h.b16 %v107
    %v1140 = vunpack.c.l.b16 %v108
    %v1141 = vunpack.c.h.b16 %v108
    %v1142 = vunpack.c.l.b16 %v109
    %v1143 = vunpack.c.h.b16 %v109
    %v1144 = vunpack.c.l.b16 %v110
    %v1145 = vunpack.c.h.b16 %v110
    %v1146 = vunpack.c.l.b16 %v111
    %v1147 = vunpack.c.h.b16 %v111
    %v1148 = vunpack.c.l.b16 %v112
    %v1149 = vunpack.c.h.b16 %v112
    %v1150 = vunpack.c.l.b16 %v113
    %v1151 = vunpack.c.h.b16 %v113
    %v1152 = vunpack.c.l.b16 %v114
    %v1153 = vunpack.c.h.b16 %v114
    %v1154 = vunpack.c.l.b16 %v115
    %v1155 = vunpack.c.h.b16 %v115
    %v1156 = vunpack.c.l.b16 %v116
    %v1157 = vunpack.c.h.b16 %v116
    %v1158 = vunpack.c.l.b16 %v117
    %v1159 = vunpack.c.h.b16 %v117
    %v1160 = vunpack.c.l.b16 %v118
    %v1161 = vunpack.c.h.b16 %v118
    %v1162 = vunpack.c.l.b16 %v119
    %v1163 = vunpack.c.h.b16 %v119
    %v1164 = vunpack.c.l.b16 %v120
    %v1165 = vunpack.c.h.b16 %v120
    %v1166 = vunpack.c.l.b16 %v121
    %v1167 = vunpack.c.h.b16 %v121
    %v1168 = vunpack.c.l.b16 %v122
    %v1169 = vunpack.c.h.b16 %v122
    %v1170 = vunpack.c.l.b16 %v123
    %v1171 = vunpack.c.h.b16 %v123
    %v1172 = vunpack.c.l.b16 %v124
    %v1173 = vunpack.c.h.b16 %v124
    %v1174 = vunpack.c.l.b16 %v125
    %v1175 = vunpack.c.h.b16 %v125
    %v1176 = vunpack.c.l.b16 %v126
    %v1177 = vunpack.c.h.b16 %v126
    %v1178 = vunpack.c.l.b16 %v127
    %v1179 = vunpack.c.h.b16 %v127
    %v1180 = vunpack.c.l.b16 %v128
    %v1181 = vunpack.c.h.b16 %v128
    %v1182 = vunpack.c.l.b16 %v129
    %v1183 = vunpack.c.h.b16 %v129
    %v1184 = vunpack.c.l.b16 %v130
    %v1185 = vunpack.c.h.b16 %v130
    %v1186 = vunpack.c.l.b16 %v131
    %v1187 = vunpack.c.h.b16 %v131
    %v1188 = vunpack.c.l.b16 %v132
    %v1189 = vunpack.c.h.b16 %v132
    %v1190 = vunpack.c.l.b16 %v133
    %v1191 = vunpack.c.h.b16 %v133
    %v1192 = vunpack.c.l.b16 %v134
    %v1193 = vunpack.c.h.b16 %v134
    %v1194 = vunpack.c.l.b16 %v135
    %v1195 = vunpack.c.h.b16 %v135
    %v1196 = vunpack.c.l.b16 %v136
    %v1197 = vunpack.c.h.b16 %v136
    %v1198 = vunpack.c.l.b16 %v137
    %v1199 = vunpack.c.h.b16 %v137
    %v1200 = vunpack.c.l.b16 %v138
    %v1201 = vunpack.c.h.b16 %v138
    %v1202 = vunpack.c.l.b16 %v139
    %v1203 = vunpack.c.h.b16 %v139
    %v1204 = vunpack.c.l.b16 %v140
    %v1205 = vunpack.c.h.b16 %v140
    %v1206 = vunpack.c.l.b16 %v141
    %v1207 = vunpack.c.h.b16 %v141
    %v1208 = vunpack.c.l.b16 %v142
    %v1209 = vunpack.c.h.b16 %v142
    %v1210 = vunpack.c.l.b16 %v143
    %v1211 = vunpack.c.h.b16 %v143
    %v1212 = vunpack.c.l.b16 %v144
    %v1213 = vunpack.c.h.b16 %v144
    %v1214 = vunpack.c.l.b16 %v145
    %v1215 = vunpack.c.h.b16 %v145
    %v1216 = vunpack.c.l.b16 %v146
    %v1217 = vunpack.c.h.b16 %v146
    %v1218 = vunpack.c.l.b16 %v147
    %v1219 = vunpack.c.h.b16 %v147
    %v1220 = vunpack.c.l.b16 %v148
    %v1221 = vunpack.c.h.b16 %v148
    %v1222 = vunpack.c.l.b16 %v149
    %v1223 = vunpack.c.h.b16 %v149
    %v1224 = vunpack.c.l.b16 %v150
    %v1225 = vunpack.c.h.b16 %v150
    %v1226 = vunpack.c.l.b16 %v151
    %v1227 = vunpack.c.h.b16 %v151
    %v1228 = vunpack.c.l.b16 %v152
    %v1229 = vunpack.c.h.b16 %v152
    %v1230 = vunpack.c.l.b16 %v153
    %v1231 = vunpack.c.h.b16 %v153
    %v1232 = vunpack.c.l.b16 %v154
    %v1233 = vunpack.c.h.b16 %v154
    %v1234 = vunpack.c.l.b16 %v155
    %v1235 = vunpack.c.h.b16 %v155
    %v1236 = vunpack.c.l.b16 %v156
    %v1237 = vunpack.c.h.b16 %v156
    %v1238 = vunpack.c.l.b16 %v157
    %v1239 = vunpack.c.h.b16 %v157
    %v1240 = vunpack.c.l.b16 %v158
    %v1241 = vunpack.c.h.b16 %v158
    %v1242 = vunpack.c.l.b16 %v159
    %v1243 = vunpack.c.h.b16 %v159
    %v1244 = vunpack.c.l.b16 %v160
    %v1245 = vunpack.c.h.b16 %v160
    %v1246 = vunpack.c.l.b16 %v161
    %v1247 = vunpack.c.h.b16 %v161
    %v1248 = vunpack.c.l.b16 %v162
    %v1249 = vunpack.c.h.b16 %v162
    %v1250 = vunpack.c.l.b16 %v163
    %v1251 = vunpack.c.h.b16 %v163
    %v1252 = vunpack.c.l.b16 %v164
    %v1253 = vunpack.c.h.b16 %v164
    %v1254 = vunpack.c.l.b16 %v165
    %v1255 = vunpack.c.h.b16 %v165
    %v1256 = vunpack.c.l.b16 %v166
    %v1257 = vunpack.c.h.b16 %v166
    %v1258 = vunpack.c.l.b16 %v167
    %v1259 = vunpack.c.h.b16 %v167
    %v1260 = vunpack.c.l.b16 %v168
    %v1261 = vunpack.c.h.b16 %v168
    %v1262 = vunpack.c.l.b16 %v169
    %v1263 = vunpack.c.h.b16 %v169
    %v1264 = vunpack.c.l.b16 %v170
    %v1265 = vunpack.c.h.b16 %v170
    %v1266 = vunpack.c.l.b16 %v171
    %v1267 = vunpack.c.h.b16 %v171
    %v1268 = vunpack.c.l.b16 %v172
    %v1269 = vunpack.c.h.b16 %v172
    %v1270 = vunpack.c.l.b16 %v173
    %v1271 = vunpack.c.h.b16 %v173
    %v1272 = vunpack.c.l.b16 %v174
    %v1273 = vunpack.c.h.b16 %v174
    %v1274 = vunpack.c.l.b16 %v175
    %v1275 = vunpack.c.h.b16 %v175
    %v1276 = vunpack.c.l.b16 %v176
    %v1277 = vunpack.c.h.b16 %v176
    %v1278 = vunpack.c.l.b16 %v177
    %v1279 = vunpack.c.h.b16 %v177
    %v1280 = vunpack.c.l.b16 %v178
    %v1281 = vunpack.c.h.b16 %v178
    %v1282 = vunpack.c.l.b16 %v179
    %v1283 = vunpack.c.h.b16 %v179
    %v1284 = vunpack.c.l.b16 %v180
    %v1285 = vunpack.c.h.b16 %v180
    %v1286 = vunpack.c.l.b16 %v181
    %v1287 = vunpack.c.h.b16 %v181
    %v1288 = vunpack.c.l.b16 %v182
    %v1289 = vunpack.c.h.b16 %v182
    %v1290 = vunpack.c.l.b16 %v183
    %v1291 = vunpack.c.h.b16 %v183
    %v1292 = vunpack.c.l.b16 %v184
    %v1293 = vunpack.c.h.b16 %v184
    %v1294 = vunpack.c.l.b16 %v185
    %v1295 = vunpack.c.h.b16 %v185
    %v1296 = vunpack.c.l.b16 %v186
    %v1297 = vunpack.c.h.b16 %v186
    %v1298 = vunpack.c.l.b16 %v187
    %v1299 = vunpack.c.h.b16 %v187
    %v1300 = vunpack.c.l.b16 %v188
    %v1301 = vunpack.c.h.b16 %v188
    %v1302 = vunpack.c.l.b16 %v189
    %v1303 = vunpack.c.h.b16 %v189
    %v1304 = vunpack.c.l.b16 %v190
    %v1305 = vunpack.c.h.b16 %v190
    %v1306 = vunpack.c.l.b16 %v191
    %v1307 = vunpack.c.h.b16 %v191
    %v1308 = vunpack.c.l.b16 %v192
    %v1309 = vunpack.c.h.b16 %v192
    %v1310 = vunpack.c.l.b16 %v193
    %v1311 = vunpack.c.h.b16 %v193
    %v1312 = vunpack.c.l.b16 %v194
    %v1313 = vunpack.c.h.b16 %v194
    %v1314 = vunpack.c.l.b16 %v195
    %v1315 = vunpack.c.h.b16 %v195
    %v1316 = vunpack.c.l.b16 %v196
    %v1317 = vunpack.c.h.b16 %v196
    %v1318 = vunpack.c.l.b16 %v197
    %v1319 = vunpack.c.h.b16 %v197
    %v1320 = vunpack.c.l.b16 %v198
    %v1321 = vunpack.c.h.b16 %v198
    %v1322 = vunpack.c.l.b16 %v199
    %v1323 = vunpack.c.h.b16 %v199
    %v1324 = vunpack.c.l.b16 %v200
    %v1325 = vunpack.c.h.b16 %v200
    %v1326 = vunpack.c.l.b16 %v201
    %v1327 = vunpack.c.h.b16 %v201
    %v1328 = vunpack.c.l.b16 %v202
    %v1329 = vunpack.c.h.b16 %v202
    %v1330 = vunpack.c.l.b16 %v203
    %v1331 = vunpack.c.h.b16 %v203
    %v1332 = vunpack.c.l.b16 %v204
    %v1333 = vunpack.c.h.b16 %v204
    %v1334 = vunpack.c.l.b16 %v205
    %v1335 = vunpack.c.h.b16 %v205
    %v1336 = vunpack.c.l.b16 %v206
    %v1337 = vunpack.c.h.b16 %v206
    %v1338 = vunpack.c.l.b16 %v207
    %v1339 = vunpack.c.h.b16 %v207
    %v1340 = vunpack.c.l.b16 %v208
    %v1341 = vunpack.c.h.b16 %v208
    %v1342 = vunpack.c.l.b16 %v209
    %v1343 = vunpack.c.h.b16 %v209
    %v1344 = vunpack.c.l.b16 %v210
    %v1345 = vunpack.c.h.b16 %v210
    %v1346 = vunpack.c.l.b16 %v211
    %v1347 = vunpack.c.h.b16 %v211
    %v1348 = vunpack.c.l.b16 %v212
    %v1349 = vunpack.c.h.b16 %v212
    %v1350 = vunpack.c.l.b16 %v213
    %v1351 = vunpack.c.h.b16 %v213
    %v1352 = vunpack.c.l.b16 %v214
    %v1353 = vunpack.c.h.b16 %v214
    %v1354 = vunpack.c.l.b16 %v215
    %v1355 = vunpack.c.h.b16 %v215
    %v1356 = vunpack.c.l.b16 %v216
    %v1357 = vunpack.c.h.b16 %v216
    %v1358 = vunpack.c.l.b16 %v217
    %v1359 = vunpack.c.h.b16 %v217
    %v1360 = vunpack.c.l.b16 %v218
    %v1361 = vunpack.c.h.b16 %v218
    %v1362 = vunpack.c.l.b16 %v219
    %v1363 = vunpack.c.h.b16 %v219
    %v1364 = vunpack.c.l.b16 %v220
    %v1365 = vunpack.c.h.b16 %v220
    %v1366 = vunpack.c.l.b16 %v221
    %v1367 = vunpack.c.h.b16 %v221
    %v1368 = vunpack.c.l.b16 %v222
    %v1369 = vunpack.c.h.b16 %v222
    %v1370 = vunpack.c.l.b16 %v223
    %v1371 = vunpack.c.h.b16 %v223
    %v1372 = vunpack.c.l.b16 %v224
    %v1373 = vunpack.c.h.b16 %v224
    %v1374 = vunpack.c.l.b16 %v225
    %v1375 = vunpack.c.h.b16 %v225
    %v1376 = vunpack.c.l.b16 %v226
    %v1377 = vunpack.c.h.b16 %v226
    %v1378 = vunpack.c.l.b16 %v227
    %v1379 = vunpack.c.h.b16 %v227
    %v1380 = vunpack.c.l.b16 %v228
    %v1381 = vunpack.c.h.b16 %v228
    %v1382 = vunpack.c.l.b16 %v229
    %v1383 = vunpack.c.h.b16 %v229
    %v1384 = vunpack.c.l.b16 %v230
    %v1385 = vunpack.c.h.b16 %v230
    %v1386 = vunpack.c.l.b16 %v231
    %v1387 = vunpack.c.h.b16 %v231
    %v1388 = vunpack.c.l.b16 %v232
    %v1389 = vunpack.c.h.b16 %v232
    %v1390 = vunpack.c.l.b16 %v233
    %v1391 = vunpack.c.h.b16 %v233
    %v1392 = vunpack.c.l.b16 %v234
    %v1393 = vunpack.c.h.b16 %v234
    %v1394 = vunpack.c.l.b16 %v235
    %v1395 = vunpack.c.h.b16 %v235
    %v1396 = vunpack.c.l.b16 %v236
    %v1397 = vunpack.c.h.b16 %v236
    %v1398 = vunpack.c.l.b16 %v237
    %v1399 = vunpack.c.h.b16 %v237
    %v1400 = vunpack.c.l.b16 %v238
    %v1401 = vunpack.c.h.b16 %v238
    %v1402 = vunpack.c.l.b16 %v239
    %v1403 = vunpack.c.h.b16 %v239
    %v1404 = vunpack.c.l.b16 %v240
    %v1405 = vunpack.c.h.b16 %v240
    %v1406 = vunpack.c.l.b16 %v241
    %v1407 = vunpack.c.h.b16 %v241
    %v1408 = vunpack.c.l.b16 %v242
    %v1409 = vunpack.c.h.b16 %v242
    %v1410 = vunpack.c.l.b16 %v243
    %v1411 = vunpack.c.h.b16 %v243
    %v1412 = vunpack.c.l.b16 %v244
    %v1413 = vunpack.c.h.b16 %v244
    %v1414 = vunpack.c.l.b16 %v245
    %v1415 = vunpack.c.h.b16 %v245
    %v1416 = vunpack.c.l.b16 %v246
    %v1417 = vunpack.c.h.b16 %v246
    %v1418 = vunpack.c.l.b16 %v247
    %v1419 = vunpack.c.h.b16 %v247
    %v1420 = vunpack.c.l.b16 %v248
    %v1421 = vunpack.c.h.b16 %v248
    %v1422 = vunpack.c.l.b16 %v249
    %v1423 = vunpack.c.h.b16 %v249
    %v1424 = vunpack.c.l.b16 %v250
    %v1425 = vunpack.c.h.b16 %v250
    %v1426 = vunpack.c.l.b16 %v251
    %v1427 = vunpack.c.h.b16 %v251
    %v1428 = vunpack.c.l.b16 %v252
    %v1429 = vunpack.c.h.b16 %v252
    %v1430 = vunpack.c.l.b16 %v253
    %v1431 = vunpack.c.h.b16 %v253
    %v1432 = vunpack.c.l.b16 %v254
    %v1433 = vunpack.c.h.b16 %v254
    %v1434 = vunpack.c.l.b16 %v255
    %v1435 = vunpack.c.h.b16 %v255
    %v1436 = vunpack.c.l.b16 %v256
    %v1437 = vunpack.c.h.b16 %v256
    %v1438 = vunpack.c.l.b16 %v257
    %v1439 = vunpack.c.h.b16 %v257
    %v1440 = vunpack.c.l.b16 %v258
    %v1441 = vunpack.c.h.b16 %v258
    %v1442 = vunpack.c.l.b16 %v259
    %v1443 = vunpack.c.h.b16 %v259
    %v1444 = vunpack.c.l.b16 %v260
    %v1445 = vunpack.c.h.b16 %v260
    %v1446 = vunpack.c.l.b16 %v261
    %v1447 = vunpack.c.h.b16 %v261
    %v1448 = vunpack.c.l.b16 %v262
    %v1449 = vunpack.c.h.b16 %v262
    %v1450 = vunpack.c.l.b16 %v263
    %v1451 = vunpack.c.h.b16 %v263
    %v1452 = vunpack.c.l.b16 %v264
    %v1453 = vunpack.c.h.b16 %v264
    %v1454 = vunpack.c.l.b16 %v265
    %v1455 = vunpack.c.h.b16 %v265
    %v1456 = vunpack.c.l.b16 %v266
    %v1457 = vunpack.c.h.b16 %v266
    %v1458 = vunpack.c.l.b16 %v267
    %v1459 = vunpack.c.h.b16 %v267
    %v1460 = vunpack.c.l.b16 %v268
    %v1461 = vunpack.c.h.b16 %v268
    %v1462 = vunpack.c.l.b16 %v269
    %v1463 = vunpack.c.h.b16 %v269
    %v1464 = vunpack.c.l.b16 %v270
    %v1465 = vunpack.c.h.b16 %v270
    %v1466 = vunpack.c.l.b16 %v271
    %v1467 = vunpack.c.h.b16 %v271
    %v1468 = vunpack.c.l.b16 %v272
    %v1469 = vunpack.c.h.b16 %v272
    %v1470 = vunpack.c.l.b16 %v273
    %v1471 = vunpack.c.h.b16 %v273
    %v1472 = vunpack.c.l.b16 %v274
    %v1473 = vunpack.c.h.b16 %v274
    %v1474 = vunpack.c.l.b16 %v275
    %v1475 = vunpack.c.h.b16 %v275
    %v1476 = vunpack.c.l.b16 %v276
    %v1477 = vunpack.c.h.b16 %v276
    %v1478 = vunpack.c.l.b16 %v277
    %v1479 = vunpack.c.h.b16 %v277
    %v1480 = vunpack.c.l.b16 %v278
    %v1481 = vunpack.c.h.b16 %v278
    %v1482 = vunpack.c.l.b16 %v279
    %v1483 = vunpack.c.h.b16 %v279
    %v1484 = vunpack.c.l.b16 %v280
    %v1485 = vunpack.c.h.b16 %v280
    %v1486 = vunpack.c.l.b16 %v281
    %v1487 = vunpack.c.h.b16 %v281
    %v1488 = vunpack.c.l.b16 %v282
    %v1489 = vunpack.c.h.b16 %v282
    %v1490 = vunpack.c.l.b16 %v283
    %v1491 = vunpack.c.h.b16 %v283
    %v1492 = vunpack.c.l.b16 %v284
    %v1493 = vunpack.c.h.b16 %v284
    %v1494 = vunpack.c.l.b16 %v285
    %v1495 = vunpack.c.h.b16 %v285
    %v1496 = vunpack.c.l.b16 %v286
    %v1497 = vunpack.c.h.b16 %v286
    %v1498 = vunpack.c.l.b16 %v287
    %v1499 = vunpack.c.h.b16 %v287
    %v1500 = vunpack.c.l.b16 %v288
    %v1501 = vunpack.c.h.b16 %v288
    %v1502 = vunpack.c.l.b16 %v289
    %v1503 = vunpack.c.h.b16 %v289
    %v1504 = vunpack.c.l.b16 %v290
    %v1505 = vunpack.c.h.b16 %v290
    %v1506 = vunpack.c.l.b16 %v291
    %v1507 = vunpack.c.h.b16 %v291
    %v1508 = vunpack.c.l.b16 %v292
    %v1509 = vunpack.c.h.b16 %v292
    %v1510 = vunpack.c.l.b16 %v293
    %v1511 = vunpack.c.h.b16 %v293
    %v1512 = vunpack.c.l.b16 %v294
    %v1513 = vunpack.c.h.b16 %v294
    %v1514 = vunpack.c.l.b16 %v295
    %v1515 = vunpack.c.h.b16 %v295
    %v1516 = vunpack.c.l.b16 %v296
    %v1517 = vunpack.c.h.b16 %v296
    %v1518 = vunpack.c.l.b16 %v297
    %v1519 = vunpack.c.h.b16 %v297
    %v1520 = vunpack.c.l.b16 %v298
    %v1521 = vunpack.c.h.b16 %v298
    %v1522 = vunpack.c.l.b16 %v299
    %v1523 = vunpack.c.h.b16 %v299
    %v1524 = vunpack.c.l.b16 %v300
    %v1525 = vunpack.c.h.b16 %v300
    %v1526 = vunpack.c.l.b16 %v301
    %v1527 = vunpack.c.h.b16 %v301
    %v1528 = vunpack.c.l.b16 %v302
    %v1529 = vunpack.c.h.b16 %v302
    %v1530 = vunpack.c.l.b16 %v303
    %v1531 = vunpack.c.h.b16 %v303
    %v1532 = vunpack.c.l.b16 %v304
    %v1533 = vunpack.c.h.b16 %v304
    %v1534 = vunpack.c.l.b16 %v305
    %v1535 = vunpack.c.h.b16 %v305
    %v1536 = vunpack.c.l.b16 %v306
    %v1537 = vunpack.c.h.b16 %v306
    %v1538 = vunpack.c.l.b16 %v307
    %v1539 = vunpack.c.h.b16 %v307
    %v1540 = vunpack.c.l.b16 %v308
    %v1541 = vunpack.c.h.b16 %v308
    %v1542 = vunpack.c.l.b16 %v309
    %v1543 = vunpack.c.h.b16 %v309
    %v1544 = vunpack.c.l.b16 %v310
    %v1545 = vunpack.c.h.b16 %v310
    %v1546 = vunpack.c.l.b16 %v311
    %v1547 = vunpack.c.h.b16 %v311
    %v1548 = vunpack.c.l.b16 %v312
    %v1549 = vunpack.c.h.b16 %v312
    %v1550 = vunpack.c.l.b16 %v313
    %v1551 = vunpack.c.h.b16 %v313
    %v1552 = vunpack.c.l.b16 %v314
    %v1553 = vunpack.c.h.b16 %v314
    %v1554 = vunpack.c.l.b16 %v315
    %v1555 = vunpack.c.h.b16 %v315
    %v1556 = vunpack.c.l.b16 %v316
    %v1557 = vunpack.c.h.b16 %v316
    %v1558 = vunpack.c.l.b16 %v317
    %v1559 = vunpack.c.h.b16 %v317
    %v1560 = vunpack.c.l.b16 %v318
    %v1561 = vunpack.c.h.b16 %v318
    %v1562 = vunpack.c.l.b16 %v319
    %v1563 = vunpack.c.h.b16 %v319
    %v1564 = vunpack.c.l.b16 %v320
    %v1565 = vunpack.c.h.b16 %v320
    %v1566 = vunpack.c.l.b16 %v321
    %v1567 = vunpack.c.h.b16 %v321
    %v1568 = vunpack.c.l.b16 %v322
    %v1569 = vunpack.c.h.b16 %v322
    %v1570 = vunpack.c.l.b16 %v323
    %v1571 = vunpack.c.h.b16 %v323
    %v1572 = vunpack.c.l.b16 %v324
    %v1573 = vunpack.c.h.b16 %v324
    %v1574 = vunpack.c.l.b16 %v325
    %v1575 = vunpack.c.h.b16 %v325
    %v1576 = vunpack.c.l.b16 %v326
    %v1577 = vunpack.c.h.b16 %v326
    %v1578 = vunpack.c.l.b16 %v327
    %v1579 = vunpack.c.h.b16 %v327
    %v1580 = vunpack.c.l.b16 %v328
    %v1581 = vunpack.c.h.b16 %v328
    %v1582 = vunpack.c.l.b16 %v329
    %v1583 = vunpack.c.h.b16 %v329
    %v1584 = vunpack.c.l.b16 %v330
    %v1585 = vunpack.c.h.b16 %v330
    %v1586 = vunpack.c.l.b16 %v331
    %v1587 = vunpack.c.h.b16 %v331
    %v1588 = vunpack.c.l.b16 %v332
    %v1589 = vunpack.c.h.b16 %v332
    %v1590 = vunpack.c.l.b16 %v333
    %v1591 = vunpack.c.h.b16 %v333
    %v1592 = vunpack.c.l.b16 %v334
    %v1593 = vunpack.c.h.b16 %v334
    %v1594 = vunpack.c.l.b16 %v335
    %v1595 = vunpack.c.h.b16 %v335
    %v1596 = vunpack.c.l.b16 %v336
    %v1597 = vunpack.c.h.b16 %v336
    %v1598 = vunpack.c.l.b16 %v337
    %v1599 = vunpack.c.h.b16 %v337
    %v1600 = vunpack.c.l.b16 %v338
    %v1601 = vunpack.c.h.b16 %v338
    %v1602 = vunpack.c.l.b16 %v339
    %v1603 = vunpack.c.h.b16 %v339
    %v1604 = vunpack.c.l.b16 %v340
    %v1605 = vunpack.c.h.b16 %v340
    %v1606 = vunpack.c.l.b16 %v341
    %v1607 = vunpack.c.h.b16 %v341
    %v1608 = vunpack.c.l.b16 %v342
    %v1609 = vunpack.c.h.b16 %v342
    %v1610 = vunpack.c.l.b16 %v343
    %v1611 = vunpack.c.h.b16 %v343
    %v1612 = vunpack.c.l.b16 %v344
    %v1613 = vunpack.c.h.b16 %v344
    %v1614 = vunpack.c.l.b16 %v345
    %v1615 = vunpack.c.h.b16 %v345
    %v1616 = vunpack.c.l.b16 %v346
    %v1617 = vunpack.c.h.b16 %v346
    %v1618 = vunpack.c.l.b16 %v347
    %v1619 = vunpack.c.h.b16 %v347
    %v1620 = vunpack.c.l.b16 %v348
    %v1621 = vunpack.c.h.b16 %v348
    %v1622 = vunpack.c.l.b16 %v349
    %v1623 = vunpack.c.h.b16 %v349
    %v1624 = vunpack.c.l.b16 %v350
    %v1625 = vunpack.c.h.b16 %v350
    %v1626 = vunpack.c.l.b16 %v351
    %v1627 = vunpack.c.h.b16 %v351
    %v1628 = vunpack.c.l.b16 %v352
    %v1629 = vunpack.c.h.b16 %v352
    %v1630 = vunpack.c.l.b16 %v353
    %v1631 = vunpack.c.h.b16 %v353
    %v1632 = vunpack.c.l.b16 %v354
    %v1633 = vunpack.c.h.b16 %v354
    %v1634 = vunpack.c.l.b16 %v355
    %v1635 = vunpack.c.h.b16 %v355
    %v1636 = vunpack.c.l.b16 %v356
    %v1637 = vunpack.c.h.b16 %v356
    %v1638 = vunpack.c.l.b16 %v357
    %v1639 = vunpack.c.h.b16 %v357
    %v1640 = vunpack.c.l.b16 %v358
    %v1641 = vunpack.c.h.b16 %v358
    %v1642 = vunpack.c.l.b16 %v359
    %v1643 = vunpack.c.h.b16 %v359
    %v1644 = vunpack.c.l.b16 %v360
    %v1645 = vunpack.c.h.b16 %v360
    %v1646 = vunpack.c.l.b16 %v361
    %v1647 = vunpack.c.h.b16 %v361
    %v1648 = vunpack.c.l.b16 %v362
    %v1649 = vunpack.c.h.b16 %v362
    %v1650 = vunpack.c.l.b16 %v363
    %v1651 = vunpack.c.h.b16 %v363
    %v1652 = vunpack.c.l.b16 %v364
    %v1653 = vunpack.c.h.b16 %v364
    %v1654 = vunpack.c.l.b16 %v365
    %v1655 = vunpack.c.h.b16 %v365
    %v1656 = vunpack.c.l.b16 %v366
    %v1657 = vunpack.c.h.b16 %v366
    %v1658 = vunpack.c.l.b16 %v367
    %v1659 = vunpack.c.h.b16 %v367
    %v1660 = vunpack.c.l.b16 %v368
    %v1661 = vunpack.c.h.b16 %v368
    %v1662 = vunpack.c.l.b16 %v369
    %v1663 = vunpack.c.h.b16 %v369
    %v1664 = vunpack.c.l.b16 %v370
    %v1665 = vunpack.c.h.b16 %v370
    %v1666 = vunpack.c.l.b16 %v371
    %v1667 = vunpack.c.h.b16 %v371
    %v1668 = vunpack.c.l.b16 %v372
    %v1669 = vunpack.c.h.b16 %v372
    %v1670 = vunpack.c.l.b16 %v373
    %v1671 = vunpack.c.h.b16 %v373
    %v1672 = vunpack.c.l.b16 %v374
    %v1673 = vunpack.c.h.b16 %v374
    %v1674 = vunpack.c.l.b16 %v375
    %v1675 = vunpack.c.h.b16 %v375
    %v1676 = vunpack.c.l.b16 %v376
    %v1677 = vunpack.c.h.b16 %v376
    %v1678 = vunpack.c.l.b16 %v377
    %v1679 = vunpack.c.h.b16 %v377
    %v1680 = vunpack.c.l.b16 %v378
    %v1681 = vunpack.c.h.b16 %v378
    %v1682 = vunpack.c.l.b16 %v379
    %v1683 = vunpack.c.h.b16 %v379
    %v1684 = vunpack.c.l.b16 %v380
    %v1685 = vunpack.c.h.b16 %v380
    %v1686 = vunpack.c.l.b16 %v381
    %v1687 = vunpack.c.h.b16 %v381
    %v1688 = vunpack.c.l.b16 %v382
    %v1689 = vunpack.c.h.b16 %v382
    %v1690 = vunpack.c.l.b16 %v383
    %v1691 = vunpack.c.h.b16 %v383
    %v1692 = vunpack.c.l.b16 %v384
    %v1693 = vunpack.c.h.b16 %v384
    %v1694 = vunpack.c.l.b16 %v385
    %v1695 = vunpack.c.h.b16 %v385
    %v1696 = vunpack.c.l.b16 %v386
    %v1697 = vunpack.c.h.b16 %v386
    %v1698 = vunpack.c.l.b16 %v387
    %v1699 = vunpack.c.h.b16 %v387
    %v1700 = vunpack.c.l.b16 %v388
    %v1701 = vunpack.c.h.b16 %v388
    %v1702 = vunpack.c.l.b16 %v389
    %v1703 = vunpack.c.h.b16 %v389
    %v1704 = vunpack.c.l.b16 %v390
    %v1705 = vunpack.c.h.b16 %v390
    %v1706 = vunpack.c.l.b16 %v391
    %v1707 = vunpack.c.h.b16 %v391
    %v1708 = vunpack.c.l.b16 %v392
    %v1709 = vunpack.c.h.b16 %v392
    %v1710 = vunpack.c.l.b16 %v393
    %v1711 = vunpack.c.h.b16 %v393
    %v1712 = vunpack.c.l.b16 %v394
    %v1713 = vunpack.c.h.b16 %v394
    %v1714 = vunpack.c.l.b16 %v395
    %v1715 = vunpack.c.h.b16 %v395
    %v1716 = vunpack.c.l.b16 %v396
    %v1717 = vunpack.c.h.b16 %v396
    %v1718 = vunpack.c.l.b16 %v397
    %v1719 = vunpack.c.h.b16 %v397
    %v1720 = vunpack.c.l.b16 %v398
    %v1721 = vunpack.c.h.b16 %v398
    %v1722 = vunpack.c.l.b16 %v399
    %v1723 = vunpack.c.h.b16 %v399
    %v1724 = vunpack.c.l.b16 %v400
    %v1725 = vunpack.c.h.b16 %v400
    %v1726 = vunpack.c.l.b16 %v401
    %v1727 = vunpack.c.h.b16 %v401
    %v1728 = vunpack.c.l.b16 %v402
    %v1729 = vunpack.c.h.b16 %v402
    %v1730 = vunpack.c.l.b16 %v403
    %v1731 = vunpack.c.h.b16 %v403
    %v1732 = vunpack.c.l.b16 %v404
    %v1733 = vunpack.c.h.b16 %v404
    %v1734 = vunpack.c.l.b16 %v405
    %v1735 = vunpack.c.h.b16 %v405
    %v1736 = vunpack.c.l.b16 %v406
    %v1737 = vunpack.c.h.b16 %v406
    %v1738 = vunpack.c.l.b16 %v407
    %v1739 = vunpack.c.h.b16 %v407
    %v1740 = vunpack.c.l.b16 %v408
    %v1741 = vunpack.c.h.b16 %v408
    %v1742 = vunpack.c.l.b16 %v409
    %v1743 = vunpack.c.h.b16 %v409
    %v1744 = vunpack.c.l.b16 %v410
    %v1745 = vunpack.c.h.b16 %v410
    %v1746 = vunpack.c.l.b16 %v411
    %v1747 = vunpack.c.h.b16 %v411
    %v1748 = vunpack.c.l.b16 %v412
    %v1749 = vunpack.c.h.b16 %v412
    %v1750 = vunpack.c.l.b16 %v413
    %v1751 = vunpack.c.h.b16 %v413
    %v1752 = vunpack.c.l.b16 %v414
    %v1753 = vunpack.c.h.b16 %v414
    %v1754 = vunpack.c.l.b16 %v415
    %v1755 = vunpack.c.h.b16 %v415
    %v1756 = vunpack.c.l.b16 %v416
    %v1757 = vunpack.c.h.b16 %v416
    %v1758 = vunpack.c.l.b16 %v417
    %v1759 = vunpack.c.h.b16 %v417
    %v1760 = vunpack.c.l.b16 %v418
    %v1761 = vunpack.c.h.b16 %v418
    %v1762 = vunpack.c.l.b16 %v419
    %v1763 = vunpack.c.h.b16 %v419
    %v1764 = vunpack.c.l.b16 %v420
    %v1765 = vunpack.c.h.b16 %v420
    %v1766 = vunpack.c.l.b16 %v421
    %v1767 = vunpack.c.h.b16 %v421
    %v1768 = vunpack.c.l.b16 %v422
    %v1769 = vunpack.c.h.b16 %v422
    %v1770 = vunpack.c.l.b16 %v423
    %v1771 = vunpack.c.h.b16 %v423
    %v1772 = vunpack.c.l.b16 %v424
    %v1773 = vunpack.c.h.b16 %v424
    %v1774 = vunpack.c.l.b16 %v425
    %v1775 = vunpack.c.h.b16 %v425
    %v1776 = vunpack.c.l.b16 %v426
    %v1777 = vunpack.c.h.b16 %v426
    %v1778 = vunpack.c.l.b16 %v427
    %v1779 = vunpack.c.h.b16 %v427
    %v1780 = vunpack.c.l.b16 %v428
    %v1781 = vunpack.c.h.b16 %v428
    %v1782 = vunpack.c.l.b16 %v429
    %v1783 = vunpack.c.h.b16 %v429
    %v1784 = vunpack.c.l.b16 %v430
    %v1785 = vunpack.c.h.b16 %v430
    %v1786 = vunpack.c.l.b16 %v431
    %v1787 = vunpack.c.h.b16 %v431
    %v1788 = vunpack.c.l.b16 %v432
    %v1789 = vunpack.c.h.b16 %v432
    %v1790 = vunpack.c.l.b16 %v433
    %v1791 = vunpack.c.h.b16 %v433
    %v1792 = vunpack.c.l.b16 %v434
    %v1793 = vunpack.c.h.b16 %v434
    %v1794 = vunpack.c.l.b16 %v435
    %v1795 = vunpack.c.h.b16 %v435
    %v1796 = vunpack.c.l.b16 %v436
    %v1797 = vunpack.c.h.b16 %v436
    %v1798 = vunpack.c.l.b16 %v437
    %v1799 = vunpack.c.h.b16 %v437
    %v1800 = vunpack.c.l.b16 %v438
    %v1801 = vunpack.c.h.b16 %v438
    %v1802 = vunpack.c.l.b16 %v439
    %v1803 = vunpack.c.h.b16 %v439
    %v1804 = vunpack.c.l.b16 %v440
    %v1805 = vunpack.c.h.b16 %v440
    %v1806 = vunpack.c.l.b16 %v441
    %v1807 = vunpack.c.h.b16 %v441
    %v1808 = vunpack.c.l.b16 %v442
    %v1809 = vunpack.c.h.b16 %v442
    %v1810 = vunpack.c.l.b16 %v443
    %v1811 = vunpack.c.h.b16 %v443
    %v1812 = vunpack.c.l.b16 %v444
    %v1813 = vunpack.c.h.b16 %v444
    %v1814 = vunpack.c.l.b16 %v445
    %v1815 = vunpack.c.h.b16 %v445
    %v1816 = vunpack.c.l.b16 %v446
    %v1817 = vunpack.c.h.b16 %v446
    %v1818 = vunpack.c.l.b16 %v447
    %v1819 = vunpack.c.h.b16 %v447
    %v1820 = vunpack.c.l.b16 %v448
    %v1821 = vunpack.c.h.b16 %v448
    %v1822 = vunpack.c.l.b16 %v449
    %v1823 = vunpack.c.h.b16 %v449
    %v1824 = vunpack.c.l.b16 %v450
    %v1825 = vunpack.c.h.b16 %v450
    %v1826 = vunpack.c.l.b16 %v451
    %v1827 = vunpack.c.h.b16 %v451
    %v1828 = vunpack.c.l.b16 %v452
    %v1829 = vunpack.c.h.b16 %v452
    %v1830 = vunpack.c.l.b16 %v453
    %v1831 = vunpack.c.h.b16 %v453
    %v1832 = vunpack.c.l.b16 %v454
    %v1833 = vunpack.c.h.b16 %v454
    %v1834 = vunpack.c.l.b16 %v455
    %v1835 = vunpack.c.h.b16 %v455
    %v1836 = vunpack.c.l.b16 %v456
    %v1837 = vunpack.c.h.b16 %v456
    %v1838 = vunpack.c.l.b16 %v457
    %v1839 = vunpack.c.h.b16 %v457
    %v1840 = vunpack.c.l.b16 %v458
    %v1841 = vunpack.c.h.b16 %v458
    %v1842 = vunpack.c.l.b16 %v459
    %v1843 = vunpack.c.h.b16 %v459
    %v1844 = vunpack.c.l.b16 %v460
    %v1845 = vunpack.c.h.b16 %v460
    %v1846 = vunpack.c.l.b16 %v461
    %v1847 = vunpack.c.h.b16 %v461
    %v1848 = vunpack.c.l.b16 %v462
    %v1849 = vunpack.c.h.b16 %v462
    %v1850 = vunpack.c.l.b16 %v463
    %v1851 = vunpack.c.h.b16 %v463
    %v1852 = vunpack.c.l.b16 %v464
    %v1853 = vunpack.c.h.b16 %v464
    %v1854 = vunpack.c.l.b16 %v465
    %v1855 = vunpack.c.h.b16 %v465
    %v1856 = vunpack.c.l.b16 %v466
    %v1857 = vunpack.c.h.b16 %v466
    %v1858 = vunpack.c.l.b16 %v467
    %v1859 = vunpack.c.h.b16 %v467
    %v1860 = vunpack.c.l.b16 %v468
    %v1861 = vunpack.c.h.b16 %v468
    %v1862 = vunpack.c.l.b16 %v469
    %v1863 = vunpack.c.h.b16 %v469
    %v1864 = vunpack.c.l.b16 %v470
    %v1865 = vunpack.c.h.b16 %v470
    %v1866 = vunpack.c.l.b16 %v471
    %v1867 = vunpack.c.h.b16 %v471
    %v1868 = vunpack.c.l.b16 %v472
    %v1869 = vunpack.c.h.b16 %v472
    %v1870 = vunpack.c.l.b16 %v473
    %v1871 = vunpack.c.h.b16 %v473
    %v1872 = vunpack.c.l.b16 %v474
    %v1873 = vunpack.c.h.b16 %v474
    %v1874 = vunpack.c.l.b16 %v475
    %v1875 = vunpack.c.h.b16 %v475
    %v1876 = vunpack.c.l.b16 %v476
    %v1877 = vunpack.c.h.b16 %v476
    %v1878 = vunpack.c.l.b16 %v477
    %v1879 = vunpack.c.h.b16 %v477
    %v1880 = vunpack.c.l.b16 %v478
    %v1881 = vunpack.c.h.b16 %v478
    %v1882 = vunpack.c.l.b16 %v479
    %v1883 = vunpack.c.h.b16 %v479
    %v1884 = vunpack.c.l.b16 %v480
    %v1885 = vunpack.c.h.b16 %v480
    %v1886 = vunpack.c.l.b16 %v481
    %v1887 = vunpack.c.h.b16 %v481
    %v1888 = vunpack.c.l.b16 %v482
    %v1889 = vunpack.c.h.b16 %v482
    %v1890 = vunpack.c.l.b16 %v483
    %v1891 = vunpack.c.h.b16 %v483
    %v1892 = vunpack.c.l.b16 %v484
    %v1893 = vunpack.c.h.b16 %v484
    %v1894 = vunpack.c.l.b16 %v485
    %v1895 = vunpack.c.h.b16 %v485
    %v1896 = vunpack.c.l.b16 %v486
    %v1897 = vunpack.c.h.b16 %v486
    %v1898 = vunpack.c.l.b16 %v487
    %v1899 = vunpack.c.h.b16 %v487
    %v1900 = vunpack.c.l.b16 %v488
    %v1901 = vunpack.c.h.b16 %v488
    %v1902 = vunpack.c.l.b16 %v489
    %v1903 = vunpack.c.h.b16 %v489
    %v1904 = vunpack.c.l.b16 %v490
    %v1905 = vunpack.c.h.b16 %v490
    %v1906 = vunpack.c.l.b16 %v491
    %v1907 = vunpack.c.h.b16 %v491
    %v1908 = vunpack.c.l.b16 %v492
    %v1909 = vunpack.c.h.b16 %v492
    %v1910 = vunpack.c.l.b16 %v493
    %v1911 = vunpack.c.h.b16 %v493
    %v1912 = vunpack.c.l.b16 %v494
    %v1913 = vunpack.c.h.b16 %v494
    %v1914 = vunpack.c.l.b16 %v495
    %v1915 = vunpack.c.h.b16 %v495
    %v1916 = vunpack.c.l.b16 %v496
    %v1917 = vunpack.c.h.b16 %v496
    %v1918 = vunpack.c.l.b16 %v497
    %v1919 = vunpack.c.h.b16 %v497
    %v1920 = vunpack.c.l.b16 %v498
    %v1921 = vunpack.c.h.b16 %v498
    %v1922 = vunpack.c.l.b16 %v499
    %v1923 = vunpack.c.h.b16 %v499
    %v1924 = vunpack.c.l.b16 %v500
    %v1925 = vunpack.c.h.b16 %v500
    %v1926 = vunpack.c.l.b16 %v501
    %v1927 = vunpack.c.h.b16 %v501
    %v1928 = vunpack.c.l.b16 %v502
    %v1929 = vunpack.c.h.b16 %v502
    %v1930 = vunpack.c.l.b16 %v503
    %v1931 = vunpack.c.h.b16 %v503
    %v1932 = vunpack.c.l.b16 %v504
    %v1933 = vunpack.c.h.b16 %v504
    %v1934 = vunpack.c.l.b16 %v505
    %v1935 = vunpack.c.h.b16 %v505
    %v1936 = vunpack.c.l.b16 %v506
    %v1937 = vunpack.c.h.b16 %v506
    %v1938 = vunpack.c.l.b16 %v507
    %v1939 = vunpack.c.h.b16 %v507
    %v1940 = vunpack.c.l.b16 %v508
    %v1941 = vunpack.c.h.b16 %v508
    %v1942 = vunpack.c.l.b16 %v509
    %v1943 = vunpack.c.h.b16 %v509
    %v1944 = vunpack.c.l.b16 %v510
    %v1945 = vunpack.c.h.b16 %v510
    %v1946 = vunpack.c.l.b16 %v511
    %v1947 = vunpack.c.h.b16 %v511
    %v1948 = vunpack.c.l.b16 %v512
    %v1949 = vunpack.c.h.b16 %v512
    %v1950 = vunpack.c.l.b16 %v513
    %v1951 = vunpack.c.h.b16 %v513
    %v1952 = vunpack.c.l.b16 %v514
    %v1953 = vunpack.c.h.b16 %v514
    %v1954 = vunpack.c.l.b16 %v515
    %v1955 = vunpack.c.h.b16 %v515
    %v1956 = vunpack.c.l.b16 %v516
    %v1957 = vunpack.c.h.b16 %v516
    %v1958 = vunpack.c.l.b16 %v517
    %v1959 = vunpack.c.h.b16 %v517
    %v1960 = vunpack.c.l.b16 %v518
    %v1961 = vunpack.c.h.b16 %v518
    %v1962 = vunpack.c.l.b16 %v519
    %v1963 = vunpack.c.h.b16 %v519
    %v1964 = vunpack.c.l.b16 %v520
    %v1965 = vunpack.c.h.b16 %v520
    %v1966 = vunpack.c.l.b16 %v521
    %v1967 = vunpack.c.h.b16 %v521
    %v1968 = vunpack.c.l.b16 %v522
    %v1969 = vunpack.c.h.b16 %v522
    %v1970 = vunpack.c.l.b16 %v523
    %v1971 = vunpack.c.h.b16 %v523
    %v1972 = vunpack.c.l.b16 %v524
    %v1973 = vunpack.c.h.b16 %v524
    %v1974 = vunpack.c.l.b16 %v525
    %v1975 = vunpack.c.h.b16 %v525
    %v1976 = vunpack.c.l.b16 %v526
    %v1977 = vunpack.c.h.b16 %v526
    %v1978 = vunpack.c.l.b16 %v527
    %v1979 = vunpack.c.h.b16 %v527
    %v1980 = vunpack.c.l.b16 %v528
    %v1981 = vunpack.c.h.b16 %v528
    %v1982 = vunpack.c.l.b16 %v529
    %v1983 = vunpack.c.h.b16 %v529
    %v1984 = vunpack.c.l.b16 %v530
    %v1985 = vunpack.c.h.b16 %v530
    %v1986 = vunpack.c.l.b16 %v531
    %v1987 = vunpack.c.h.b16 %v531
    %v1988 = vunpack.c.l.b16 %v532
    %v1989 = vunpack.c.h.b16 %v532
    %v1990 = vunpack.c.l.b16 %v533
    %v1991 = vunpack.c.h.b16 %v533
    %v1992 = vunpack.c.l.b16 %v534
    %v1993 = vunpack.c.h.b16 %v534
    %v1994 = vunpack.c.l.b16 %v535
    %v1995 = vunpack.c.h.b16 %v535
    %v1996 = vunpack.c.l.b16 %v536
    %v1997 = vunpack.c.h.b16 %v536
    %v1998 = vunpack.c.l.b16 %v537
    %v1999 = vunpack.c.h.b16 %v537
    %v2000 = vunpack.c.l.b16 %v538
    %v2001 = vunpack.c.h.b16 %v538
    %v2002 = vunpack.c.l.b16 %v539
    %v2003 = vunpack.c.h.b16 %v539
    %v2004 = vunpack.c.l.b16 %v540
    %v2005 = vunpack.c.h.b16 %v540
    %v2006 = vunpack.c.l.b16 %v541
    %v2007 = vunpack.c.h.b16 %v541
    %v2008 = vunpack.c.l.b16 %v542
    %v2009 = vunpack.c.h.b16 %v542
    %v2010 = vunpack.c.l.b16 %v543
    %v2011 = vunpack.c.h.b16 %v543
    %v2012 = vunpack.c.l.b16 %v544
    %v2013 = vunpack.c.h.b16 %v544
    %v2014 = vunpack.c.l.b16 %v545
    %v2015 = vunpack.c.h.b16 %v545
    %v2016 = vunpack.c.l.b16 %v546
    %v2017 = vunpack.c.h.b16 %v546
    %v2018 = vunpack.c.l.b16 %v547
    %v2019 = vunpack.c.h.b16 %v547
    %v2020 = vunpack.c.l.b16 %v548
    %v2021 = vunpack.c.h.b16 %v548
    %v2022 = vunpack.c.l.b16 %v549
    %v2023 = vunpack.c.h.b16 %v549
    %v2024 = vunpack.c.l.b16 %v550
    %v2025 = vunpack.c.h.b16 %v550
    %v2026 = vunpack.c.l.b16 %v551
    %v2027 = vunpack.c.h.b16 %v551
    %v2028 = vunpack.c.l.b16 %v552
    %v2029 = vunpack.c.h.b16 %v552
    %v2030 = vunpack.c.l.b16 %v553
    %v2031 = vunpack.c.h.b16 %v553
    %v2032 = vunpack.c.l.b16 %v554
    %v2033 = vunpack.c.h.b16 %v554
    %v2034 = vunpack.c.l.b16 %v555
    %v2035 = vunpack.c.h.b16 %v555
    %v2036 = vunpack.c.l.b16 %v556
    %v2037 = vunpack.c.h.b16 %v556
    %v2038 = vunpack.c.l.b16 %v557
    %v2039 = vunpack.c.h.b16 %v557
    %v2040 = vunpack.c.l.b16 %v558
    %v2041 = vunpack.c.h.b16 %v558
    %v2042 = vunpack.c.l.b16 %v559
    %v2043 = vunpack.c.h.b16 %v559
    %v2044 = vunpack.c.l.b16 %v560
    %v2045 = vunpack.c.h.b16 %v560
    %v2046 = vunpack.c.l.b16 %v561
    %v2047 = vunpack.c.h.b16 %v561
    %v2048 = vunpack.c.l.b16 %v562
    %v2049 = vunpack.c.h.b16 %v562
    %v2050 = vunpack.c.l.b16 %v563
    %v2051 = vunpack.c.h.b16 %v563
    %v2052 = vunpack.c.l.b16 %v564
    %v2053 = vunpack.c.h.b16 %v564
    %v2054 = vunpack.c.l.b16 %v565
    %v2055 = vunpack.c.h.b16 %v565
    %v2056 = vunpack.c.l.b16 %v566
    %v2057 = vunpack.c.h.b16 %v566
    %v2058 = vunpack.c.l.b16 %v567
    %v2059 = vunpack.c.h.b16 %v567
    %v2060 = vunpack.c.l.b16 %v568
    %v2061 = vunpack.c.h.b16 %v568
    %v2062 = vunpack.c.l.b16 %v569
    %v2063 = vunpack.c.h.b16 %v569
    %v2064 = vunpack.c.l.b16 %v570
    %v2065 = vunpack.c.h.b16 %v570
    %v2066 = vunpack.c.l.b16 %v571
    %v2067 = vunpack.c.h.b16 %v571
    %v2068 = vunpack.c.l.b16 %v572
    %v2069 = vunpack.c.h.b16 %v572
    %v2070 = vunpack.c.l.b16 %v573
    %v2071 = vunpack.c.h.b16 %v573
    %v2072 = vunpack.c.l.b16 %v574
    %v2073 = vunpack.c.h.b16 %v574
    %v2074 = vunpack.c.l.b16 %v575
    %v2075 = vunpack.c.h.b16 %v575
    %v2076 = vunpack.c.l.b16 %v576
    %v2077 = vunpack.c.h.b16 %v576
    %v2078 = vunpack.c.l.b16 %v577
    %v2079 = vunpack.c.h.b16 %v577
    %v2080 = vunpack.c.l.b16 %v578
    %v2081 = vunpack.c.h.b16 %v578
    %v2082 = vunpack.c.l.b16 %v579
    %v2083 = vunpack.c.h.b16 %v579
    %v2084 = vunpack.c.l.b16 %v580
    %v2085 = vunpack.c.h.b16 %v580
    %v2086 = vunpack.c.l.b16 %v581
    %v2087 = vunpack.c.h.b16 %v581
    %v2088 = vunpack.c.l.b16 %v582
    %v2089 = vunpack.c.h.b16 %v582
    %v2090 = vunpack.c.l.b16 %v583
    %v2091 = vunpack.c.h.b16 %v583
    %v2092 = vunpack.c.l.b16 %v584
    %v2093 = vunpack.c.h.b16 %v584
    %v2094 = vunpack.c.l.b16 %v585
    %v2095 = vunpack.c.h.b16 %v585
    %v2096 = vunpack.c.l.b16 %v586
    %v2097 = vunpack.c.h.b16 %v586
    %v2098 = vunpack.c.l.b16 %v587
    %v2099 = vunpack.c.h.b16 %v587
    %v2100 = vunpack.c.l.b16 %v588
    %v2101 = vunpack.c.h.b16 %v588
    %v2102 = vunpack.c.l.b16 %v589
    %v2103 = vunpack.c.h.b16 %v589
    %v2104 = vunpack.c.l.b16 %v590
    %v2105 = vunpack.c.h.b16 %v590
    %v2106 = vunpack.c.l.b16 %v591
    %v2107 = vunpack.c.h.b16 %v591
    %v2108 = vunpack.c.l.b16 %v592
    %v2109 = vunpack.c.h.b16 %v592
    %v2110 = vunpack.c.l.b16 %v593
    %v2111 = vunpack.c.h.b16 %v593
    %v2112 = vunpack.c.l.b16 %v594
    %v2113 = vunpack.c.h.b16 %v594
    %v2114 = vunpack.c.l.b16 %v595
    %v2115 = vunpack.c.h.b16 %v595
    %v2116 = vunpack.c.l.b16 %v596
    %v2117 = vunpack.c.h.b16 %v596
    %v2118 = vunpack.c.l.b16 %v597
    %v2119 = vunpack.c.h.b16 %v597
    %v2120 = vunpack.c.l.b16 %v598
    %v2121 = vunpack.c.h.b16 %v598
    %v2122 = vunpack.c.l.b16 %v599
    %v2123 = vunpack.c.h.b16 %v599
    %v2124 = vunpack.c.l.b16 %v600
    %v2125 = vunpack.c.h.b16 %v600
    %v2126 = vunpack.c.l.b16 %v601
    %v2127 = vunpack.c.h.b16 %v601
    %v2128 = vunpack.c.l.b16 %v602
    %v2129 = vunpack.c.h.b16 %v602
    %v2130 = vunpack.c.l.b16 %v603
    %v2131 = vunpack.c.h.b16 %v603
    %v2132 = vunpack.c.l.b16 %v604
    %v2133 = vunpack.c.h.b16 %v604
    %v2134 = vunpack.c.l.b16 %v605
    %v2135 = vunpack.c.h.b16 %v605
    %v2136 = vunpack.c.l.b16 %v606
    %v2137 = vunpack.c.h.b16 %v606
    %v2138 = vunpack.c.l.b16 %v607
    %v2139 = vunpack.c.h.b16 %v607
    %v2140 = vunpack.c.l.b16 %v608
    %v2141 = vunpack.c.h.b16 %v608
    %v2142 = vunpack.c.l.b16 %v609
    %v2143 = vunpack.c.h.b16 %v609
    %v2144 = vunpack.c.l.b16 %v610
    %v2145 = vunpack.c.h.b16 %v610
    %v2146 = vunpack.c.l.b16 %v611
    %v2147 = vunpack.c.h.b16 %v611
    %v2148 = vunpack.c.l.b16 %v612
    %v2149 = vunpack.c.h.b16 %v612
    %v2150 = vpack.c.b16 %v1134, %v1126
    %v2151 = vpack.c.b16 %v1135, %v1127
    %v2152 = vpack.c.b16 %v1136, %v1128
    %v2153 = vpack.c.b16 %v1137, %v1129
    %v2154 = vpack.c.b16 %v1138, %v1130
    %v2155 = vpack.c.b16 %v1139, %v1131
    %v2156 = vpack.c.b16 %v1140, %v1132
    %v2157 = vpack.c.b16 %v1141, %v1133
    %v2158 = vpack.c.b16 %v1150, %v1142
    %v2159 = vpack.c.b16 %v1151, %v1143
    %v2160 = vpack.c.b16 %v1152, %v1144
    %v2161 = vpack.c.b16 %v1153, %v1145
    %v2162 = vpack.c.b16 %v1154, %v1146
    %v2163 = vpack.c.b16 %v1155, %v1147
    %v2164 = vpack.c.b16 %v1156, %v1148
    %v2165 = vpack.c.b16 %v1157, %v1149
    %v2166 = vpack.c.b16 %v1166, %v1158
    %v2167 = vpack.c.b16 %v1167, %v1159
    %v2168 = vpack.c.b16 %v1168, %v1160
    %v2169 = vpack.c.b16 %v1169, %v1161
    %v2170 = vpack.c.b16 %v1170, %v1162
    %v2171 = vpack.c.b16 %v1171, %v1163
    %v2172 = vpack.c.b16 %v1172, %v1164
    %v2173 = vpack.c.b16 %v1173, %v1165
    %v2174 = vpack.c.b16 %v1182, %v1174
    %v2175 = vpack.c.b16 %v1183, %v1175
    %v2176 = vpack.c.b16 %v1184, %v1176
    %v2177 = vpack.c.b16 %v1185, %v1177
    %v2178 = vpack.c.b16 %v1186, %v1178
    %v2179 = vpack.c.b16 %v1187, %v1179
    %v2180 = vpack.c.b16 %v1188, %v1180
    %v2181 = vpack.c.b16 %v1189, %v1181
    %v2182 = vpack.c.b16 %v1198, %v1190
    %v2183 = vpack.c.b16 %v1199, %v1191
    %v2184 = vpack.c.b16 %v1200, %v1192
    %v2185 = vpack.c.b16 %v1201, %v1193
    %v2186 = vpack.c.b16 %v1202, %v1194
    %v2187 = vpack.c.b16 %v1203, %v1195
    %v2188 = vpack.c.b16 %v1204, %v1196
    %v2189 = vpack.c.b16 %v1205, %v1197
    %v2190 = vpack.c.b16 %v1214, %v1206
    %v2191 = vpack.c.b16 %v1215, %v1207
    %v2192 = vpack.c.b16 %v1216, %v1208
    %v2193 = vpack.c.b16 %v1217, %v1209
    %v2194 = vpack.c.b16 %v1218, %v1210
    %v2195 = vpack.c.b16 %v1219, %v1211
    %v2196 = vpack.c.b16 %v1220, %v1212
    %v2197 = vpack.c.b16 %v1221, %v1213
    %v2198 = vpack.c.b16 %v1230, %v1222
    %v2199 = vpack.c.b16 %v1231, %v1223
    %v2200 = vpack.c.b16 %v1232, %v1224
    %v2201 = vpack.c.b16 %v1233, %v1225
    %v2202 = vpack.c.b16 %v1234, %v1226
    %v2203 = vpack.c.b16 %v1235, %v1227
    %v2204 = vpack.c.b16 %v1236, %v1228
    %v2205 = vpack.c.b16 %v1237, %v1229
    %v2206 = vpack.c.b16 %v1246, %v1238
    %v2207 = vpack.c.b16 %v1247, %v1239
    %v2208 = vpack.c.b16 %v1248, %v1240
    %v2209 = vpack.c.b16 %v1249, %v1241
    %v2210 = vpack.c.b16 %v1250, %v1242
    %v2211 = vpack.c.b16 %v1251, %v1243
    %v2212 = vpack.c.b16 %v1252, %v1244
    %v2213 = vpack.c.b16 %v1253, %v1245
    %v2214 = vpack.c.b16 %v1262, %v1254
    %v2215 = vpack.c.b16 %v1263, %v1255
    %v2216 = vpack.c.b16 %v1264, %v1256
    %v2217 = vpack.c.b16 %v1265, %v1257
    %v2218 = vpack.c.b16 %v1266, %v1258
    %v2219 = vpack.c.b16 %v1267, %v1259
    %v2220 = vpack.c.b16 %v1268, %v1260
    %v2221 = vpack.c.b16 %v1269, %v1261
    %v2222 = vpack.c.b16 %v1278, %v1270
    %v2223 = vpack.c.b16 %v1279, %v1271
    %v2224 = vpack.c.b16 %v1280, %v1272
    %v2225 = vpack.c.b16 %v1281, %v1273
    %v2226 = vpack.c.b16 %v1282, %v1274
    %v2227 = vpack.c.b16 %v1283, %v1275
    %v2228 = vpack.c.b16 %v1284, %v1276
    %v2229 = vpack.c.b16 %v1285, %v1277
    %v2230 = vpack.c.b16 %v1294, %v1286
    %v2231 = vpack.c.b16 %v1295, %v1287
    %v2232 = vpack.c.b16 %v1296, %v1288
    %v2233 = vpack.c.b16 %v1297, %v1289
    %v2234 = vpack.c.b16 %v1298, %v1290
    %v2235 = vpack.c.b16 %v1299, %v1291
    %v2236 = vpack.c.b16 %v1300, %v1292
    %v2237 = vpack.c.b16 %v1301, %v1293
    %v2238 = vpack.c.b16 %v1310, %v1302
    %v2239 = vpack.c.b16 %v1311, %v1303
    %v2240 = vpack.c.b16 %v1312, %v1304
    %v2241 = vpack.c.b16 %v1313, %v1305
    %v2242 = vpack.c.b16 %v1314, %v1306
    %v2243 = vpack.c.b16 %v1315, %v1307
    %v2244 = vpack.c.b16 %v1316, %v1308
    %v2245 = vpack.c.b16 %v1317, %v1309
    %v2246 = vpack.c.b16 %v1326, %v1318
    %v2247 = vpack.c.b16 %v1327, %v1319
    %v2248 = vpack.c.b16 %v1328, %v1320
    %v2249 = vpack.c.b16 %v1329, %v1321
    %v2250 = vpack.c.b16 %v1330, %v1322
    %v2251 = vpack.c.b16 %v1331, %v1323
    %v2252 = vpack.c.b16 %v1332, %v1324
    %v2253 = vpack.c.b16 %v1333, %v1325
    %v2254 = vpack.c.b16 %v1342, %v1334
    %v2255 = vpack.c.b16 %v1343, %v1335
    %v2256 = vpack.c.b16 %v1344, %v1336
    %v2257 = vpack.c.b16 %v1345, %v1337
    %v2258 = vpack.c.b16 %v1346, %v1338
    %v2259 = vpack.c.b16 %v1347, %v1339
    %v2260 = vpack.c.b16 %v1348, %v1340
    %v2261 = vpack.c.b16 %v1349, %v1341
    %v2262 = vpack.c.b16 %v1358, %v1350
    %v2263 = vpack.c.b16 %v1359, %v1351
    %v2264 = vpack.c.b16 %v1360, %v1352
    %v2265 = vpack.c.b16 %v1361, %v1353
    %v2266 = vpack.c.b16 %v1362, %v1354
    %v2267 = vpack.c.b16 %v1363, %v1355
    %v2268 = vpack.c.b16 %v1364, %v1356
    %v2269 = vpack.c.b16 %v1365, %v1357
    %v2270 = vpack.c.b16 %v1374, %v1366
    %v2271 = vpack.c.b16 %v1375, %v1367
    %v2272 = vpack.c.b16 %v1376, %v1368
    %v2273 = vpack.c.b16 %v1377, %v1369
    %v2274 = vpack.c.b16 %v1378, %v1370
    %v2275 = vpack.c.b16 %v1379, %v1371
    %v2276 = vpack.c.b16 %v1380, %v1372
    %v2277 = vpack.c.b16 %v1381, %v1373
    %v2278 = vpack.c.b16 %v1390, %v1382
    %v2279 = vpack.c.b16 %v1391, %v1383
    %v2280 = vpack.c.b16 %v1392, %v1384
    %v2281 = vpack.c.b16 %v1393, %v1385
    %v2282 = vpack.c.b16 %v1394, %v1386
    %v2283 = vpack.c.b16 %v1395, %v1387
    %v2284 = vpack.c.b16 %v1396, %v1388
    %v2285 = vpack.c.b16 %v1397, %v1389
    %v2286 = vpack.c.b16 %v1406, %v1398
    %v2287 = vpack.c.b16 %v1407, %v1399
    %v2288 = vpack.c.b16 %v1408, %v1400
    %v2289 = vpack.c.b16 %v1409, %v1401
    %v2290 = vpack.c.b16 %v1410, %v1402
    %v2291 = vpack.c.b16 %v1411, %v1403
    %v2292 = vpack.c.b16 %v1412, %v1404
    %v2293 = vpack.c.b16 %v1413, %v1405
    %v2294 = vpack.c.b16 %v1422, %v1414
    %v2295 = vpack.c.b16 %v1423, %v1415
    %v2296 = vpack.c.b16 %v1424, %v1416
    %v2297 = vpack.c.b16 %v1425, %v1417
    %v2298 = vpack.c.b16 %v1426, %v1418
    %v2299 = vpack.c.b16 %v1427, %v1419
    %v2300 = vpack.c.b16 %v1428, %v1420
    %v2301 = vpack.c.b16 %v1429, %v1421
    %v2302 = vpack.c.b16 %v1438, %v1430
    %v2303 = vpack.c.b16 %v1439, %v1431
    %v2304 = vpack.c.b16 %v1440, %v1432
    %v2305 = vpack.c.b16 %v1441, %v1433
    %v2306 = vpack.c.b16 %v1442, %v1434
    %v2307 = vpack.c.b16 %v1443, %v1435
    %v2308 = vpack.c.b16 %v1444, %v1436
    %v2309 = vpack.c.b16 %v1445, %v1437
    %v2310 = vpack.c.b16 %v1454, %v1446
    %v2311 = vpack.c.b16 %v1455, %v1447
    %v2312 = vpack.c.b16 %v1456, %v1448
    %v2313 = vpack.c.b16 %v1457, %v1449
    %v2314 = vpack.c.b16 %v1458, %v1450
    %v2315 = vpack.c.b16 %v1459, %v1451
    %v2316 = vpack.c.b16 %v1460, %v1452
    %v2317 = vpack.c.b16 %v1461, %v1453
    %v2318 = vpack.c.b16 %v1470, %v1462
    %v2319 = vpack.c.b16 %v1471, %v1463
    %v2320 = vpack.c.b16 %v1472, %v1464
    %v2321 = vpack.c.b16 %v1473, %v1465
    %v2322 = vpack.c.b16 %v1474, %v1466
    %v2323 = vpack.c.b16 %v1475, %v1467
    %v2324 = vpack.c.b16 %v1476, %v1468
    %v2325 = vpack.c.b16 %v1477, %v1469
    %v2326 = vpack.c.b16 %v1486, %v1478
    %v2327 = vpack.c.b16 %v1487, %v1479
    %v2328 = vpack.c.b16 %v1488, %v1480
    %v2329 = vpack.c.b16 %v1489, %v1481
    %v2330 = vpack.c.b16 %v1490, %v1482
    %v2331 = vpack.c.b16 %v1491, %v1483
    %v2332 = vpack.c.b16 %v1492, %v1484
    %v2333 = vpack.c.b16 %v1493, %v1485
    %v2334 = vpack.c.b16 %v1502, %v1494
    %v2335 = vpack.c.b16 %v1503, %v1495
    %v2336 = vpack.c.b16 %v1504, %v1496
    %v2337 = vpack.c.b16 %v1505, %v1497
    %v2338 = vpack.c.b16 %v1506, %v1498
    %v2339 = vpack.c.b16 %v1507, %v1499
    %v2340 = vpack.c.b16 %v1508, %v1500
    %v2341 = vpack.c.b16 %v1509, %v1501
    %v2342 = vpack.c.b16 %v1518, %v1510
    %v2343 = vpack.c.b16 %v1519, %v1511
    %v2344 = vpack.c.b16 %v1520, %v1512
    %v2345 = vpack.c.b16 %v1521, %v1513
    %v2346 = vpack.c.b16 %v1522, %v1514
    %v2347 = vpack.c.b16 %v1523, %v1515
    %v2348 = vpack.c.b16 %v1524, %v1516
    %v2349 = vpack.c.b16 %v1525, %v1517
    %v2350 = vpack.c.b16 %v1534, %v1526
    %v2351 = vpack.c.b16 %v1535, %v1527
    %v2352 = vpack.c.b16 %v1536, %v1528
    %v2353 = vpack.c.b16 %v1537, %v1529
    %v2354 = vpack.c.b16 %v1538, %v1530
    %v2355 = vpack.c.b16 %v1539, %v1531
    %v2356 = vpack.c.b16 %v1540, %v1532
    %v2357 = vpack.c.b16 %v1541, %v1533
    %v2358 = vpack.c.b16 %v1550, %v1542
    %v2359 = vpack.c.b16 %v1551, %v1543
    %v2360 = vpack.c.b16 %v1552, %v1544
    %v2361 = vpack.c.b16 %v1553, %v1545
    %v2362 = vpack.c.b16 %v1554, %v1546
    %v2363 = vpack.c.b16 %v1555, %v1547
    %v2364 = vpack.c.b16 %v1556, %v1548
    %v2365 = vpack.c.b16 %v1557, %v1549
    %v2366 = vpack.c.b16 %v1566, %v1558
    %v2367 = vpack.c.b16 %v1567, %v1559
    %v2368 = vpack.c.b16 %v1568, %v1560
    %v2369 = vpack.c.b16 %v1569, %v1561
    %v2370 = vpack.c.b16 %v1570, %v1562
    %v2371 = vpack.c.b16 %v1571, %v1563
    %v2372 = vpack.c.b16 %v1572, %v1564
    %v2373 = vpack.c.b16 %v1573, %v1565
    %v2374 = vpack.c.b16 %v1582, %v1574
    %v2375 = vpack.c.b16 %v1583, %v1575
    %v2376 = vpack.c.b16 %v1584, %v1576
    %v2377 = vpack.c.b16 %v1585, %v1577
    %v2378 = vpack.c.b16 %v1586, %v1578
    %v2379 = vpack.c.b16 %v1587, %v1579
    %v2380 = vpack.c.b16 %v1588, %v1580
    %v2381 = vpack.c.b16 %v1589, %v1581
    %v2382 = vpack.c.b16 %v1598, %v1590
    %v2383 = vpack.c.b16 %v1599, %v1591
    %v2384 = vpack.c.b16 %v1600, %v1592
    %v2385 = vpack.c.b16 %v1601, %v1593
    %v2386 = vpack.c.b16 %v1602, %v1594
    %v2387 = vpack.c.b16 %v1603, %v1595
    %v2388 = vpack.c.b16 %v1604, %v1596
    %v2389 = vpack.c.b16 %v1605, %v1597
    %v2390 = vpack.c.b16 %v1614, %v1606
    %v2391 = vpack.c.b16 %v1615, %v1607
    %v2392 = vpack.c.b16 %v1616, %v1608
    %v2393 = vpack.c.b16 %v1617, %v1609
    %v2394 = vpack.c.b16 %v1618, %v1610
    %v2395 = vpack.c.b16 %v1619, %v1611
    %v2396 = vpack.c.b16 %v1620, %v1612
    %v2397 = vpack.c.b16 %v1621, %v1613
    %v2398 = vpack.c.b16 %v1630, %v1622
    %v2399 = vpack.c.b16 %v1631, %v1623
    %v2400 = vpack.c.b16 %v1632, %v1624
    %v2401 = vpack.c.b16 %v1633, %v1625
    %v2402 = vpack.c.b16 %v1634, %v1626
    %v2403 = vpack.c.b16 %v1635, %v1627
    %v2404 = vpack.c.b16 %v1636, %v1628
    %v2405 = vpack.c.b16 %v1637, %v1629
    %v2406 = vpack.c.b16 %v1646, %v1638
    %v2407 = vpack.c.b16 %v1647, %v1639
    %v2408 = vpack.c.b16 %v1648, %v1640
    %v2409 = vpack.c.b16 %v1649, %v1641
    %v2410 = vpack.c.b16 %v1650, %v1642
    %v2411 = vpack.c.b16 %v1651, %v1643
    %v2412 = vpack.c.b16 %v1652, %v1644
    %v2413 = vpack.c.b16 %v1653, %v1645
    %v2414 = vpack.c.b16 %v1662, %v1654
    %v2415 = vpack.c.b16 %v1663, %v1655
    %v2416 = vpack.c.b16 %v1664, %v1656
    %v2417 = vpack.c.b16 %v1665, %v1657
    %v2418 = vpack.c.b16 %v1666, %v1658
    %v2419 = vpack.c.b16 %v1667, %v1659
    %v2420 = vpack.c.b16 %v1668, %v1660
    %v2421 = vpack.c.b16 %v1669, %v1661
    %v2422 = vpack.c.b16 %v1678, %v1670
    %v2423 = vpack.c.b16 %v1679, %v1671
    %v2424 = vpack.c.b16 %v1680, %v1672
    %v2425 = vpack.c.b16 %v1681, %v1673
    %v2426 = vpack.c.b16 %v1682, %v1674
    %v2427 = vpack.c.b16 %v1683, %v1675
    %v2428 = vpack.c.b16 %v1684, %v1676
    %v2429 = vpack.c.b16 %v1685, %v1677
    %v2430 = vpack.c.b16 %v1694, %v1686
    %v2431 = vpack.c.b16 %v1695, %v1687
    %v2432 = vpack.c.b16 %v1696, %v1688
    %v2433 = vpack.c.b16 %v1697, %v1689
    %v2434 = vpack.c.b16 %v1698, %v1690
    %v2435 = vpack.c.b16 %v1699, %v1691
    %v2436 = vpack.c.b16 %v1700, %v1692
    %v2437 = vpack.c.b16 %v1701, %v1693
    %v2438 = vpack.c.b16 %v1710, %v1702
    %v2439 = vpack.c.b16 %v1711, %v1703
    %v2440 = vpack.c.b16 %v1712, %v1704
    %v2441 = vpack.c.b16 %v1713, %v1705
    %v2442 = vpack.c.b16 %v1714, %v1706
    %v2443 = vpack.c.b16 %v1715, %v1707
    %v2444 = vpack.c.b16 %v1716, %v1708
    %v2445 = vpack.c.b16 %v1717, %v1709
    %v2446 = vpack.c.b16 %v1726, %v1718
    %v2447 = vpack.c.b16 %v1727, %v1719
    %v2448 = vpack.c.b16 %v1728, %v1720
    %v2449 = vpack.c.b16 %v1729, %v1721
    %v2450 = vpack.c.b16 %v1730, %v1722
    %v2451 = vpack.c.b16 %v1731, %v1723
    %v2452 = vpack.c.b16 %v1732, %v1724
    %v2453 = vpack.c.b16 %v1733, %v1725
    %v2454 = vpack.c.b16 %v1742, %v1734
    %v2455 = vpack.c.b16 %v1743, %v1735
    %v2456 = vpack.c.b16 %v1744, %v1736
    %v2457 = vpack.c.b16 %v1745, %v1737
    %v2458 = vpack.c.b16 %v1746, %v1738
    %v2459 = vpack.c.b16 %v1747, %v1739
    %v2460 = vpack.c.b16 %v1748, %v1740
    %v2461 = vpack.c.b16 %v1749, %v1741
    %v2462 = vpack.c.b16 %v1758, %v1750
    %v2463 = vpack.c.b16 %v1759, %v1751
    %v2464 = vpack.c.b16 %v1760, %v1752
    %v2465 = vpack.c.b16 %v1761, %v1753
    %v2466 = vpack.c.b16 %v1762, %v1754
    %v2467 = vpack.c.b16 %v1763, %v1755
    %v2468 = vpack.c.b16 %v1764, %v1756
    %v2469 = vpack.c.b16 %v1765, %v1757
    %v2470 = vpack.c.b16 %v1774, %v1766
    %v2471 = vpack.c.b16 %v1775, %v1767
    %v2472 = vpack.c.b16 %v1776, %v1768
    %v2473 = vpack.c.b16 %v1777, %v1769
    %v2474 = vpack.c.b16 %v1778, %v1770
    %v2475 = vpack.c.b16 %v1779, %v1771
    %v2476 = vpack.c.b16 %v1780, %v1772
    %v2477 = vpack.c.b16 %v1781, %v1773
    %v2478 = vpack.c.b16 %v1790, %v1782
    %v2479 = vpack.c.b16 %v1791, %v1783
    %v2480 = vpack.c.b16 %v1792, %v1784
    %v2481 = vpack.c.b16 %v1793, %v1785
    %v2482 = vpack.c.b16 %v1794, %v1786
    %v2483 = vpack.c.b16 %v1795, %v1787
    %v2484 = vpack.c.b16 %v1796, %v1788
    %v2485 = vpack.c.b16 %v1797, %v1789
    %v2486 = vpack.c.b16 %v1806, %v1798
    %v2487 = vpack.c.b16 %v1807, %v1799
    %v2488 = vpack.c.b16 %v1808, %v1800
    %v2489 = vpack.c.b16 %v1809, %v1801
    %v2490 = vpack.c.b16 %v1810, %v1802
    %v2491 = vpack.c.b16 %v1811, %v1803
    %v2492 = vpack.c.b16 %v1812, %v1804
    %v2493 = vpack.c.b16 %v1813, %v1805
    %v2494 = vpack.c.b16 %v1822, %v1814
    %v2495 = vpack.c.b16 %v1823, %v1815
    %v2496 = vpack.c.b16 %v1824, %v1816
    %v2497 = vpack.c.b16 %v1825, %v1817
    %v2498 = vpack.c.b16 %v1826, %v1818
    %v2499 = vpack.c.b16 %v1827, %v1819
    %v2500 = vpack.c.b16 %v1828, %v1820
    %v2501 = vpack.c.b16 %v1829, %v1821
    %v2502 = vpack.c.b16 %v1838, %v1830
    %v2503 = vpack.c.b16 %v1839, %v1831
    %v2504 = vpack.c.b16 %v1840, %v1832
    %v2505 = vpack.c.b16 %v1841, %v1833
    %v2506 = vpack.c.b16 %v1842, %v1834
    %v2507 = vpack.c.b16 %v1843, %v1835
    %v2508 = vpack.c.b16 %v1844, %v1836
    %v2509 = vpack.c.b16 %v1845, %v1837
    %v2510 = vpack.c.b16 %v1854, %v1846
    %v2511 = vpack.c.b16 %v1855, %v1847
    %v2512 = vpack.c.b16 %v1856, %v1848
    %v2513 = vpack.c.b16 %v1857, %v1849
    %v2514 = vpack.c.b16 %v1858, %v1850
    %v2515 = vpack.c.b16 %v1859, %v1851
    %v2516 = vpack.c.b16 %v1860, %v1852
    %v2517 = vpack.c.b16 %v1861, %v1853
    %v2518 = vpack.c.b16 %v1870, %v1862
    %v2519 = vpack.c.b16 %v1871, %v1863
    %v2520 = vpack.c.b16 %v1872, %v1864
    %v2521 = vpack.c.b16 %v1873, %v1865
    %v2522 = vpack.c.b16 %v1874, %v1866
    %v2523 = vpack.c.b16 %v1875, %v1867
    %v2524 = vpack.c.b16 %v1876, %v1868
    %v2525 = vpack.c.b16 %v1877, %v1869
    %v2526 = vpack.c.b16 %v1886, %v1878
    %v2527 = vpack.c.b16 %v1887, %v1879
    %v2528 = vpack.c.b16 %v1888, %v1880
    %v2529 = vpack.c.b16 %v1889, %v1881
    %v2530 = vpack.c.b16 %v1890, %v1882
    %v2531 = vpack.c.b16 %v1891, %v1883
    %v2532 = vpack.c.b16 %v1892, %v1884
    %v2533 = vpack.c.b16 %v1893, %v1885
    %v2534 = vpack.c.b16 %v1902, %v1894
    %v2535 = vpack.c.b16 %v1903, %v1895
    %v2536 = vpack.c.b16 %v1904, %v1896
    %v2537 = vpack.c.b16 %v1905, %v1897
    %v2538 = vpack.c.b16 %v1906, %v1898
    %v2539 = vpack.c.b16 %v1907, %v1899
    %v2540 = vpack.c.b16 %v1908, %v1900
    %v2541 = vpack.c.b16 %v1909, %v1901
    %v2542 = vpack.c.b16 %v1918, %v1910
    %v2543 = vpack.c.b16 %v1919, %v1911
    %v2544 = vpack.c.b16 %v1920, %v1912
    %v2545 = vpack.c.b16 %v1921, %v1913
    %v2546 = vpack.c.b16 %v1922, %v1914
    %v2547 = vpack.c.b16 %v1923, %v1915
    %v2548 = vpack.c.b16 %v1924, %v1916
    %v2549 = vpack.c.b16 %v1925, %v1917
    %v2550 = vpack.c.b16 %v1934, %v1926
    %v2551 = vpack.c.b16 %v1935, %v1927
    %v2552 = vpack.c.b16 %v1936, %v1928
    %v2553 = vpack.c.b16 %v1937, %v1929
    %v2554 = vpack.c.b16 %v1938, %v1930
    %v2555 = vpack.c.b16 %v1939, %v1931
    %v2556 = vpack.c.b16 %v1940, %v1932
    %v2557 = vpack.c.b16 %v1941, %v1933
    %v2558 = vpack.c.b16 %v1950, %v1942
    %v2559 = vpack.c.b16 %v1951, %v1943
    %v2560 = vpack.c.b16 %v1952, %v1944
    %v2561 = vpack.c.b16 %v1953, %v1945
    %v2562 = vpack.c.b16 %v1954, %v1946
    %v2563 = vpack.c.b16 %v1955, %v1947
    %v2564 = vpack.c.b16 %v1956, %v1948
    %v2565 = vpack.c.b16 %v1957, %v1949
    %v2566 = vpack.c.b16 %v1966, %v1958
    %v2567 = vpack.c.b16 %v1967, %v1959
    %v2568 = vpack.c.b16 %v1968, %v1960
    %v2569 = vpack.c.b16 %v1969, %v1961
    %v2570 = vpack.c.b16 %v1970, %v1962
    %v2571 = vpack.c.b16 %v1971, %v1963
    %v2572 = vpack.c.b16 %v1972, %v1964
    %v2573 = vpack.c.b16 %v1973, %v1965
    %v2574 = vpack.c.b16 %v1982, %v1974
    %v2575 = vpack.c.b16 %v1983, %v1975
    %v2576 = vpack.c.b16 %v1984, %v1976
    %v2577 = vpack.c.b16 %v1985, %v1977
    %v2578 = vpack.c.b16 %v1986, %v1978
    %v2579 = vpack.c.b16 %v1987, %v1979
    %v2580 = vpack.c.b16 %v1988, %v1980
    %v2581 = vpack.c.b16 %v1989, %v1981
    %v2582 = vpack.c.b16 %v1998, %v1990
    %v2583 = vpack.c.b16 %v1999, %v1991
    %v2584 = vpack.c.b16 %v2000, %v1992
    %v2585 = vpack.c.b16 %v2001, %v1993
    %v2586 = vpack.c.b16 %v2002, %v1994
    %v2587 = vpack.c.b16 %v2003, %v1995
    %v2588 = vpack.c.b16 %v2004, %v1996
    %v2589 = vpack.c.b16 %v2005, %v1997
    %v2590 = vpack.c.b16 %v2014, %v2006
    %v2591 = vpack.c.b16 %v2015, %v2007
    %v2592 = vpack.c.b16 %v2016, %v2008
    %v2593 = vpack.c.b16 %v2017, %v2009
    %v2594 = vpack.c.b16 %v2018, %v2010
    %v2595 = vpack.c.b16 %v2019, %v2011
    %v2596 = vpack.c.b16 %v2020, %v2012
    %v2597 = vpack.c.b16 %v2021, %v2013
    %v2598 = vpack.c.b16 %v2030, %v2022
    %v2599 = vpack.c.b16 %v2031, %v2023
    %v2600 = vpack.c.b16 %v2032, %v2024
    %v2601 = vpack.c.b16 %v2033, %v2025
    %v2602 = vpack.c.b16 %v2034, %v2026
    %v2603 = vpack.c.b16 %v2035, %v2027
    %v2604 = vpack.c.b16 %v2036, %v2028
    %v2605 = vpack.c.b16 %v2037, %v2029
    %v2606 = vpack.c.b16 %v2046, %v2038
    %v2607 = vpack.c.b16 %v2047, %v2039
    %v2608 = vpack.c.b16 %v2048, %v2040
    %v2609 = vpack.c.b16 %v2049, %v2041
    %v2610 = vpack.c.b16 %v2050, %v2042
    %v2611 = vpack.c.b16 %v2051, %v2043
    %v2612 = vpack.c.b16 %v2052, %v2044
    %v2613 = vpack.c.b16 %v2053, %v2045
    %v2614 = vpack.c.b16 %v2062, %v2054
    %v2615 = vpack.c.b16 %v2063, %v2055
    %v2616 = vpack.c.b16 %v2064, %v2056
    %v2617 = vpack.c.b16 %v2065, %v2057
    %v2618 = vpack.c.b16 %v2066, %v2058
    %v2619 = vpack.c.b16 %v2067, %v2059
    %v2620 = vpack.c.b16 %v2068, %v2060
    %v2621 = vpack.c.b16 %v2069, %v2061
    %v2622 = vpack.c.b16 %v2078, %v2070
    %v2623 = vpack.c.b16 %v2079, %v2071
    %v2624 = vpack.c.b16 %v2080, %v2072
    %v2625 = vpack.c.b16 %v2081, %v2073
    %v2626 = vpack.c.b16 %v2082, %v2074
    %v2627 = vpack.c.b16 %v2083, %v2075
    %v2628 = vpack.c.b16 %v2084, %v2076
    %v2629 = vpack.c.b16 %v2085, %v2077
    %v2630 = vpack.c.b16 %v2094, %v2086
    %v2631 = vpack.c.b16 %v2095, %v2087
    %v2632 = vpack.c.b16 %v2096, %v2088
    %v2633 = vpack.c.b16 %v2097, %v2089
    %v2634 = vpack.c.b16 %v2098, %v2090
    %v2635 = vpack.c.b16 %v2099, %v2091
    %v2636 = vpack.c.b16 %v2100, %v2092
    %v2637 = vpack.c.b16 %v2101, %v2093
    %v2638 = vpack.c.b16 %v2110, %v2102
    %v2639 = vpack.c.b16 %v2111, %v2103
    %v2640 = vpack.c.b16 %v2112, %v2104
    %v2641 = vpack.c.b16 %v2113, %v2105
    %v2642 = vpack.c.b16 %v2114, %v2106
    %v2643 = vpack.c.b16 %v2115, %v2107
    %v2644 = vpack.c.b16 %v2116, %v2108
    %v2645 = vpack.c.b16 %v2117, %v2109
    %v2646 = vpack.c.b16 %v2126, %v2118
    %v2647 = vpack.c.b16 %v2127, %v2119
    %v2648 = vpack.c.b16 %v2128, %v2120
    %v2649 = vpack.c.b16 %v2129, %v2121
    %v2650 = vpack.c.b16 %v2130, %v2122
    %v2651 = vpack.c.b16 %v2131, %v2123
    %v2652 = vpack.c.b16 %v2132, %v2124
    %v2653 = vpack.c.b16 %v2133, %v2125
    %v2654 = vpack.c.b16 %v2142, %v2134
    %v2655 = vpack.c.b16 %v2143, %v2135
    %v2656 = vpack.c.b16 %v2144, %v2136
    %v2657 = vpack.c.b16 %v2145, %v2137
    %v2658 = vpack.c.b16 %v2146, %v2138
    %v2659 = vpack.c.b16 %v2147, %v2139
    %v2660 = vpack.c.b16 %v2148, %v2140
    %v2661 = vpack.c.b16 %v2149, %v2141
    %v3175 = vperm.slane %v613, 0
    %v3176 = vperm.slane %v613, 1
    %v3177 = vperm.slane %v613, 2
    %v3178 = vperm.slane %v613, 3
    %v3179 = vperm.slane %v613, 4
    %v3180 = vperm.slane %v613, 5
    %v3181 = vperm.slane %v613, 6
    %v3182 = vperm.slane %v613, 7
    %3191 = vmatpush.bf16.msra.mxu0 %v2206
    %3192 = vmatpush.bf16.msra.mxu0 %v2198
    %3193 = vmatpush.bf16.msra.mxu0 %v2190
    %3194 = vmatpush.bf16.msra.mxu0 %v2182
    %3195 = vmatpush.bf16.msra.mxu0 %v2174
    %3196 = vmatpush.bf16.msra.mxu0 %v2166
    %3197 = vmatpush.bf16.msra.mxu0 %v2158
    %3198 = vmatpush.bf16.msra.mxu0 %v2150
    %3199 = vmatmul.bf16.gmra.mxu0 %v93
    %v3200 = vpop.f32.mrf.mxu0
    %v3201 = vadd.f32 %v3175, %v3200
    %v3202 = vpop.f32.mrf.mxu0
    %3203 = vdwg.mxu0
    %3204 = vmatpush.bf16.msra.mxu0 %v2270
    %3205 = vmatpush.bf16.msra.mxu0 %v2262
    %3206 = vmatpush.bf16.msra.mxu0 %v2254
    %3207 = vmatpush.bf16.msra.mxu0 %v2246
    %3208 = vmatpush.bf16.msra.mxu0 %v2238
    %3209 = vmatpush.bf16.msra.mxu0 %v2230
    %3210 = vmatpush.bf16.msra.mxu0 %v2222
    %3211 = vmatpush.bf16.msra.mxu0 %v2214
    %3212 = vmatmul.bf16.gmra.mxu0 %v94
    %v3213 = vpop.f32.mrf.mxu0
    %v3214 = vadd.f32 %v3201, %v3213
    %v3215 = vpop.f32.mrf.mxu0
    %3216 = vdwg.mxu0
    %3217 = vmatpush.bf16.msra.mxu0 %v2334
    %3218 = vmatpush.bf16.msra.mxu0 %v2326
    %3219 = vmatpush.bf16.msra.mxu0 %v2318
    %3220 = vmatpush.bf16.msra.mxu0 %v2310
    %3221 = vmatpush.bf16.msra.mxu0 %v2302
    %3222 = vmatpush.bf16.msra.mxu0 %v2294
    %3223 = vmatpush.bf16.msra.mxu0 %v2286
    %3224 = vmatpush.bf16.msra.mxu0 %v2278
    %3225 = vmatmul.bf16.gmra.mxu0 %v95
    %v3226 = vpop.f32.mrf.mxu0
    %v3227 = vadd.f32 %v3214, %v3226
    %v3228 = vpop.f32.mrf.mxu0
    %3229 = vdwg.mxu0
    %3230 = vmatpush.bf16.msra.mxu0 %v2398
    %3231 = vmatpush.bf16.msra.mxu0 %v2390
    %3232 = vmatpush.bf16.msra.mxu0 %v2382
    %3233 = vmatpush.bf16.msra.mxu0 %v2374
    %3234 = vmatpush.bf16.msra.mxu0 %v2366
    %3235 = vmatpush.bf16.msra.mxu0 %v2358
    %3236 = vmatpush.bf16.msra.mxu0 %v2350
    %3237 = vmatpush.bf16.msra.mxu0 %v2342
    %3238 = vmatmul.bf16.gmra.mxu0 %v96
    %v3239 = vpop.f32.mrf.mxu0
    %v3240 = vadd.f32 %v3227, %v3239
    %v3241 = vpop.f32.mrf.mxu0
    %3242 = vdwg.mxu0
    %3243 = vmatpush.bf16.msra.mxu0 %v2462
    %3244 = vmatpush.bf16.msra.mxu0 %v2454
    %3245 = vmatpush.bf16.msra.mxu0 %v2446
    %3246 = vmatpush.bf16.msra.mxu0 %v2438
    %3247 = vmatpush.bf16.msra.mxu0 %v2430
    %3248 = vmatpush.bf16.msra.mxu0 %v2422
    %3249 = vmatpush.bf16.msra.mxu0 %v2414
    %3250 = vmatpush.bf16.msra.mxu0 %v2406
    %3251 = vmatmul.bf16.gmra.mxu0 %v97
    %v3252 = vpop.f32.mrf.mxu0
    %v3253 = vadd.f32 %v3240, %v3252
    %v3254 = vpop.f32.mrf.mxu0
    %3255 = vdwg.mxu0
    %3256 = vmatpush.bf16.msra.mxu0 %v2526
    %3257 = vmatpush.bf16.msra.mxu0 %v2518
    %3258 = vmatpush.bf16.msra.mxu0 %v2510
    %3259 = vmatpush.bf16.msra.mxu0 %v2502
    %3260 = vmatpush.bf16.msra.mxu0 %v2494
    %3261 = vmatpush.bf16.msra.mxu0 %v2486
    %3262 = vmatpush.bf16.msra.mxu0 %v2478
    %3263 = vmatpush.bf16.msra.mxu0 %v2470
    %3264 = vmatmul.bf16.gmra.mxu0 %v98
    %v3265 = vpop.f32.mrf.mxu0
    %v3266 = vadd.f32 %v3253, %v3265
    %v3267 = vpop.f32.mrf.mxu0
    %3268 = vdwg.mxu0
    %3269 = vmatpush.bf16.msra.mxu0 %v2590
    %3270 = vmatpush.bf16.msra.mxu0 %v2582
    %3271 = vmatpush.bf16.msra.mxu0 %v2574
    %3272 = vmatpush.bf16.msra.mxu0 %v2566
    %3273 = vmatpush.bf16.msra.mxu0 %v2558
    %3274 = vmatpush.bf16.msra.mxu0 %v2550
    %3275 = vmatpush.bf16.msra.mxu0 %v2542
    %3276 = vmatpush.bf16.msra.mxu0 %v2534
    %3277 = vmatmul.bf16.gmra.mxu0 %v99
    %v3278 = vpop.f32.mrf.mxu0
    %v3279 = vadd.f32 %v3266, %v3278
    %v3280 = vpop.f32.mrf.mxu0
    %3281 = vdwg.mxu0
    %3282 = vmatpush.bf16.msra.mxu0 %v2654
    %3283 = vmatpush.bf16.msra.mxu0 %v2646
    %3284 = vmatpush.bf16.msra.mxu0 %v2638
    %3285 = vmatpush.bf16.msra.mxu0 %v2630
    %3286 = vmatpush.bf16.msra.mxu0 %v2622
    %3287 = vmatpush.bf16.msra.mxu0 %v2614
    %3288 = vmatpush.bf16.msra.mxu0 %v2606
    %3289 = vmatpush.bf16.msra.mxu0 %v2598
    %3290 = vmatmul.bf16.gmra.mxu0 %v100
    %v3291 = vpop.f32.mrf.mxu0
    %v3292 = vadd.f32 %v3279, %v3291
    %v3293 = vpop.f32.mrf.mxu0
    %3294 = vdwg.mxu0
    %3295 = vmatpush.bf16.msra.mxu0 %v2207
    %3296 = vmatpush.bf16.msra.mxu0 %v2199
    %3297 = vmatpush.bf16.msra.mxu0 %v2191
    %3298 = vmatpush.bf16.msra.mxu0 %v2183
    %3299 = vmatpush.bf16.msra.mxu0 %v2175
    %3300 = vmatpush.bf16.msra.mxu0 %v2167
    %3301 = vmatpush.bf16.msra.mxu0 %v2159
    %3302 = vmatpush.bf16.msra.mxu0 %v2151
    %3303 = vmatmul.bf16.gmra.mxu0 %v93
    %v3304 = vpop.f32.mrf.mxu0
    %v3305 = vadd.f32 %v3176, %v3304
    %v3306 = vpop.f32.mrf.mxu0
    %3307 = vdwg.mxu0
    %3308 = vmatpush.bf16.msra.mxu0 %v2271
    %3309 = vmatpush.bf16.msra.mxu0 %v2263
    %3310 = vmatpush.bf16.msra.mxu0 %v2255
    %3311 = vmatpush.bf16.msra.mxu0 %v2247
    %3312 = vmatpush.bf16.msra.mxu0 %v2239
    %3313 = vmatpush.bf16.msra.mxu0 %v2231
    %3314 = vmatpush.bf16.msra.mxu0 %v2223
    %3315 = vmatpush.bf16.msra.mxu0 %v2215
    %3316 = vmatmul.bf16.gmra.mxu0 %v94
    %v3317 = vpop.f32.mrf.mxu0
    %v3318 = vadd.f32 %v3305, %v3317
    %v3319 = vpop.f32.mrf.mxu0
    %3320 = vdwg.mxu0
    %3321 = vmatpush.bf16.msra.mxu0 %v2335
    %3322 = vmatpush.bf16.msra.mxu0 %v2327
    %3323 = vmatpush.bf16.msra.mxu0 %v2319
    %3324 = vmatpush.bf16.msra.mxu0 %v2311
    %3325 = vmatpush.bf16.msra.mxu0 %v2303
    %3326 = vmatpush.bf16.msra.mxu0 %v2295
    %3327 = vmatpush.bf16.msra.mxu0 %v2287
    %3328 = vmatpush.bf16.msra.mxu0 %v2279
    %3329 = vmatmul.bf16.gmra.mxu0 %v95
    %v3330 = vpop.f32.mrf.mxu0
    %v3331 = vadd.f32 %v3318, %v3330
    %v3332 = vpop.f32.mrf.mxu0
    %3333 = vdwg.mxu0
    %3334 = vmatpush.bf16.msra.mxu0 %v2399
    %3335 = vmatpush.bf16.msra.mxu0 %v2391
    %3336 = vmatpush.bf16.msra.mxu0 %v2383
    %3337 = vmatpush.bf16.msra.mxu0 %v2375
    %3338 = vmatpush.bf16.msra.mxu0 %v2367
    %3339 = vmatpush.bf16.msra.mxu0 %v2359
    %3340 = vmatpush.bf16.msra.mxu0 %v2351
    %3341 = vmatpush.bf16.msra.mxu0 %v2343
    %3342 = vmatmul.bf16.gmra.mxu0 %v96
    %v3343 = vpop.f32.mrf.mxu0
    %v3344 = vadd.f32 %v3331, %v3343
    %v3345 = vpop.f32.mrf.mxu0
    %3346 = vdwg.mxu0
    %3347 = vmatpush.bf16.msra.mxu0 %v2463
    %3348 = vmatpush.bf16.msra.mxu0 %v2455
    %3349 = vmatpush.bf16.msra.mxu0 %v2447
    %3350 = vmatpush.bf16.msra.mxu0 %v2439
    %3351 = vmatpush.bf16.msra.mxu0 %v2431
    %3352 = vmatpush.bf16.msra.mxu0 %v2423
    %3353 = vmatpush.bf16.msra.mxu0 %v2415
    %3354 = vmatpush.bf16.msra.mxu0 %v2407
    %3355 = vmatmul.bf16.gmra.mxu0 %v97
    %v3356 = vpop.f32.mrf.mxu0
    %v3357 = vadd.f32 %v3344, %v3356
    %v3358 = vpop.f32.mrf.mxu0
    %3359 = vdwg.mxu0
    %3360 = vmatpush.bf16.msra.mxu0 %v2527
    %3361 = vmatpush.bf16.msra.mxu0 %v2519
    %3362 = vmatpush.bf16.msra.mxu0 %v2511
    %3363 = vmatpush.bf16.msra.mxu0 %v2503
    %3364 = vmatpush.bf16.msra.mxu0 %v2495
    %3365 = vmatpush.bf16.msra.mxu0 %v2487
    %3366 = vmatpush.bf16.msra.mxu0 %v2479
    %3367 = vmatpush.bf16.msra.mxu0 %v2471
    %3368 = vmatmul.bf16.gmra.mxu0 %v98
    %v3369 = vpop.f32.mrf.mxu0
    %v3370 = vadd.f32 %v3357, %v3369
    %v3371 = vpop.f32.mrf.mxu0
    %3372 = vdwg.mxu0
    %3373 = vmatpush.bf16.msra.mxu0 %v2591
    %3374 = vmatpush.bf16.msra.mxu0 %v2583
    %3375 = vmatpush.bf16.msra.mxu0 %v2575
    %3376 = vmatpush.bf16.msra.mxu0 %v2567
    %3377 = vmatpush.bf16.msra.mxu0 %v2559
    %3378 = vmatpush.bf16.msra.mxu0 %v2551
    %3379 = vmatpush.bf16.msra.mxu0 %v2543
    %3380 = vmatpush.bf16.msra.mxu0 %v2535
    %3381 = vmatmul.bf16.gmra.mxu0 %v99
    %v3382 = vpop.f32.mrf.mxu0
    %v3383 = vadd.f32 %v3370, %v3382
    %v3384 = vpop.f32.mrf.mxu0
    %3385 = vdwg.mxu0
    %3386 = vmatpush.bf16.msra.mxu0 %v2655
    %3387 = vmatpush.bf16.msra.mxu0 %v2647
    %3388 = vmatpush.bf16.msra.mxu0 %v2639
    %3389 = vmatpush.bf16.msra.mxu0 %v2631
    %3390 = vmatpush.bf16.msra.mxu0 %v2623
    %3391 = vmatpush.bf16.msra.mxu0 %v2615
    %3392 = vmatpush.bf16.msra.mxu0 %v2607
    %3393 = vmatpush.bf16.msra.mxu0 %v2599
    %3394 = vmatmul.bf16.gmra.mxu0 %v100
    %v3395 = vpop.f32.mrf.mxu0
    %v3396 = vadd.f32 %v3383, %v3395
    %v3397 = vpop.f32.mrf.mxu0
    %3398 = vdwg.mxu0
    %3399 = vmatpush.bf16.msra.mxu0 %v2208
    %3400 = vmatpush.bf16.msra.mxu0 %v2200
    %3401 = vmatpush.bf16.msra.mxu0 %v2192
    %3402 = vmatpush.bf16.msra.mxu0 %v2184
    %3403 = vmatpush.bf16.msra.mxu0 %v2176
    %3404 = vmatpush.bf16.msra.mxu0 %v2168
    %3405 = vmatpush.bf16.msra.mxu0 %v2160
    %3406 = vmatpush.bf16.msra.mxu0 %v2152
    %3407 = vmatmul.bf16.gmra.mxu0 %v93
    %v3408 = vpop.f32.mrf.mxu0
    %v3409 = vadd.f32 %v3177, %v3408
    %v3410 = vpop.f32.mrf.mxu0
    %3411 = vdwg.mxu0
    %3412 = vmatpush.bf16.msra.mxu0 %v2272
    %3413 = vmatpush.bf16.msra.mxu0 %v2264
    %3414 = vmatpush.bf16.msra.mxu0 %v2256
    %3415 = vmatpush.bf16.msra.mxu0 %v2248
    %3416 = vmatpush.bf16.msra.mxu0 %v2240
    %3417 = vmatpush.bf16.msra.mxu0 %v2232
    %3418 = vmatpush.bf16.msra.mxu0 %v2224
    %3419 = vmatpush.bf16.msra.mxu0 %v2216
    %3420 = vmatmul.bf16.gmra.mxu0 %v94
    %v3421 = vpop.f32.mrf.mxu0
    %v3422 = vadd.f32 %v3409, %v3421
    %v3423 = vpop.f32.mrf.mxu0
    %3424 = vdwg.mxu0
    %3425 = vmatpush.bf16.msra.mxu0 %v2336
    %3426 = vmatpush.bf16.msra.mxu0 %v2328
    %3427 = vmatpush.bf16.msra.mxu0 %v2320
    %3428 = vmatpush.bf16.msra.mxu0 %v2312
    %3429 = vmatpush.bf16.msra.mxu0 %v2304
    %3430 = vmatpush.bf16.msra.mxu0 %v2296
    %3431 = vmatpush.bf16.msra.mxu0 %v2288
    %3432 = vmatpush.bf16.msra.mxu0 %v2280
    %3433 = vmatmul.bf16.gmra.mxu0 %v95
    %v3434 = vpop.f32.mrf.mxu0
    %v3435 = vadd.f32 %v3422, %v3434
    %v3436 = vpop.f32.mrf.mxu0
    %3437 = vdwg.mxu0
    %3438 = vmatpush.bf16.msra.mxu0 %v2400
    %3439 = vmatpush.bf16.msra.mxu0 %v2392
    %3440 = vmatpush.bf16.msra.mxu0 %v2384
    %3441 = vmatpush.bf16.msra.mxu0 %v2376
    %3442 = vmatpush.bf16.msra.mxu0 %v2368
    %3443 = vmatpush.bf16.msra.mxu0 %v2360
    %3444 = vmatpush.bf16.msra.mxu0 %v2352
    %3445 = vmatpush.bf16.msra.mxu0 %v2344
    %3446 = vmatmul.bf16.gmra.mxu0 %v96
    %v3447 = vpop.f32.mrf.mxu0
    %v3448 = vadd.f32 %v3435, %v3447
    %v3449 = vpop.f32.mrf.mxu0
    %3450 = vdwg.mxu0
    %3451 = vmatpush.bf16.msra.mxu0 %v2464
    %3452 = vmatpush.bf16.msra.mxu0 %v2456
    %3453 = vmatpush.bf16.msra.mxu0 %v2448
    %3454 = vmatpush.bf16.msra.mxu0 %v2440
    %3455 = vmatpush.bf16.msra.mxu0 %v2432
    %3456 = vmatpush.bf16.msra.mxu0 %v2424
    %3457 = vmatpush.bf16.msra.mxu0 %v2416
    %3458 = vmatpush.bf16.msra.mxu0 %v2408
    %3459 = vmatmul.bf16.gmra.mxu0 %v97
    %v3460 = vpop.f32.mrf.mxu0
    %v3461 = vadd.f32 %v3448, %v3460
    %v3462 = vpop.f32.mrf.mxu0
    %3463 = vdwg.mxu0
    %3464 = vmatpush.bf16.msra.mxu0 %v2528
    %3465 = vmatpush.bf16.msra.mxu0 %v2520
    %3466 = vmatpush.bf16.msra.mxu0 %v2512
    %3467 = vmatpush.bf16.msra.mxu0 %v2504
    %3468 = vmatpush.bf16.msra.mxu0 %v2496
    %3469 = vmatpush.bf16.msra.mxu0 %v2488
    %3470 = vmatpush.bf16.msra.mxu0 %v2480
    %3471 = vmatpush.bf16.msra.mxu0 %v2472
    %3472 = vmatmul.bf16.gmra.mxu0 %v98
    %v3473 = vpop.f32.mrf.mxu0
    %v3474 = vadd.f32 %v3461, %v3473
    %v3475 = vpop.f32.mrf.mxu0
    %3476 = vdwg.mxu0
    %3477 = vmatpush.bf16.msra.mxu0 %v2592
    %3478 = vmatpush.bf16.msra.mxu0 %v2584
    %3479 = vmatpush.bf16.msra.mxu0 %v2576
    %3480 = vmatpush.bf16.msra.mxu0 %v2568
    %3481 = vmatpush.bf16.msra.mxu0 %v2560
    %3482 = vmatpush.bf16.msra.mxu0 %v2552
    %3483 = vmatpush.bf16.msra.mxu0 %v2544
    %3484 = vmatpush.bf16.msra.mxu0 %v2536
    %3485 = vmatmul.bf16.gmra.mxu0 %v99
    %v3486 = vpop.f32.mrf.mxu0
    %v3487 = vadd.f32 %v3474, %v3486
    %v3488 = vpop.f32.mrf.mxu0
    %3489 = vdwg.mxu0
    %3490 = vmatpush.bf16.msra.mxu0 %v2656
    %3491 = vmatpush.bf16.msra.mxu0 %v2648
    %3492 = vmatpush.bf16.msra.mxu0 %v2640
    %3493 = vmatpush.bf16.msra.mxu0 %v2632
    %3494 = vmatpush.bf16.msra.mxu0 %v2624
    %3495 = vmatpush.bf16.msra.mxu0 %v2616
    %3496 = vmatpush.bf16.msra.mxu0 %v2608
    %3497 = vmatpush.bf16.msra.mxu0 %v2600
    %3498 = vmatmul.bf16.gmra.mxu0 %v100
    %v3499 = vpop.f32.mrf.mxu0
    %v3500 = vadd.f32 %v3487, %v3499
    %v3501 = vpop.f32.mrf.mxu0
    %3502 = vdwg.mxu0
    %3503 = vmatpush.bf16.msra.mxu0 %v2209
    %3504 = vmatpush.bf16.msra.mxu0 %v2201
    %3505 = vmatpush.bf16.msra.mxu0 %v2193
    %3506 = vmatpush.bf16.msra.mxu0 %v2185
    %3507 = vmatpush.bf16.msra.mxu0 %v2177
    %3508 = vmatpush.bf16.msra.mxu0 %v2169
    %3509 = vmatpush.bf16.msra.mxu0 %v2161
    %3510 = vmatpush.bf16.msra.mxu0 %v2153
    %3511 = vmatmul.bf16.gmra.mxu0 %v93
    %v3512 = vpop.f32.mrf.mxu0
    %v3513 = vadd.f32 %v3178, %v3512
    %v3514 = vpop.f32.mrf.mxu0
    %3515 = vdwg.mxu0
    %3516 = vmatpush.bf16.msra.mxu0 %v2273
    %3517 = vmatpush.bf16.msra.mxu0 %v2265
    %3518 = vmatpush.bf16.msra.mxu0 %v2257
    %3519 = vmatpush.bf16.msra.mxu0 %v2249
    %3520 = vmatpush.bf16.msra.mxu0 %v2241
    %3521 = vmatpush.bf16.msra.mxu0 %v2233
    %3522 = vmatpush.bf16.msra.mxu0 %v2225
    %3523 = vmatpush.bf16.msra.mxu0 %v2217
    %3524 = vmatmul.bf16.gmra.mxu0 %v94
    %v3525 = vpop.f32.mrf.mxu0
    %v3526 = vadd.f32 %v3513, %v3525
    %v3527 = vpop.f32.mrf.mxu0
    %3528 = vdwg.mxu0
    %3529 = vmatpush.bf16.msra.mxu0 %v2337
    %3530 = vmatpush.bf16.msra.mxu0 %v2329
    %3531 = vmatpush.bf16.msra.mxu0 %v2321
    %3532 = vmatpush.bf16.msra.mxu0 %v2313
    %3533 = vmatpush.bf16.msra.mxu0 %v2305
    %3534 = vmatpush.bf16.msra.mxu0 %v2297
    %3535 = vmatpush.bf16.msra.mxu0 %v2289
    %3536 = vmatpush.bf16.msra.mxu0 %v2281
    %3537 = vmatmul.bf16.gmra.mxu0 %v95
    %v3538 = vpop.f32.mrf.mxu0
    %v3539 = vadd.f32 %v3526, %v3538
    %v3540 = vpop.f32.mrf.mxu0
    %3541 = vdwg.mxu0
    %3542 = vmatpush.bf16.msra.mxu0 %v2401
    %3543 = vmatpush.bf16.msra.mxu0 %v2393
    %3544 = vmatpush.bf16.msra.mxu0 %v2385
    %3545 = vmatpush.bf16.msra.mxu0 %v2377
    %3546 = vmatpush.bf16.msra.mxu0 %v2369
    %3547 = vmatpush.bf16.msra.mxu0 %v2361
    %3548 = vmatpush.bf16.msra.mxu0 %v2353
    %3549 = vmatpush.bf16.msra.mxu0 %v2345
    %3550 = vmatmul.bf16.gmra.mxu0 %v96
    %v3551 = vpop.f32.mrf.mxu0
    %v3552 = vadd.f32 %v3539, %v3551
    %v3553 = vpop.f32.mrf.mxu0
    %3554 = vdwg.mxu0
    %3555 = vmatpush.bf16.msra.mxu0 %v2465
    %3556 = vmatpush.bf16.msra.mxu0 %v2457
    %3557 = vmatpush.bf16.msra.mxu0 %v2449
    %3558 = vmatpush.bf16.msra.mxu0 %v2441
    %3559 = vmatpush.bf16.msra.mxu0 %v2433
    %3560 = vmatpush.bf16.msra.mxu0 %v2425
    %3561 = vmatpush.bf16.msra.mxu0 %v2417
    %3562 = vmatpush.bf16.msra.mxu0 %v2409
    %3563 = vmatmul.bf16.gmra.mxu0 %v97
    %v3564 = vpop.f32.mrf.mxu0
    %v3565 = vadd.f32 %v3552, %v3564
    %v3566 = vpop.f32.mrf.mxu0
    %3567 = vdwg.mxu0
    %3568 = vmatpush.bf16.msra.mxu0 %v2529
    %3569 = vmatpush.bf16.msra.mxu0 %v2521
    %3570 = vmatpush.bf16.msra.mxu0 %v2513
    %3571 = vmatpush.bf16.msra.mxu0 %v2505
    %3572 = vmatpush.bf16.msra.mxu0 %v2497
    %3573 = vmatpush.bf16.msra.mxu0 %v2489
    %3574 = vmatpush.bf16.msra.mxu0 %v2481
    %3575 = vmatpush.bf16.msra.mxu0 %v2473
    %3576 = vmatmul.bf16.gmra.mxu0 %v98
    %v3577 = vpop.f32.mrf.mxu0
    %v3578 = vadd.f32 %v3565, %v3577
    %v3579 = vpop.f32.mrf.mxu0
    %3580 = vdwg.mxu0
    %3581 = vmatpush.bf16.msra.mxu0 %v2593
    %3582 = vmatpush.bf16.msra.mxu0 %v2585
    %3583 = vmatpush.bf16.msra.mxu0 %v2577
    %3584 = vmatpush.bf16.msra.mxu0 %v2569
    %3585 = vmatpush.bf16.msra.mxu0 %v2561
    %3586 = vmatpush.bf16.msra.mxu0 %v2553
    %3587 = vmatpush.bf16.msra.mxu0 %v2545
    %3588 = vmatpush.bf16.msra.mxu0 %v2537
    %3589 = vmatmul.bf16.gmra.mxu0 %v99
    %v3590 = vpop.f32.mrf.mxu0
    %v3591 = vadd.f32 %v3578, %v3590
    %v3592 = vpop.f32.mrf.mxu0
    %3593 = vdwg.mxu0
    %3594 = vmatpush.bf16.msra.mxu0 %v2657
    %3595 = vmatpush.bf16.msra.mxu0 %v2649
    %3596 = vmatpush.bf16.msra.mxu0 %v2641
    %3597 = vmatpush.bf16.msra.mxu0 %v2633
    %3598 = vmatpush.bf16.msra.mxu0 %v2625
    %3599 = vmatpush.bf16.msra.mxu0 %v2617
    %3600 = vmatpush.bf16.msra.mxu0 %v2609
    %3601 = vmatpush.bf16.msra.mxu0 %v2601
    %3602 = vmatmul.bf16.gmra.mxu0 %v100
    %v3603 = vpop.f32.mrf.mxu0
    %v3604 = vadd.f32 %v3591, %v3603
    %v3605 = vpop.f32.mrf.mxu0
    %3606 = vdwg.mxu0
    %3607 = vmatpush.bf16.msra.mxu0 %v2210
    %3608 = vmatpush.bf16.msra.mxu0 %v2202
    %3609 = vmatpush.bf16.msra.mxu0 %v2194
    %3610 = vmatpush.bf16.msra.mxu0 %v2186
    %3611 = vmatpush.bf16.msra.mxu0 %v2178
    %3612 = vmatpush.bf16.msra.mxu0 %v2170
    %3613 = vmatpush.bf16.msra.mxu0 %v2162
    %3614 = vmatpush.bf16.msra.mxu0 %v2154
    %3615 = vmatmul.bf16.gmra.mxu0 %v93
    %v3616 = vpop.f32.mrf.mxu0
    %v3617 = vadd.f32 %v3179, %v3616
    %v3618 = vpop.f32.mrf.mxu0
    %3619 = vdwg.mxu0
    %3620 = vmatpush.bf16.msra.mxu0 %v2274
    %3621 = vmatpush.bf16.msra.mxu0 %v2266
    %3622 = vmatpush.bf16.msra.mxu0 %v2258
    %3623 = vmatpush.bf16.msra.mxu0 %v2250
    %3624 = vmatpush.bf16.msra.mxu0 %v2242
    %3625 = vmatpush.bf16.msra.mxu0 %v2234
    %3626 = vmatpush.bf16.msra.mxu0 %v2226
    %3627 = vmatpush.bf16.msra.mxu0 %v2218
    %3628 = vmatmul.bf16.gmra.mxu0 %v94
    %v3629 = vpop.f32.mrf.mxu0
    %v3630 = vadd.f32 %v3617, %v3629
    %v3631 = vpop.f32.mrf.mxu0
    %3632 = vdwg.mxu0
    %3633 = vmatpush.bf16.msra.mxu0 %v2338
    %3634 = vmatpush.bf16.msra.mxu0 %v2330
    %3635 = vmatpush.bf16.msra.mxu0 %v2322
    %3636 = vmatpush.bf16.msra.mxu0 %v2314
    %3637 = vmatpush.bf16.msra.mxu0 %v2306
    %3638 = vmatpush.bf16.msra.mxu0 %v2298
    %3639 = vmatpush.bf16.msra.mxu0 %v2290
    %3640 = vmatpush.bf16.msra.mxu0 %v2282
    %3641 = vmatmul.bf16.gmra.mxu0 %v95
    %v3642 = vpop.f32.mrf.mxu0
    %v3643 = vadd.f32 %v3630, %v3642
    %v3644 = vpop.f32.mrf.mxu0
    %3645 = vdwg.mxu0
    %3646 = vmatpush.bf16.msra.mxu0 %v2402
    %3647 = vmatpush.bf16.msra.mxu0 %v2394
    %3648 = vmatpush.bf16.msra.mxu0 %v2386
    %3649 = vmatpush.bf16.msra.mxu0 %v2378
    %3650 = vmatpush.bf16.msra.mxu0 %v2370
    %3651 = vmatpush.bf16.msra.mxu0 %v2362
    %3652 = vmatpush.bf16.msra.mxu0 %v2354
    %3653 = vmatpush.bf16.msra.mxu0 %v2346
    %3654 = vmatmul.bf16.gmra.mxu0 %v96
    %v3655 = vpop.f32.mrf.mxu0
    %v3656 = vadd.f32 %v3643, %v3655
    %v3657 = vpop.f32.mrf.mxu0
    %3658 = vdwg.mxu0
    %3659 = vmatpush.bf16.msra.mxu0 %v2466
    %3660 = vmatpush.bf16.msra.mxu0 %v2458
    %3661 = vmatpush.bf16.msra.mxu0 %v2450
    %3662 = vmatpush.bf16.msra.mxu0 %v2442
    %3663 = vmatpush.bf16.msra.mxu0 %v2434
    %3664 = vmatpush.bf16.msra.mxu0 %v2426
    %3665 = vmatpush.bf16.msra.mxu0 %v2418
    %3666 = vmatpush.bf16.msra.mxu0 %v2410
    %3667 = vmatmul.bf16.gmra.mxu0 %v97
    %v3668 = vpop.f32.mrf.mxu0
    %v3669 = vadd.f32 %v3656, %v3668
    %v3670 = vpop.f32.mrf.mxu0
    %3671 = vdwg.mxu0
    %3672 = vmatpush.bf16.msra.mxu0 %v2530
    %3673 = vmatpush.bf16.msra.mxu0 %v2522
    %3674 = vmatpush.bf16.msra.mxu0 %v2514
    %3675 = vmatpush.bf16.msra.mxu0 %v2506
    %3676 = vmatpush.bf16.msra.mxu0 %v2498
    %3677 = vmatpush.bf16.msra.mxu0 %v2490
    %3678 = vmatpush.bf16.msra.mxu0 %v2482
    %3679 = vmatpush.bf16.msra.mxu0 %v2474
    %3680 = vmatmul.bf16.gmra.mxu0 %v98
    %v3681 = vpop.f32.mrf.mxu0
    %v3682 = vadd.f32 %v3669, %v3681
    %v3683 = vpop.f32.mrf.mxu0
    %3684 = vdwg.mxu0
    %3685 = vmatpush.bf16.msra.mxu0 %v2594
    %3686 = vmatpush.bf16.msra.mxu0 %v2586
    %3687 = vmatpush.bf16.msra.mxu0 %v2578
    %3688 = vmatpush.bf16.msra.mxu0 %v2570
    %3689 = vmatpush.bf16.msra.mxu0 %v2562
    %3690 = vmatpush.bf16.msra.mxu0 %v2554
    %3691 = vmatpush.bf16.msra.mxu0 %v2546
    %3692 = vmatpush.bf16.msra.mxu0 %v2538
    %3693 = vmatmul.bf16.gmra.mxu0 %v99
    %v3694 = vpop.f32.mrf.mxu0
    %v3695 = vadd.f32 %v3682, %v3694
    %v3696 = vpop.f32.mrf.mxu0
    %3697 = vdwg.mxu0
    %3698 = vmatpush.bf16.msra.mxu0 %v2658
    %3699 = vmatpush.bf16.msra.mxu0 %v2650
    %3700 = vmatpush.bf16.msra.mxu0 %v2642
    %3701 = vmatpush.bf16.msra.mxu0 %v2634
    %3702 = vmatpush.bf16.msra.mxu0 %v2626
    %3703 = vmatpush.bf16.msra.mxu0 %v2618
    %3704 = vmatpush.bf16.msra.mxu0 %v2610
    %3705 = vmatpush.bf16.msra.mxu0 %v2602
    %3706 = vmatmul.bf16.gmra.mxu0 %v100
    %v3707 = vpop.f32.mrf.mxu0
    %v3708 = vadd.f32 %v3695, %v3707
    %v3709 = vpop.f32.mrf.mxu0
    %3710 = vdwg.mxu0
    %3711 = vmatpush.bf16.msra.mxu0 %v2211
    %3712 = vmatpush.bf16.msra.mxu0 %v2203
    %3713 = vmatpush.bf16.msra.mxu0 %v2195
    %3714 = vmatpush.bf16.msra.mxu0 %v2187
    %3715 = vmatpush.bf16.msra.mxu0 %v2179
    %3716 = vmatpush.bf16.msra.mxu0 %v2171
    %3717 = vmatpush.bf16.msra.mxu0 %v2163
    %3718 = vmatpush.bf16.msra.mxu0 %v2155
    %3719 = vmatmul.bf16.gmra.mxu0 %v93
    %v3720 = vpop.f32.mrf.mxu0
    %v3721 = vadd.f32 %v3180, %v3720
    %v3722 = vpop.f32.mrf.mxu0
    %3723 = vdwg.mxu0
    %3724 = vmatpush.bf16.msra.mxu0 %v2275
    %3725 = vmatpush.bf16.msra.mxu0 %v2267
    %3726 = vmatpush.bf16.msra.mxu0 %v2259
    %3727 = vmatpush.bf16.msra.mxu0 %v2251
    %3728 = vmatpush.bf16.msra.mxu0 %v2243
    %3729 = vmatpush.bf16.msra.mxu0 %v2235
    %3730 = vmatpush.bf16.msra.mxu0 %v2227
    %3731 = vmatpush.bf16.msra.mxu0 %v2219
    %3732 = vmatmul.bf16.gmra.mxu0 %v94
    %v3733 = vpop.f32.mrf.mxu0
    %v3734 = vadd.f32 %v3721, %v3733
    %v3735 = vpop.f32.mrf.mxu0
    %3736 = vdwg.mxu0
    %3737 = vmatpush.bf16.msra.mxu0 %v2339
    %3738 = vmatpush.bf16.msra.mxu0 %v2331
    %3739 = vmatpush.bf16.msra.mxu0 %v2323
    %3740 = vmatpush.bf16.msra.mxu0 %v2315
    %3741 = vmatpush.bf16.msra.mxu0 %v2307
    %3742 = vmatpush.bf16.msra.mxu0 %v2299
    %3743 = vmatpush.bf16.msra.mxu0 %v2291
    %3744 = vmatpush.bf16.msra.mxu0 %v2283
    %3745 = vmatmul.bf16.gmra.mxu0 %v95
    %v3746 = vpop.f32.mrf.mxu0
    %v3747 = vadd.f32 %v3734, %v3746
    %v3748 = vpop.f32.mrf.mxu0
    %3749 = vdwg.mxu0
    %3750 = vmatpush.bf16.msra.mxu0 %v2403
    %3751 = vmatpush.bf16.msra.mxu0 %v2395
    %3752 = vmatpush.bf16.msra.mxu0 %v2387
    %3753 = vmatpush.bf16.msra.mxu0 %v2379
    %3754 = vmatpush.bf16.msra.mxu0 %v2371
    %3755 = vmatpush.bf16.msra.mxu0 %v2363
    %3756 = vmatpush.bf16.msra.mxu0 %v2355
    %3757 = vmatpush.bf16.msra.mxu0 %v2347
    %3758 = vmatmul.bf16.gmra.mxu0 %v96
    %v3759 = vpop.f32.mrf.mxu0
    %v3760 = vadd.f32 %v3747, %v3759
    %v3761 = vpop.f32.mrf.mxu0
    %3762 = vdwg.mxu0
    %3763 = vmatpush.bf16.msra.mxu0 %v2467
    %3764 = vmatpush.bf16.msra.mxu0 %v2459
    %3765 = vmatpush.bf16.msra.mxu0 %v2451
    %3766 = vmatpush.bf16.msra.mxu0 %v2443
    %3767 = vmatpush.bf16.msra.mxu0 %v2435
    %3768 = vmatpush.bf16.msra.mxu0 %v2427
    %3769 = vmatpush.bf16.msra.mxu0 %v2419
    %3770 = vmatpush.bf16.msra.mxu0 %v2411
    %3771 = vmatmul.bf16.gmra.mxu0 %v97
    %v3772 = vpop.f32.mrf.mxu0
    %v3773 = vadd.f32 %v3760, %v3772
    %v3774 = vpop.f32.mrf.mxu0
    %3775 = vdwg.mxu0
    %3776 = vmatpush.bf16.msra.mxu0 %v2531
    %3777 = vmatpush.bf16.msra.mxu0 %v2523
    %3778 = vmatpush.bf16.msra.mxu0 %v2515
    %3779 = vmatpush.bf16.msra.mxu0 %v2507
    %3780 = vmatpush.bf16.msra.mxu0 %v2499
    %3781 = vmatpush.bf16.msra.mxu0 %v2491
    %3782 = vmatpush.bf16.msra.mxu0 %v2483
    %3783 = vmatpush.bf16.msra.mxu0 %v2475
    %3784 = vmatmul.bf16.gmra.mxu0 %v98
    %v3785 = vpop.f32.mrf.mxu0
    %v3786 = vadd.f32 %v3773, %v3785
    %v3787 = vpop.f32.mrf.mxu0
    %3788 = vdwg.mxu0
    %3789 = vmatpush.bf16.msra.mxu0 %v2595
    %3790 = vmatpush.bf16.msra.mxu0 %v2587
    %3791 = vmatpush.bf16.msra.mxu0 %v2579
    %3792 = vmatpush.bf16.msra.mxu0 %v2571
    %3793 = vmatpush.bf16.msra.mxu0 %v2563
    %3794 = vmatpush.bf16.msra.mxu0 %v2555
    %3795 = vmatpush.bf16.msra.mxu0 %v2547
    %3796 = vmatpush.bf16.msra.mxu0 %v2539
    %3797 = vmatmul.bf16.gmra.mxu0 %v99
    %v3798 = vpop.f32.mrf.mxu0
    %v3799 = vadd.f32 %v3786, %v3798
    %v3800 = vpop.f32.mrf.mxu0
    %3801 = vdwg.mxu0
    %3802 = vmatpush.bf16.msra.mxu0 %v2659
    %3803 = vmatpush.bf16.msra.mxu0 %v2651
    %3804 = vmatpush.bf16.msra.mxu0 %v2643
    %3805 = vmatpush.bf16.msra.mxu0 %v2635
    %3806 = vmatpush.bf16.msra.mxu0 %v2627
    %3807 = vmatpush.bf16.msra.mxu0 %v2619
    %3808 = vmatpush.bf16.msra.mxu0 %v2611
    %3809 = vmatpush.bf16.msra.mxu0 %v2603
    %3810 = vmatmul.bf16.gmra.mxu0 %v100
    %v3811 = vpop.f32.mrf.mxu0
    %v3812 = vadd.f32 %v3799, %v3811
    %v3813 = vpop.f32.mrf.mxu0
    %3814 = vdwg.mxu0
    %3815 = vmatpush.bf16.msra.mxu0 %v2212
    %3816 = vmatpush.bf16.msra.mxu0 %v2204
    %3817 = vmatpush.bf16.msra.mxu0 %v2196
    %3818 = vmatpush.bf16.msra.mxu0 %v2188
    %3819 = vmatpush.bf16.msra.mxu0 %v2180
    %3820 = vmatpush.bf16.msra.mxu0 %v2172
    %3821 = vmatpush.bf16.msra.mxu0 %v2164
    %3822 = vmatpush.bf16.msra.mxu0 %v2156
    %3823 = vmatmul.bf16.gmra.mxu0 %v93
    %v3824 = vpop.f32.mrf.mxu0
    %v3825 = vadd.f32 %v3181, %v3824
    %v3826 = vpop.f32.mrf.mxu0
    %3827 = vdwg.mxu0
    %3828 = vmatpush.bf16.msra.mxu0 %v2276
    %3829 = vmatpush.bf16.msra.mxu0 %v2268
    %3830 = vmatpush.bf16.msra.mxu0 %v2260
    %3831 = vmatpush.bf16.msra.mxu0 %v2252
    %3832 = vmatpush.bf16.msra.mxu0 %v2244
    %3833 = vmatpush.bf16.msra.mxu0 %v2236
    %3834 = vmatpush.bf16.msra.mxu0 %v2228
    %3835 = vmatpush.bf16.msra.mxu0 %v2220
    %3836 = vmatmul.bf16.gmra.mxu0 %v94
    %v3837 = vpop.f32.mrf.mxu0
    %v3838 = vadd.f32 %v3825, %v3837
    %v3839 = vpop.f32.mrf.mxu0
    %3840 = vdwg.mxu0
    %3841 = vmatpush.bf16.msra.mxu0 %v2340
    %3842 = vmatpush.bf16.msra.mxu0 %v2332
    %3843 = vmatpush.bf16.msra.mxu0 %v2324
    %3844 = vmatpush.bf16.msra.mxu0 %v2316
    %3845 = vmatpush.bf16.msra.mxu0 %v2308
    %3846 = vmatpush.bf16.msra.mxu0 %v2300
    %3847 = vmatpush.bf16.msra.mxu0 %v2292
    %3848 = vmatpush.bf16.msra.mxu0 %v2284
    %3849 = vmatmul.bf16.gmra.mxu0 %v95
    %v3850 = vpop.f32.mrf.mxu0
    %v3851 = vadd.f32 %v3838, %v3850
    %v3852 = vpop.f32.mrf.mxu0
    %3853 = vdwg.mxu0
    %3854 = vmatpush.bf16.msra.mxu0 %v2404
    %3855 = vmatpush.bf16.msra.mxu0 %v2396
    %3856 = vmatpush.bf16.msra.mxu0 %v2388
    %3857 = vmatpush.bf16.msra.mxu0 %v2380
    %3858 = vmatpush.bf16.msra.mxu0 %v2372
    %3859 = vmatpush.bf16.msra.mxu0 %v2364
    %3860 = vmatpush.bf16.msra.mxu0 %v2356
    %3861 = vmatpush.bf16.msra.mxu0 %v2348
    %3862 = vmatmul.bf16.gmra.mxu0 %v96
    %v3863 = vpop.f32.mrf.mxu0
    %v3864 = vadd.f32 %v3851, %v3863
    %v3865 = vpop.f32.mrf.mxu0
    %3866 = vdwg.mxu0
    %3867 = vmatpush.bf16.msra.mxu0 %v2468
    %3868 = vmatpush.bf16.msra.mxu0 %v2460
    %3869 = vmatpush.bf16.msra.mxu0 %v2452
    %3870 = vmatpush.bf16.msra.mxu0 %v2444
    %3871 = vmatpush.bf16.msra.mxu0 %v2436
    %3872 = vmatpush.bf16.msra.mxu0 %v2428
    %3873 = vmatpush.bf16.msra.mxu0 %v2420
    %3874 = vmatpush.bf16.msra.mxu0 %v2412
    %3875 = vmatmul.bf16.gmra.mxu0 %v97
    %v3876 = vpop.f32.mrf.mxu0
    %v3877 = vadd.f32 %v3864, %v3876
    %v3878 = vpop.f32.mrf.mxu0
    %3879 = vdwg.mxu0
    %3880 = vmatpush.bf16.msra.mxu0 %v2532
    %3881 = vmatpush.bf16.msra.mxu0 %v2524
    %3882 = vmatpush.bf16.msra.mxu0 %v2516
    %3883 = vmatpush.bf16.msra.mxu0 %v2508
    %3884 = vmatpush.bf16.msra.mxu0 %v2500
    %3885 = vmatpush.bf16.msra.mxu0 %v2492
    %3886 = vmatpush.bf16.msra.mxu0 %v2484
    %3887 = vmatpush.bf16.msra.mxu0 %v2476
    %3888 = vmatmul.bf16.gmra.mxu0 %v98
    %v3889 = vpop.f32.mrf.mxu0
    %v3890 = vadd.f32 %v3877, %v3889
    %v3891 = vpop.f32.mrf.mxu0
    %3892 = vdwg.mxu0
    %3893 = vmatpush.bf16.msra.mxu0 %v2596
    %3894 = vmatpush.bf16.msra.mxu0 %v2588
    %3895 = vmatpush.bf16.msra.mxu0 %v2580
    %3896 = vmatpush.bf16.msra.mxu0 %v2572
    %3897 = vmatpush.bf16.msra.mxu0 %v2564
    %3898 = vmatpush.bf16.msra.mxu0 %v2556
    %3899 = vmatpush.bf16.msra.mxu0 %v2548
    %3900 = vmatpush.bf16.msra.mxu0 %v2540
    %3901 = vmatmul.bf16.gmra.mxu0 %v99
    %v3902 = vpop.f32.mrf.mxu0
    %v3903 = vadd.f32 %v3890, %v3902
    %v3904 = vpop.f32.mrf.mxu0
    %3905 = vdwg.mxu0
    %3906 = vmatpush.bf16.msra.mxu0 %v2660
    %3907 = vmatpush.bf16.msra.mxu0 %v2652
    %3908 = vmatpush.bf16.msra.mxu0 %v2644
    %3909 = vmatpush.bf16.msra.mxu0 %v2636
    %3910 = vmatpush.bf16.msra.mxu0 %v2628
    %3911 = vmatpush.bf16.msra.mxu0 %v2620
    %3912 = vmatpush.bf16.msra.mxu0 %v2612
    %3913 = vmatpush.bf16.msra.mxu0 %v2604
    %3914 = vmatmul.bf16.gmra.mxu0 %v100
    %v3915 = vpop.f32.mrf.mxu0
    %v3916 = vadd.f32 %v3903, %v3915
    %v3917 = vpop.f32.mrf.mxu0
    %3918 = vdwg.mxu0
    %3919 = vmatpush.bf16.msra.mxu0 %v2213
    %3920 = vmatpush.bf16.msra.mxu0 %v2205
    %3921 = vmatpush.bf16.msra.mxu0 %v2197
    %3922 = vmatpush.bf16.msra.mxu0 %v2189
    %3923 = vmatpush.bf16.msra.mxu0 %v2181
    %3924 = vmatpush.bf16.msra.mxu0 %v2173
    %3925 = vmatpush.bf16.msra.mxu0 %v2165
    %3926 = vmatpush.bf16.msra.mxu0 %v2157
    %3927 = vmatmul.bf16.gmra.mxu0 %v93
    %v3928 = vpop.f32.mrf.mxu0
    %v3929 = vadd.f32 %v3182, %v3928
    %v3930 = vpop.f32.mrf.mxu0
    %3931 = vdwg.mxu0
    %3932 = vmatpush.bf16.msra.mxu0 %v2277
    %3933 = vmatpush.bf16.msra.mxu0 %v2269
    %3934 = vmatpush.bf16.msra.mxu0 %v2261
    %3935 = vmatpush.bf16.msra.mxu0 %v2253
    %3936 = vmatpush.bf16.msra.mxu0 %v2245
    %3937 = vmatpush.bf16.msra.mxu0 %v2237
    %3938 = vmatpush.bf16.msra.mxu0 %v2229
    %3939 = vmatpush.bf16.msra.mxu0 %v2221
    %3940 = vmatmul.bf16.gmra.mxu0 %v94
    %v3941 = vpop.f32.mrf.mxu0
    %v3942 = vadd.f32 %v3929, %v3941
    %v3943 = vpop.f32.mrf.mxu0
    %3944 = vdwg.mxu0
    %3945 = vmatpush.bf16.msra.mxu0 %v2341
    %3946 = vmatpush.bf16.msra.mxu0 %v2333
    %3947 = vmatpush.bf16.msra.mxu0 %v2325
    %3948 = vmatpush.bf16.msra.mxu0 %v2317
    %3949 = vmatpush.bf16.msra.mxu0 %v2309
    %3950 = vmatpush.bf16.msra.mxu0 %v2301
    %3951 = vmatpush.bf16.msra.mxu0 %v2293
    %3952 = vmatpush.bf16.msra.mxu0 %v2285
    %3953 = vmatmul.bf16.gmra.mxu0 %v95
    %v3954 = vpop.f32.mrf.mxu0
    %v3955 = vadd.f32 %v3942, %v3954
    %v3956 = vpop.f32.mrf.mxu0
    %3957 = vdwg.mxu0
    %3958 = vmatpush.bf16.msra.mxu0 %v2405
    %3959 = vmatpush.bf16.msra.mxu0 %v2397
    %3960 = vmatpush.bf16.msra.mxu0 %v2389
    %3961 = vmatpush.bf16.msra.mxu0 %v2381
    %3962 = vmatpush.bf16.msra.mxu0 %v2373
    %3963 = vmatpush.bf16.msra.mxu0 %v2365
    %3964 = vmatpush.bf16.msra.mxu0 %v2357
    %3965 = vmatpush.bf16.msra.mxu0 %v2349
    %3966 = vmatmul.bf16.gmra.mxu0 %v96
    %v3967 = vpop.f32.mrf.mxu0
    %v3968 = vadd.f32 %v3955, %v3967
    %v3969 = vpop.f32.mrf.mxu0
    %3970 = vdwg.mxu0
    %3971 = vmatpush.bf16.msra.mxu0 %v2469
    %3972 = vmatpush.bf16.msra.mxu0 %v2461
    %3973 = vmatpush.bf16.msra.mxu0 %v2453
    %3974 = vmatpush.bf16.msra.mxu0 %v2445
    %3975 = vmatpush.bf16.msra.mxu0 %v2437
    %3976 = vmatpush.bf16.msra.mxu0 %v2429
    %3977 = vmatpush.bf16.msra.mxu0 %v2421
    %3978 = vmatpush.bf16.msra.mxu0 %v2413
    %3979 = vmatmul.bf16.gmra.mxu0 %v97
    %v3980 = vpop.f32.mrf.mxu0
    %v3981 = vadd.f32 %v3968, %v3980
    %v3982 = vpop.f32.mrf.mxu0
    %3983 = vdwg.mxu0
    %3984 = vmatpush.bf16.msra.mxu0 %v2533
    %3985 = vmatpush.bf16.msra.mxu0 %v2525
    %3986 = vmatpush.bf16.msra.mxu0 %v2517
    %3987 = vmatpush.bf16.msra.mxu0 %v2509
    %3988 = vmatpush.bf16.msra.mxu0 %v2501
    %3989 = vmatpush.bf16.msra.mxu0 %v2493
    %3990 = vmatpush.bf16.msra.mxu0 %v2485
    %3991 = vmatpush.bf16.msra.mxu0 %v2477
    %3992 = vmatmul.bf16.gmra.mxu0 %v98
    %v3993 = vpop.f32.mrf.mxu0
    %v3994 = vadd.f32 %v3981, %v3993
    %v3995 = vpop.f32.mrf.mxu0
    %3996 = vdwg.mxu0
    %3997 = vmatpush.bf16.msra.mxu0 %v2597
    %3998 = vmatpush.bf16.msra.mxu0 %v2589
    %3999 = vmatpush.bf16.msra.mxu0 %v2581
    %4000 = vmatpush.bf16.msra.mxu0 %v2573
    %4001 = vmatpush.bf16.msra.mxu0 %v2565
    %4002 = vmatpush.bf16.msra.mxu0 %v2557
    %4003 = vmatpush.bf16.msra.mxu0 %v2549
    %4004 = vmatpush.bf16.msra.mxu0 %v2541
    %4005 = vmatmul.bf16.gmra.mxu0 %v99
    %v4006 = vpop.f32.mrf.mxu0
    %v4007 = vadd.f32 %v3994, %v4006
    %v4008 = vpop.f32.mrf.mxu0
    %4009 = vdwg.mxu0
    %4010 = vmatpush.bf16.msra.mxu0 %v2661
    %4011 = vmatpush.bf16.msra.mxu0 %v2653
    %4012 = vmatpush.bf16.msra.mxu0 %v2645
    %4013 = vmatpush.bf16.msra.mxu0 %v2637
    %4014 = vmatpush.bf16.msra.mxu0 %v2629
    %4015 = vmatpush.bf16.msra.mxu0 %v2621
    %4016 = vmatpush.bf16.msra.mxu0 %v2613
    %4017 = vmatpush.bf16.msra.mxu0 %v2605
    %4018 = vmatmul.bf16.gmra.mxu0 %v100
    %v4019 = vpop.f32.mrf.mxu0
    %v4020 = vadd.f32 %v4007, %v4019
    %v4021 = vpop.f32.mrf.mxu0
    %4022 = vdwg.mxu0
    %v4023 = vld [vmem:[#allocation8] sm:$0xff]
    %v4025 = vperm.slane %v4023, 0
    %v4026 = vperm.slane %v4023, 1
    %v4027 = vperm.slane %v4023, 2
    %v4028 = vperm.slane %v4023, 3
    %v4029 = vperm.slane %v4023, 4
    %v4030 = vperm.slane %v4023, 5
    %v4031 = vperm.slane %v4023, 6
    %v4032 = vperm.slane %v4023, 7
    %v4041 = vadd.f32 %v3292, %v4025
    %v4042 = vadd.f32 %v3396, %v4026
    %v4043 = vadd.f32 %v3500, %v4027
    %v4044 = vadd.f32 %v3604, %v4028
    %v4045 = vadd.f32 %v3708, %v4029
    %v4046 = vadd.f32 %v3812, %v4030
    %v4047 = vadd.f32 %v3916, %v4031
    %v4048 = vadd.f32 %v4020, %v4032
    %v4057 = vrot.slane %v4042, 7
    %v4058 = vrot.slane %v4043, 6
    %v4059 = vrot.slane %v4044, 5
    %v4060 = vrot.slane %v4045, 4
    %v4061 = vrot.slane %v4046, 3
    %v4062 = vrot.slane %v4047, 2
    %v4063 = vrot.slane %v4048, 1
    %vm4064 = vcmask 1040384
    %v4065 = vsel %vm4064, %v4041, %v4057
    %vm4066 = vcmask 1042434
    %v4067 = vsel %vm4066, %v4058, %v4059
    %vm4068 = vcmask 1041408
    %v4069 = vsel %vm4068, %v4065, %v4067
    %vm4070 = vcmask 1044484
    %v4071 = vsel %vm4070, %v4060, %v4061
    %vm4072 = vcmask 1046534
    %v4073 = vsel %vm4072, %v4062, %v4063
    %vm4074 = vcmask 1045508
    %v4075 = vsel %vm4074, %v4071, %v4073
    %vm4076 = vcmask 1043456
    %v4077 = vsel %vm4076, %v4069, %v4075
    %4079 = vst [vmem:[#allocation10] sm:$0xff] %v4077
    // Predicated region
    $region34: #{tpu_custom_call.1} parent=1 // pred_check
      _
    $region35: #{tpu_custom_call.1} parent=1 // pred_check_branch
      %4081 = sbr.rel (0) target = $region37
    $region36: #{tpu_custom_call.1} parent=1 // pred_region
      %4083 = vsyncadd [#allocation4], 0
      %s4085 = sshll.u32 [#allocation10], 4
      %s4086 = int_to_ptr.vmem [resolvable:$true] %s4085
      %s4087 = sshll.u32 %s4, 4
      %s4088 = int_to_ptr.hbm [resolvable:$true] %s4087
      %4090 = dma.vmem_to_hbm [thread:$0]  %s4086, 128, %s4088, [#allocation4]
    $region37: #{tpu_custom_call.1} parent=1 // pred_fallthru
      _
    // Predicated region
    $region38: #{tpu_custom_call.1} parent=1 // pred_check
      _
    $region39: #{tpu_custom_call.1} parent=1 // pred_check_branch
      %4092 = sbr.rel (0) target = $region41
    $region40: #{tpu_custom_call.1} parent=1 // pred_region
      %4094 = dma.done [#allocation4], 128
    $region41: #{tpu_custom_call.1} parent=1 // pred_fallthru
      _
    %4095 = vsyncpa [#allocation3], 1
    %4096 = vsyncpa [#allocation6], 1
    %4097 = vsyncpa [#allocation9], 1
    %4098 = vsyncpa [#allocation4], 1

</llo_original>
